<compile_context>
chip_gen: v6e
topology: v6e:2x2x1
jax: 0.10.0
libtpu: 0.0.40
codegen_flags: <defaults>
</compile_context>

<pallas_src>
from functools import partial

import jax
import jax.numpy as jnp
from jax.experimental import pallas as pl
from jax.experimental.pallas import tpu as pltpu

LANE = 128


def _round_up(x, m):
    return ((x + m - 1) // m) * m


def _pad2d(a, rows, cols):
    return jnp.pad(a, ((0, rows - a.shape[0]), (0, cols - a.shape[1])))


# --------------------------------------------------------------------------
# Pallas kernels: fused SAGEConv (+ folded BN affine + optional ReLU)
# --------------------------------------------------------------------------
def _sage_kernel(a_ref, y_ref, dinv_ref, xr_ref, ws_ref, sh_ref,
                 o_ref, acc_ref, *, apply_relu):
    """out = maybe_relu( concat([(1/deg)*(A@X), X], -1) @ [W_l'; W_r'] + shift' )."""
    k = pl.program_id(1)

    @pl.when(k == 0)
    def _init():
        acc_ref[...] = jnp.zeros_like(acc_ref)

    # Dominant N^2 matmul: bf16 adjacency tile x bf16 X chunk, f32 accumulate.
    acc_ref[...] += jnp.dot(a_ref[...], y_ref[...],
                            preferred_element_type=jnp.float32)

    @pl.when(k == pl.num_programs(1) - 1)
    def _finalize():
        agg = (acc_ref[...] * dinv_ref[...]).astype(jnp.bfloat16)   # mean agg
        cat = jnp.concatenate([agg, xr_ref[...]], axis=-1)          # (tm, 2*f_in)
        h = jnp.dot(cat, ws_ref[...], preferred_element_type=jnp.float32)
        h = h + sh_ref[...]
        if apply_relu:
            h = jnp.maximum(h, 0.0)
        o_ref[...] = h.astype(o_ref.dtype)


def _sage_preproj_kernel(a_ref, t_ref, dinv_ref, xr_ref, wr_ref, sh_ref,
                         o_ref, acc_ref, *, apply_relu):
    """out = maybe_relu( (1/deg)*(A@T) + X @ W_r' + shift' ), T = X @ W_l'."""
    k = pl.program_id(1)

    @pl.when(k == 0)
    def _init():
        acc_ref[...] = jnp.zeros_like(acc_ref)

    acc_ref[...] += jnp.dot(a_ref[...], t_ref[...],
                            preferred_element_type=jnp.float32)

    @pl.when(k == pl.num_programs(1) - 1)
    def _finalize():
        h = acc_ref[...] * dinv_ref[...]
        h = h + jnp.dot(xr_ref[...], wr_ref[...],
                        preferred_element_type=jnp.float32)
        h = h + sh_ref[...]
        if apply_relu:
            h = jnp.maximum(h, 0.0)
        o_ref[...] = h.astype(o_ref.dtype)


def sage_conv_fused(x, a_bin, deg_inv, lyr, *, tm=256, tk=1024,
                    vmem_limit_bytes=48 * 1024 * 1024):
    """One SAGEConv layer (BN folded).

    x       : (Np, f_in_pad)   bf16 lane-padded activations
    a_bin   : (Np, Np)         bf16 0/1 adjacency mask (zero-padded rows/cols)
    deg_inv : (Np, 1)          f32 per-row 1/deg (zero on padded rows)
    lyr     : dict with bf16 weights (w_stack / w_l / w_r), f32 shift, flags
    returns : (Np, f_out_pad)  bf16
    """
    Np, f_in = x.shape
    f_out = lyr["shift"].shape[1]
    tm = min(tm, Np)
    tk = min(tk, Np)
    assert Np % tm == 0 and Np % tk == 0, "pad N to a multiple of the tiles"
    assert f_in % LANE == 0 and f_out % LANE == 0, "pad channels to 128"
    grid = (Np // tm, Np // tk)

    compiler_params = pltpu.CompilerParams(
        dimension_semantics=("parallel", "arbitrary"),
        vmem_limit_bytes=vmem_limit_bytes,
    )

    if lyr["pre_project"]:
        # f_out_pad < f_in_pad: project first (tiny matmul, left to XLA) so the
        # N^2 aggregation matmul is only f_out wide.
        t = jnp.dot(x, lyr["w_l"],
                    preferred_element_type=jnp.float32).astype(jnp.bfloat16)
        kernel = partial(_sage_preproj_kernel, apply_relu=lyr["relu"])
        in_specs = [
            pl.BlockSpec((tm, tk), lambda i, k: (i, k)),        # A tile (bf16)
            pl.BlockSpec((tk, f_out), lambda i, k: (k, 0)),     # T = X @ W_l'
            pl.BlockSpec((tm, 1), lambda i, k: (i, 0)),         # 1/deg
            pl.BlockSpec((tm, f_in), lambda i, k: (i, 0)),      # root X rows
            pl.BlockSpec((f_in, f_out), lambda i, k: (0, 0)),   # W_r'
            pl.BlockSpec((1, f_out), lambda i, k: (0, 0)),      # shift'
        ]
        args = (a_bin, t, deg_inv, x, lyr["w_r"], lyr["shift"])
        acc_shape = (tm, f_out)
        agg_width = f_out
    else:
        kernel = partial(_sage_kernel, apply_relu=lyr["relu"])
        in_specs = [
            pl.BlockSpec((tm, tk), lambda i, k: (i, k)),          # A tile (bf16)
            pl.BlockSpec((tk, f_in), lambda i, k: (k, 0)),        # X K-chunk
            pl.BlockSpec((tm, 1), lambda i, k: (i, 0)),           # 1/deg
            pl.BlockSpec((tm, f_in), lambda i, k: (i, 0)),        # root X rows
            pl.BlockSpec((2 * f_in, f_out), lambda i, k: (0, 0)),  # [W_l'; W_r']
            pl.BlockSpec((1, f_out), lambda i, k: (0, 0)),        # shift'
        ]
        args = (a_bin, x, deg_inv, x, lyr["w_stack"], lyr["shift"])
        acc_shape = (tm, f_in)
        agg_width = f_in

    bpe = 2  # bf16 streams
    cost = pl.CostEstimate(
        flops=int(2 * Np * Np * agg_width + 2 * Np * (2 * f_in) * f_out),
        transcendentals=0,
        bytes_accessed=int(Np * Np * bpe                      # A stream
                           + (Np // tm) * Np * agg_width * bpe  # X/T re-reads
                           + Np * f_in * bpe + Np * f_out * bpe),
    )

    return pl.pallas_call(
        kernel,
        out_shape=jax.ShapeDtypeStruct((Np, f_out), jnp.bfloat16),
        grid_spec=pltpu.PrefetchScalarGridSpec(
            num_scalar_prefetch=0,
            grid=grid,
            in_specs=in_specs,
            out_specs=pl.BlockSpec((tm, f_out), lambda i, k: (i, 0)),
            scratch_shapes=[pltpu.VMEM(acc_shape, jnp.float32)],
        ),
        compiler_params=compiler_params,
        cost_estimate=cost,
    )(*args)


# --------------------------------------------------------------------------
# Deterministic parameter initialization (matches module __init__ shapes)
# --------------------------------------------------------------------------
def init_sage_params(key, f_in, f_out):
    k1, k2, k3 = jax.random.split(key, 3)
    s = 1.0 / jnp.sqrt(jnp.float32(f_in))
    w_l = jax.random.uniform(k1, (f_in, f_out), jnp.float32, -s, s)  # lin_l (bias)
    w_r = jax.random.uniform(k2, (f_in, f_out), jnp.float32, -s, s)  # lin_r
    b = jax.random.uniform(k3, (f_out,), jnp.float32, -s, s)
    return w_l, w_r, b


def init_bn_affine(key, c, eps=1e-5):
    """BatchNorm1d in eval mode folded to (scale, shift)."""
    k1, k2, k3, k4 = jax.random.split(key, 4)
    gamma = 1.0 + 0.1 * jax.random.normal(k1, (c,), jnp.float32)
    beta = 0.1 * jax.random.normal(k2, (c,), jnp.float32)
    rmean = 0.1 * jax.random.normal(k3, (c,), jnp.float32)
    rvar = 1.0 + 0.1 * jax.random.uniform(k4, (c,), jnp.float32)
    scale = gamma / jnp.sqrt(rvar + eps)
    shift = beta - rmean * scale
    return scale, shift


def build_lasage_raw_params(key, concat, in_channels, hidden_channels,
                            out_channels, num_layers):
    params = {"initial": [], "mid": [], "final": None}
    keys = jax.random.split(key, 2 * concat + 2 * (num_layers - 2) + 1)
    ki = 0
    for _ in range(concat):
        conv = init_sage_params(keys[ki], in_channels, hidden_channels); ki += 1
        bn = init_bn_affine(keys[ki], hidden_channels); ki += 1
        params["initial"].append((conv, bn))
    ch = concat * hidden_channels
    for _ in range(num_layers - 2):
        conv = init_sage_params(keys[ki], ch, ch); ki += 1
        bn = init_bn_affine(keys[ki], ch); ki += 1
        params["mid"].append((conv, bn))
    params["final"] = init_sage_params(keys[ki], ch, out_channels)
    return params


# --------------------------------------------------------------------------
# Host-side preparation: BN fold, concat-branch fusion, lane padding, bf16 cast
# --------------------------------------------------------------------------
def _block_diag(mats):
    rows = sum(m.shape[0] for m in mats)
    cols = sum(m.shape[1] for m in mats)
    out = jnp.zeros((rows, cols), mats[0].dtype)
    r = c = 0
    for m in mats:
        out = out.at[r:r + m.shape[0], c:c + m.shape[1]].set(m)
        r += m.shape[0]
        c += m.shape[1]
    return out


def _make_layer(w_l, w_r, shift, *, relu):
    f_in, f_out = w_l.shape
    f_in_p = _round_up(f_in, LANE)
    f_out_p = _round_up(f_out, LANE)
    w_l_p = _pad2d(w_l, f_in_p, f_out_p)
    w_r_p = _pad2d(w_r, f_in_p, f_out_p)
    return dict(
        w_l=w_l_p.astype(jnp.bfloat16),
        w_r=w_r_p.astype(jnp.bfloat16),
        w_stack=jnp.concatenate([w_l_p, w_r_p], axis=0).astype(jnp.bfloat16),
        shift=_pad2d(shift.reshape(1, -1), 1, f_out_p).astype(jnp.float32),
        relu=relu,
        # Only pre-project when the PADDED output width is genuinely narrower
        # than the padded input width (otherwise it saves nothing and adds an
        # extra matmul + an HBM round trip of T).
        pre_project=f_out_p < f_in_p,
    )


def prepare_lasage_params(raw):
    layers = []

    # Fused initial stage: one block-diagonal layer over all concat branches,
    # so the adjacency is streamed once instead of `concat` times.
    wl_b, wr_b, sh_b = [], [], []
    for (wl, wr, b), (sc, sh) in raw["initial"]:
        wl_b.append(wl * sc[None, :])
        wr_b.append(wr * sc[None, :])
        sh_b.append(b * sc + sh)
    layers.append(_make_layer(_block_diag(wl_b), _block_diag(wr_b),
                              jnp.concatenate(sh_b), relu=True))

    # Middle stages (BN folded).
    for (wl, wr, b), (sc, sh) in raw["mid"]:
        layers.append(_make_layer(wl * sc[None, :], wr * sc[None, :],
                                  b * sc + sh, relu=True))

    # Final stage: no BN, no ReLU.
    wl, wr, b = raw["final"]
    layers.append(_make_layer(wl, wr, b, relu=False))
    return layers


# --------------------------------------------------------------------------
# Full LASAGE forward (eval mode: dropout is identity)
# --------------------------------------------------------------------------
def lasage_forward(layers, x_pad, a_bin, deg_inv, *, tm=256, tk=1024):
    x = x_pad
    for lyr in layers:
        x = sage_conv_fused(x, a_bin, deg_inv, lyr, tm=tm, tk=tk)
    return x  # lane/row-padded bf16; caller slices to true (N, out_channels)


# Pure-JAX f32 reference (same math as the PyTorch module, no Pallas).
def lasage_reference(raw, x_list, a_norm):
    hidden = []
    for i, ((wl, wr, b), (sc, sh)) in enumerate(raw["initial"]):
        h = (a_norm @ x_list[i]) @ wl + x_list[i] @ wr + b
        h = h * sc + sh
        hidden.append(jnp.maximum(h, 0.0))
    x = jnp.concatenate(hidden, axis=-1)
    for (wl, wr, b), (sc, sh) in raw["mid"]:
        h = (a_norm @ x) @ wl + x @ wr + b
        h = h * sc + sh
        x = jnp.maximum(h, 0.0)
    wl, wr, b = raw["final"]
    return (a_norm @ x) @ wl + x @ wr + b


if __name__ == "__main__":
    # Small synthetic graph / model config (consistent with the module)
    N = 200           # nodes (not a multiple of the tile, exercises padding)
    concat = 2
    in_channels = 16
    hidden_channels = 32
    out_channels = 8
    num_layers = 3
    # dropout = 0.5 (eval mode -> identity)

    TM, TK = 256, 1024   # tm multiple of 256 (MXU), tk 1k+ (roofline regime)

    key = jax.random.PRNGKey(0)
    k_adj, k_feat, k_param = jax.random.split(key, 3)

    # Dense adjacency (adj_t); SAGE mean aggregation = (1/deg) * (A @ X).
    adj = (jax.random.uniform(k_adj, (N, N)) < 0.1).astype(jnp.float32)
    adj = adj * (1.0 - jnp.eye(N, dtype=jnp.float32))
    deg = jnp.maximum(adj.sum(axis=1, keepdims=True), 1.0)
    a_norm = adj / deg                       # reference only

    # x_list: `concat` node-feature matrices of shape (N, in_channels)
    fkeys = jax.random.split(k_feat, concat)
    x_list = [jax.random.normal(fk, (N, in_channels), jnp.float32) for fk in fkeys]

    raw = build_lasage_raw_params(k_param, concat, in_channels,
                                  hidden_channels, out_channels, num_layers)
    layers = prepare_lasage_params(raw)

    # Padded / low-precision kernel inputs.  Zero-padding keeps padded
    # adjacency columns at 0, so relu(shift') garbage on padded rows can never
    # leak into real rows between layers; padded rows are sliced off at the end.
    Np = _round_up(N, max(TM, TK))
    assert Np % TM == 0 and Np % TK == 0
    f_in0 = _round_up(concat * in_channels, LANE)
    x_cat = jnp.concatenate(x_list, axis=-1)
    x_pad = _pad2d(x_cat, Np, f_in0).astype(jnp.bfloat16)
    a_bin = _pad2d(adj, Np, Np).astype(jnp.bfloat16)   # 0/1 mask: exact in bf16
    deg_inv = _pad2d(1.0 / deg, Np, 1)                 # f32; 0 on padded rows

    out_pad = lasage_forward(layers, x_pad, a_bin, deg_inv, tm=TM, tk=TK)
    out_pad = jax.block_until_ready(out_pad)
    out = out_pad[:N, :out_channels].astype(jnp.float32)

    ref = lasage_reference(raw, x_list, a_norm)
    assert out.shape == (N, out_channels)
    max_err = float(jnp.max(jnp.abs(out - ref)))
    # bf16 activations/weights (f32 accumulation) -> looser tolerance than f32.
    assert jnp.allclose(out, ref, atol=5e-2, rtol=5e-2), \
        f"mismatch vs reference: {max_err}"

    print("KERNEL_OK")
</pallas_src>

<mosaic_0001>
module attributes {stable_mosaic.version = 11 : i64} {
  func.func @_sage_kernel(%arg0: i32, %arg1: i32, %arg2: memref<256x1024xbf16, #tpu.memory_space<vmem>>, %arg3: memref<1024x128xbf16, #tpu.memory_space<vmem>>, %arg4: memref<256x1xf32, #tpu.memory_space<vmem>>, %arg5: memref<256x128xbf16, #tpu.memory_space<vmem>>, %arg6: memref<256x128xbf16, #tpu.memory_space<vmem>>, %arg7: memref<1x128xf32, #tpu.memory_space<vmem>>, %arg8: memref<256x128xbf16, #tpu.memory_space<vmem>>, %arg9: memref<256x128xf32, #tpu.memory_space<vmem>>) attributes {dimension_semantics = [#tpu.dimension_semantics<parallel>, #tpu.dimension_semantics<arbitrary>], iteration_bounds = array<i64: 4, 1>, scalar_prefetch = 0 : i64, scratch_operands = 1 : i64, tpu.core_type = #tpu.core_type<tc>, window_params = [{transform_indices = @transform_0, window_bounds = array<i64: 256, 1024>}, {transform_indices = @transform_1, window_bounds = array<i64: 1024, 128>}, {transform_indices = @transform_2, window_bounds = array<i64: 256, 1>}, {transform_indices = @transform_3, window_bounds = array<i64: 256, 128>}, {pipeline_mode = #tpu.pipeline_mode<synchronous>, transform_indices = @transform_4, window_bounds = array<i64: 256, 128>}, {pipeline_mode = #tpu.pipeline_mode<synchronous>, transform_indices = @transform_5, window_bounds = array<i64: 1, 128>}, {transform_indices = @transform_6, window_bounds = array<i64: 256, 128>}]} {
    %c0_i32 = arith.constant 0 : i32
    %0 = arith.cmpi eq, %arg1, %c0_i32 : i32
    %1 = arith.extui %0 : i1 to i32
    %c0_i32_0 = arith.constant 0 : i32
    %2 = arith.cmpi ne, %1, %c0_i32_0 : i32
    scf.if %2 {
      %cst_10 = arith.constant 0.000000e+00 : f32
      %12 = vector.broadcast %cst_10 : f32 to vector<256x128xf32>
      %c0_11 = arith.constant 0 : index
      %c0_12 = arith.constant 0 : index
      %13 = vector.load %arg9[%c0_11, %c0_12] : memref<256x128xf32, #tpu.memory_space<vmem>>, vector<256x128xf32>
      tpu.vector_store %arg9[%c0_11, %c0_12], %12 {strides = array<i32>} : memref<256x128xf32, #tpu.memory_space<vmem>>, vector<256x128xf32>,
    } else {
    }
    %c0 = arith.constant 0 : index
    %c0_1 = arith.constant 0 : index
    %3 = vector.load %arg9[%c0, %c0_1] : memref<256x128xf32, #tpu.memory_space<vmem>>, vector<256x128xf32>
    %c0_2 = arith.constant 0 : index
    %c0_3 = arith.constant 0 : index
    %4 = vector.load %arg2[%c0_2, %c0_3] : memref<256x1024xbf16, #tpu.memory_space<vmem>>, vector<256x1024xbf16>
    %c0_4 = arith.constant 0 : index
    %c0_5 = arith.constant 0 : index
    %5 = vector.load %arg3[%c0_4, %c0_5] : memref<1024x128xbf16, #tpu.memory_space<vmem>>, vector<1024x128xbf16>
    %cst = arith.constant dense<0.000000e+00> : vector<256x128xf32>
    %6 = tpu.matmul %4, %5, %cst {dimension_numbers = #tpu.dot_dimension_numbers<[1], [0], [0], [1], [0, 0, 1, 1], [], []>} : vector<256x1024xbf16>, vector<1024x128xbf16>, vector<256x128xf32> -> vector<256x128xf32>
    %7 = arith.addf %3, %6 : vector<256x128xf32>
    %c0_6 = arith.constant 0 : index
    %c0_7 = arith.constant 0 : index
    %8 = vector.load %arg9[%c0_6, %c0_7] : memref<256x128xf32, #tpu.memory_space<vmem>>, vector<256x128xf32>
    tpu.vector_store %arg9[%c0_6, %c0_7], %7 {strides = array<i32>} : memref<256x128xf32, #tpu.memory_space<vmem>>, vector<256x128xf32>,
    %c0_i32_8 = arith.constant 0 : i32
    %9 = arith.cmpi eq, %arg1, %c0_i32_8 : i32
    %10 = arith.extui %9 : i1 to i32
    %c0_i32_9 = arith.constant 0 : i32
    %11 = arith.cmpi ne, %10, %c0_i32_9 : i32
    scf.if %11 {
      %c0_10 = arith.constant 0 : index
      %c0_11 = arith.constant 0 : index
      %12 = vector.load %arg9[%c0_10, %c0_11] : memref<256x128xf32, #tpu.memory_space<vmem>>, vector<256x128xf32>
      %c0_12 = arith.constant 0 : index
      %c0_13 = arith.constant 0 : index
      %13 = vector.load %arg4[%c0_12, %c0_13] : memref<256x1xf32, #tpu.memory_space<vmem>>, vector<256x1xf32>
      %14 = vector.broadcast %13 : vector<256x1xf32> to vector<256x128xf32>
      %15 = arith.mulf %12, %14 : vector<256x128xf32>
      %16 = arith.truncf %15 : vector<256x128xf32> to vector<256x128xbf16>
      %c0_14 = arith.constant 0 : index
      %c0_15 = arith.constant 0 : index
      %17 = vector.load %arg5[%c0_14, %c0_15] : memref<256x128xbf16, #tpu.memory_space<vmem>>, vector<256x128xbf16>
      %18 = tpu.concatenate %16, %17 in 1 : vector<256x128xbf16>, vector<256x128xbf16> -> vector<256x256xbf16>
      %c0_16 = arith.constant 0 : index
      %c0_17 = arith.constant 0 : index
      %19 = vector.load %arg6[%c0_16, %c0_17] : memref<256x128xbf16, #tpu.memory_space<vmem>>, vector<256x128xbf16>
      %cst_18 = arith.constant dense<0.000000e+00> : vector<256x128xf32>
      %20 = tpu.matmul %18, %19, %cst_18 {dimension_numbers = #tpu.dot_dimension_numbers<[1], [0], [0], [1], [0, 0, 1, 1], [], []>} : vector<256x256xbf16>, vector<256x128xbf16>, vector<256x128xf32> -> vector<256x128xf32>
      %c0_19 = arith.constant 0 : index
      %c0_20 = arith.constant 0 : index
      %21 = vector.load %arg7[%c0_19, %c0_20] : memref<1x128xf32, #tpu.memory_space<vmem>>, vector<1x128xf32>
      %22 = vector.broadcast %21 : vector<1x128xf32> to vector<256x128xf32>
      %23 = arith.addf %20, %22 : vector<256x128xf32>
      %cst_21 = arith.constant 0.000000e+00 : f32
      %24 = vector.broadcast %cst_21 : f32 to vector<256x128xf32>
      %25 = arith.maximumf %23, %24 : vector<256x128xf32>
      %26 = arith.truncf %25 : vector<256x128xf32> to vector<256x128xbf16>
      %c0_22 = arith.constant 0 : index
      %c0_23 = arith.constant 0 : index
      %27 = vector.load %arg8[%c0_22, %c0_23] : memref<256x128xbf16, #tpu.memory_space<vmem>>, vector<256x128xbf16>
      tpu.vector_store %arg8[%c0_22, %c0_23], %26 {strides = array<i32>} : memref<256x128xbf16, #tpu.memory_space<vmem>>, vector<256x128xbf16>,
    } else {
    }
    return
  }
  func.func @transform_0(%arg0: i32, %arg1: i32) -> (i32, i32) {
    %c0_i32 = arith.constant 0 : i32
    return %arg0, %arg1 : i32, i32
  }
  func.func @transform_1(%arg0: i32, %arg1: i32) -> (i32, i32) {
    %c0_i32 = arith.constant 0 : i32
    %c0_i32_0 = arith.constant 0 : i32
    return %arg1, %c0_i32 : i32, i32
  }
  func.func @transform_2(%arg0: i32, %arg1: i32) -> (i32, i32) {
    %c0_i32 = arith.constant 0 : i32
    %c0_i32_0 = arith.constant 0 : i32
    return %arg0, %c0_i32 : i32, i32
  }
  func.func @transform_3(%arg0: i32, %arg1: i32) -> (i32, i32) {
    %c0_i32 = arith.constant 0 : i32
    %c0_i32_0 = arith.constant 0 : i32
    return %arg0, %c0_i32 : i32, i32
  }
  func.func @transform_4(%arg0: i32, %arg1: i32) -> (i32, i32) {
    %c0_i32 = arith.constant 0 : i32
    %c0_i32_0 = arith.constant 0 : i32
    %c0_i32_1 = arith.constant 0 : i32
    return %c0_i32, %c0_i32_0 : i32, i32
  }
  func.func @transform_5(%arg0: i32, %arg1: i32) -> (i32, i32) {
    %c0_i32 = arith.constant 0 : i32
    %c0_i32_0 = arith.constant 0 : i32
    %c0_i32_1 = arith.constant 0 : i32
    return %c0_i32, %c0_i32_0 : i32, i32
  }
  func.func @transform_6(%arg0: i32, %arg1: i32) -> (i32, i32) {
    %c0_i32 = arith.constant 0 : i32
    %c0_i32_0 = arith.constant 0 : i32
    return %arg0, %c0_i32 : i32, i32
  }
}

</mosaic_0001>

<llo_original>
// kernel: tpu_custom_call.1
$region0: #{tpu_custom_call.1}
  #allocation0 [shape = 'u32[]', space=smem, size = 0x4, offset = 0x4, fixed_abs, tag = 'smem constant byte address 0x4 - core index']
  #allocation1 [shape = 'u32[144,128]{1,0:T(1,128)}', space=vmem, size = 0x12000, scoped, tag = 'internal scratch']
  #allocation2 [shape = 'f32[256,128]{1,0:T(8,128)}', space=vmem, size = 0x20000, scoped, tag = 'scratch operand']
  %s0 = inlined_call_operand.hbm [shape: bf16[1024,1024], index: 0, kind: input, shape index: {}]
  %s1 = inlined_call_operand.hbm [shape: bf16[1024,128], index: 1, kind: input, shape index: {}]
  %s2 = inlined_call_operand.vmem [shape: f32[1024,1], index: 2, kind: input, shape index: {}]
  %s3 = inlined_call_operand.hbm [shape: bf16[1024,128], index: 3, kind: input, shape index: {}]
  %s4 = inlined_call_operand.hbm [shape: bf16[256,128], index: 4, kind: input, shape index: {}]
  %s5 = inlined_call_operand.hbm [shape: f32[1,128], index: 5, kind: input, shape index: {}]
  %s6 = inlined_call_operand.hbm [shape: bf16[1024,128], index: 6, kind: output, shape index: {}]
  %s7 = sld [smem:[#allocation0]]
  $region85: #{tpu_custom_call.1} parent=0
    _
  %s9 = ssub.s32 1, %s7
  %s10 = scalar_select 0, %s9, %s7
  $region1: #{tpu_custom_call.1} parent=0
    #allocation3 [shape = 'u8[1048576]{0}', space=vmem, size = 0x100000, scoped, tag = 'input window, operand 0']
    #allocation4 [shape = 's32[2]{0}', space=sflag, size = 0x8, scoped, tag = 'scoped memory for tpu_custom_call.1']
    #allocation5 [shape = 's32[2]{0}', space=sflag, size = 0x8, scoped, tag = 'scoped memory for tpu_custom_call.1']
    #allocation6 [shape = 'u8[262144]{0}', space=vmem, size = 0x40000, scoped, tag = 'input window, operand 1, single buffered']
    #allocation7 [shape = 's32[1]{0}', space=sflag, size = 0x4, scoped, tag = 'scoped memory for tpu_custom_call.1']
    #allocation8 [shape = 'u8[131072]{0}', space=vmem, size = 0x20000, scoped, tag = 'input window, operand 3']
    #allocation9 [shape = 'u8[65536]{0}', space=vmem, size = 0x10000, scoped, tag = 'input window, operand 4, single buffered']
    #allocation10 [shape = 'u8[512]{0}', space=vmem, size = 0x400, scoped, tag = 'input window, operand 5, single buffered']
    #allocation11 [shape = 's32[1]{0}', space=sflag, size = 0x4, scoped, tag = 'scoped memory for tpu_custom_call.1']
    #allocation12 [shape = 'u8[131072]{0}', space=vmem, size = 0x20000, scoped, tag = 'output window, operand 0']
    %11 = vsyncpa [#allocation4], 0
    %s12 = scalar_lea.sflag [#allocation4], 1
    %13 = vsyncpa %s12, 0
    %14 = vsyncpa [#allocation7], 0
    %15 = vsyncpa [#allocation11], 0
    %16 = vsyncpa [#allocation5], 0
    %s17 = scalar_lea.sflag [#allocation5], 1
    %18 = vsyncpa %s17, 0
    loop: start=0, step=1, limit=6
    $region2: #{tpu_custom_call.1} parent=1 // loop_pre_header
      _
    $region3: #{tpu_custom_call.1} parent=1 // loop_header
      %s20 = sphi 0, %s24
      %p21 = scmp.ge.s32.totalorder %s20, 6
      %s27 = sphi 0, %s39
      %s28 = sphi 0, %s35
      %s29 = sphi 0, %s27
      %s30 = sphi 0, %s28
      %s31 = sphi 0, %s29
      %s32 = sphi 0, %s30
      %s44 = sphi 0, %s46
      %s47 = sphi 0, %s44
      %s48 = sphi 0, %s47
      %s64 = sphi 0, %s48
      %s70 = sphi 0, %s72
      %s73 = sphi 0, %s70
      %s74 = sphi 0, %s73
      %s90 = sphi 0, %s74
      %s96 = sphi 0, %s98
      %s99 = sphi 0, %s96
      %s100 = sphi 0, %s99
      %s116 = sphi 0, %s100
      %s122 = sphi 0, %s124
      %s125 = sphi 0, %s122
      %s126 = sphi 0, %s125
      %s142 = sphi 0, %s126
      %s146 = sphi 0, %s146
      %s148 = sphi 0, %s146
      %s149 = sphi 0, %s148
      %s163 = sphi 0, %s149
      %s167 = sphi 0, %s167
      %s169 = sphi 0, %s167
      %s170 = sphi 0, %s169
      %s184 = sphi 0, %s170
      %s190 = sphi 0, %s192
      %s193 = sphi 0, %s190
      %s194 = sphi 0, %s193
      %s210 = sphi 0, %s194
    $region4: #{tpu_custom_call.1} parent=1 // loop_header_branch
      %23 = sbr.rel (%p21) target = $region8
    $region5: #{tpu_custom_call.1} parent=1 // loop_body
      %s25 = ssub.s32 %s20, 1
      %s26 = ssub.s32 %s20, 2
      %s33 = sadd.s32 1, %s28
      %p34 = scmp.ge.s32.totalorder %s33, 1
      %s35 = scalar_select %p34, 0, %s33
      %s36 = sadd.s32 1, %s27
      %s37 = scalar_select %p34, %s36, %s27
      %p38 = scmp.ge.s32.totalorder %s37, 4
      %s39 = scalar_select %p38, 0, %s37
      %s40 = ssub.s32 %s27, %s39
      %s41 = ssub.s32 %s28, %s35
      %s42 = sor.u32 %s40, %s41
      %p43 = scmp.eq.s32.totalorder %s42, 0
      %s45 = sadd.s32 %s44, 1
      %s46 = scalar_select %p43, %s44, %s45
      %p49 = pneg %p43
      %p50 = scmp.eq.s32.totalorder %s20, 3
      %p51 = por %p49, %p50
      %p52 = scmp.ne.s32.totalorder %s44, %s47
      %p53 = scmp.eq.s32.totalorder %s20, 0
      %p54 = por %p52, %p53
      %p55 = scmp.ne.s32.totalorder %s44, %s47
      %p56 = scmp.eq.s32.totalorder %s25, 3
      %p57 = por %p55, %p56
      %p58 = scmp.ne.s32.totalorder %s47, %s48
      %p59 = scmp.eq.s32.totalorder %s25, 0
      %p60 = por %p58, %p59
      %p61 = scmp.ne.s32.totalorder %s47, %s48
      %p62 = scmp.eq.s32.totalorder %s26, 3
      %p63 = por %p61, %p62
      %p65 = scmp.ne.s32.totalorder %s48, %s64
      %p66 = scmp.eq.s32.totalorder %s26, 0
      %p67 = por %p65, %p66
      %s68 = ssub.s32 %s28, %s35
      %p69 = scmp.eq.s32.totalorder %s68, 0
      %s71 = sadd.s32 %s70, 1
      %s72 = scalar_select %p69, %s70, %s71
      %p75 = pneg %p69
      %p76 = scmp.eq.s32.totalorder %s20, 3
      %p77 = por %p75, %p76
      %p78 = scmp.ne.s32.totalorder %s70, %s73
      %p79 = scmp.eq.s32.totalorder %s20, 0
      %p80 = por %p78, %p79
      %p81 = scmp.ne.s32.totalorder %s70, %s73
      %p82 = scmp.eq.s32.totalorder %s25, 3
      %p83 = por %p81, %p82
      %p84 = scmp.ne.s32.totalorder %s73, %s74
      %p85 = scmp.eq.s32.totalorder %s25, 0
      %p86 = por %p84, %p85
      %p87 = scmp.ne.s32.totalorder %s73, %s74
      %p88 = scmp.eq.s32.totalorder %s26, 3
      %p89 = por %p87, %p88
      %p91 = scmp.ne.s32.totalorder %s74, %s90
      %p92 = scmp.eq.s32.totalorder %s26, 0
      %p93 = por %p91, %p92
      %s94 = ssub.s32 %s27, %s39
      %p95 = scmp.eq.s32.totalorder %s94, 0
      %s97 = sadd.s32 %s96, 1
      %s98 = scalar_select %p95, %s96, %s97
      %p101 = pneg %p95
      %p102 = scmp.eq.s32.totalorder %s20, 3
      %p103 = por %p101, %p102
      %p104 = scmp.ne.s32.totalorder %s96, %s99
      %p105 = scmp.eq.s32.totalorder %s20, 0
      %p106 = por %p104, %p105
      %p107 = scmp.ne.s32.totalorder %s96, %s99
      %p108 = scmp.eq.s32.totalorder %s25, 3
      %p109 = por %p107, %p108
      %p110 = scmp.ne.s32.totalorder %s99, %s100
      %p111 = scmp.eq.s32.totalorder %s25, 0
      %p112 = por %p110, %p111
      %p113 = scmp.ne.s32.totalorder %s99, %s100
      %p114 = scmp.eq.s32.totalorder %s26, 3
      %p115 = por %p113, %p114
      %p117 = scmp.ne.s32.totalorder %s100, %s116
      %p118 = scmp.eq.s32.totalorder %s26, 0
      %p119 = por %p117, %p118
      %s120 = ssub.s32 %s27, %s39
      %p121 = scmp.eq.s32.totalorder %s120, 0
      %s123 = sadd.s32 %s122, 1
      %s124 = scalar_select %p121, %s122, %s123
      %p127 = pneg %p121
      %p128 = scmp.eq.s32.totalorder %s20, 3
      %p129 = por %p127, %p128
      %p130 = scmp.ne.s32.totalorder %s122, %s125
      %p131 = scmp.eq.s32.totalorder %s20, 0
      %p132 = por %p130, %p131
      %p133 = scmp.ne.s32.totalorder %s122, %s125
      %p134 = scmp.eq.s32.totalorder %s25, 3
      %p135 = por %p133, %p134
      %p136 = scmp.ne.s32.totalorder %s125, %s126
      %p137 = scmp.eq.s32.totalorder %s25, 0
      %p138 = por %p136, %p137
      %p139 = scmp.ne.s32.totalorder %s125, %s126
      %p140 = scmp.eq.s32.totalorder %s26, 3
      %p141 = por %p139, %p140
      %p143 = scmp.ne.s32.totalorder %s126, %s142
      %p144 = scmp.eq.s32.totalorder %s26, 0
      %p145 = por %p143, %p144
      %s147 = sadd.s32 %s146, 1
      %p150 = scmp.eq.s32.totalorder %s20, 3
      %p151 = scmp.ne.s32.totalorder %s146, %s148
      %p152 = scmp.eq.s32.totalorder %s20, 0
      %p153 = por %p151, %p152
      %p154 = scmp.ne.s32.totalorder %s146, %s148
      %p155 = scmp.eq.s32.totalorder %s25, 3
      %p156 = por %p154, %p155
      %p157 = scmp.ne.s32.totalorder %s148, %s149
      %p158 = scmp.eq.s32.totalorder %s25, 0
      %p159 = por %p157, %p158
      %p160 = scmp.ne.s32.totalorder %s148, %s149
      %p161 = scmp.eq.s32.totalorder %s26, 3
      %p162 = por %p160, %p161
      %p164 = scmp.ne.s32.totalorder %s149, %s163
      %p165 = scmp.eq.s32.totalorder %s26, 0
      %p166 = por %p164, %p165
      %s168 = sadd.s32 %s167, 1
      %p171 = scmp.eq.s32.totalorder %s20, 3
      %p172 = scmp.ne.s32.totalorder %s167, %s169
      %p173 = scmp.eq.s32.totalorder %s20, 0
      %p174 = por %p172, %p173
      %p175 = scmp.ne.s32.totalorder %s167, %s169
      %p176 = scmp.eq.s32.totalorder %s25, 3
      %p177 = por %p175, %p176
      %p178 = scmp.ne.s32.totalorder %s169, %s170
      %p179 = scmp.eq.s32.totalorder %s25, 0
      %p180 = por %p178, %p179
      %p181 = scmp.ne.s32.totalorder %s169, %s170
      %p182 = scmp.eq.s32.totalorder %s26, 3
      %p183 = por %p181, %p182
      %p185 = scmp.ne.s32.totalorder %s170, %s184
      %p186 = scmp.eq.s32.totalorder %s26, 0
      %p187 = por %p185, %p186
      %s188 = ssub.s32 %s27, %s39
      %p189 = scmp.eq.s32.totalorder %s188, 0
      %s191 = sadd.s32 %s190, 1
      %s192 = scalar_select %p189, %s190, %s191
      %p195 = pneg %p189
      %p196 = scmp.eq.s32.totalorder %s20, 3
      %p197 = por %p195, %p196
      %p198 = scmp.ne.s32.totalorder %s190, %s193
      %p199 = scmp.eq.s32.totalorder %s20, 0
      %p200 = por %p198, %p199
      %p201 = scmp.ne.s32.totalorder %s190, %s193
      %p202 = scmp.eq.s32.totalorder %s25, 3
      %p203 = por %p201, %p202
      %p204 = scmp.ne.s32.totalorder %s193, %s194
      %p205 = scmp.eq.s32.totalorder %s25, 0
      %p206 = por %p204, %p205
      %p207 = scmp.ne.s32.totalorder %s193, %s194
      %p208 = scmp.eq.s32.totalorder %s26, 3
      %p209 = por %p207, %p208
      %p211 = scmp.ne.s32.totalorder %s194, %s210
      %p212 = scmp.eq.s32.totalorder %s26, 0
      %p213 = por %p211, %p212
      %p214 = scmp.le.s32.totalorder 1, %s20
      %p215 = scmp.lt.s32.totalorder %s20, 5
      %p216 = pnand %p214, %p215
      %p217 = pneg %p216
      // Predicated region
      $region9: #{tpu_custom_call.1} parent=5 // pred_check
        _
      $region10: #{tpu_custom_call.1} parent=5 // pred_check_branch
        %219 = sbr.rel (%p216) target = $region12
      $region11: #{tpu_custom_call.1} parent=5 // pred_region
        %s220 = ssub.s32 %s20, 1
        // Predicated region
        $region13: #{tpu_custom_call.1} parent=11 // pred_check
          %p221 = pneg %p86
        $region14: #{tpu_custom_call.1} parent=11 // pred_check_branch
          %223 = sbr.rel (%p221) target = $region16
        $region15: #{tpu_custom_call.1} parent=11 // pred_region
          %s224 = smul.u32 128, %s30
          %s226 = ssub.s32 8192, 8192
          %227 = vsyncadd [#allocation7], %s226
          %s228 = smul.addr %s224, 64
          %s229 = scalar_lea.hbm %s1, %s228
          %s230 = sshll.u32 [#allocation6], 4
          %s231 = int_to_ptr.vmem [resolvable:$true] %s230
          %236 = dma.hbm_to_vmem [thread:$0]  %s229, 8192, %s231, [#allocation7], 64, 64, 4
        $region16: #{tpu_custom_call.1} parent=11 // pred_fallthru
          _
        // Predicated region
        $region17: #{tpu_custom_call.1} parent=11 // pred_check
          %p237 = pneg %p159
        $region18: #{tpu_custom_call.1} parent=11 // pred_check_branch
          %239 = sbr.rel (%p237) target = $region20
        $region19: #{tpu_custom_call.1} parent=11 // pred_region
          %s241 = ssub.s32 2048, 2048
          %242 = vsyncadd [#allocation7], %s241
          %s243 = sshll.u32 [#allocation9], 4
          %s244 = int_to_ptr.vmem [resolvable:$true] %s243
          %249 = dma.hbm_to_vmem [thread:$0]  %s4, 2048, %s244, [#allocation7], 64, 64, 4
        $region20: #{tpu_custom_call.1} parent=11 // pred_fallthru
          _
        // Predicated region
        $region21: #{tpu_custom_call.1} parent=11 // pred_check
          %p250 = pneg %p180
        $region22: #{tpu_custom_call.1} parent=11 // pred_check_branch
          %252 = sbr.rel (%p250) target = $region24
        $region23: #{tpu_custom_call.1} parent=11 // pred_region
          %s254 = ssub.s32 16, 16
          %255 = vsyncadd [#allocation11], %s254
          %s257 = sshll.u32 [#allocation10], 4
          %s258 = int_to_ptr.vmem [resolvable:$true] %s257
          %260 = dma.hbm_to_vmem [thread:$0]  %s5, 16, %s258, [#allocation11]
        $region24: #{tpu_custom_call.1} parent=11 // pred_fallthru
          _
      $region12: #{tpu_custom_call.1} parent=5 // pred_fallthru
        _
      %p261 = scmp.lt.s32.totalorder %s20, 4
      // Predicated region
      $region25: #{tpu_custom_call.1} parent=5 // pred_check
        %p262 = pneg %p261
      $region26: #{tpu_custom_call.1} parent=5 // pred_check_branch
        %264 = sbr.rel (%p262) target = $region28
      $region27: #{tpu_custom_call.1} parent=5 // pred_region
        // Predicated region
        $region29: #{tpu_custom_call.1} parent=27 // pred_check
          %p265 = pneg %p54
        $region30: #{tpu_custom_call.1} parent=27 // pred_check_branch
          %267 = sbr.rel (%p265) target = $region32
        $region31: #{tpu_custom_call.1} parent=27 // pred_region
          %s268 = sand.u32 %s20, 1
          %s269 = scalar_lea.sflag [#allocation4], %s268
          %s270 = sand.u32 %s44, 1
          %s271 = smul.addr %s270, 1024
          %s272 = scalar_lea.vmem [#allocation3], %s271
          %s273 = smul.u32 32, %s27
          %s274 = smul.u32 8, %s28
          %s276 = ssub.s32 16384, 16384
          %277 = vsyncadd %s269, %s276
          %s278 = smul.addr %s273, 8
          %s279 = sadd.s32 %s274, %s278
          %s280 = smul.addr %s279, 64
          %s281 = scalar_lea.hbm %s0, %s280
          %s282 = sshll.u32 %s272, 4
          %s283 = int_to_ptr.vmem [resolvable:$true] %s282
          %288 = dma.hbm_to_vmem [thread:$0]  %s281, 16384, %s283, %s269, 512, 512, 32
        $region32: #{tpu_custom_call.1} parent=27 // pred_fallthru
          _
        // Predicated region
        $region33: #{tpu_custom_call.1} parent=27 // pred_check
          %p289 = pneg %p106
        $region34: #{tpu_custom_call.1} parent=27 // pred_check_branch
          %291 = sbr.rel (%p289) target = $region36
        $region35: #{tpu_custom_call.1} parent=27 // pred_region
          %s292 = smul.u32 32, %s27
          %p293 = scmp.lt.s32.totalorder %s292, 127
          %s294 = scalar_select %p293, %s292, 127
          %s295 = smul.addr %s294, 8
          %s296 = scalar_lea.vmem %s2, %s295
          %s297 = smul.u32 32, %s27
        $region36: #{tpu_custom_call.1} parent=27 // pred_fallthru
          _
        // Predicated region
        $region37: #{tpu_custom_call.1} parent=27 // pred_check
          %p298 = pneg %p132
        $region38: #{tpu_custom_call.1} parent=27 // pred_check_branch
          %300 = sbr.rel (%p298) target = $region40
        $region39: #{tpu_custom_call.1} parent=27 // pred_region
          %s301 = sand.u32 %s20, 1
          %s302 = scalar_lea.sflag [#allocation4], %s301
          %s303 = sand.u32 %s122, 1
          %s304 = smul.addr %s303, 128
          %s305 = scalar_lea.vmem [#allocation8], %s304
          %s306 = smul.u32 32, %s27
          %s308 = ssub.s32 2048, 2048
          %309 = vsyncadd %s302, %s308
          %s310 = smul.addr %s306, 64
          %s311 = scalar_lea.hbm %s3, %s310
          %s312 = sshll.u32 %s305, 4
          %s313 = int_to_ptr.vmem [resolvable:$true] %s312
          %318 = dma.hbm_to_vmem [thread:$0]  %s311, 2048, %s313, %s302, 64, 64, 4
        $region40: #{tpu_custom_call.1} parent=27 // pred_fallthru
          _
      $region28: #{tpu_custom_call.1} parent=5 // pred_fallthru
        _
      %p319 = scmp.le.s32.totalorder 1, %s20
      %p320 = scmp.lt.s32.totalorder %s20, 5
      %p321 = pnand %p319, %p320
      %p322 = pneg %p321
      // Predicated region
      $region41: #{tpu_custom_call.1} parent=5 // pred_check
        _
      $region42: #{tpu_custom_call.1} parent=5 // pred_check_branch
        %324 = sbr.rel (%p321) target = $region44
      $region43: #{tpu_custom_call.1} parent=5 // pred_region
        %s325 = ssub.s32 %s20, 1
        %s326 = sand.u32 %s25, 1
        %s327 = scalar_lea.sflag [#allocation4], %s326
        %s328 = sand.u32 %s47, 1
        %s329 = smul.addr %s328, 1024
        %s330 = scalar_lea.vmem [#allocation3], %s329
        // Predicated region
        $region45: #{tpu_custom_call.1} parent=43 // pred_check
          %p331 = pneg %p60
        $region46: #{tpu_custom_call.1} parent=43 // pred_check_branch
          %333 = sbr.rel (%p331) target = $region48
        $region47: #{tpu_custom_call.1} parent=43 // pred_region
          %334 = dma.done %s327, 16384
        $region48: #{tpu_custom_call.1} parent=43 // pred_fallthru
          _
        // Predicated region
        $region49: #{tpu_custom_call.1} parent=43 // pred_check
          %p335 = pneg %p86
        $region50: #{tpu_custom_call.1} parent=43 // pred_check_branch
          %337 = sbr.rel (%p335) target = $region52
        $region51: #{tpu_custom_call.1} parent=43 // pred_region
          %338 = dma.done [#allocation7], 8192
        $region52: #{tpu_custom_call.1} parent=43 // pred_fallthru
          _
        %s339 = sand.u32 %s25, 1
        %s340 = scalar_lea.sflag [#allocation4], %s339
        %s341 = sand.u32 %s125, 1
        %s342 = smul.addr %s341, 128
        %s343 = scalar_lea.vmem [#allocation8], %s342
        // Predicated region
        $region53: #{tpu_custom_call.1} parent=43 // pred_check
          %p344 = pneg %p138
        $region54: #{tpu_custom_call.1} parent=43 // pred_check_branch
          %346 = sbr.rel (%p344) target = $region56
        $region55: #{tpu_custom_call.1} parent=43 // pred_region
          %347 = dma.done %s340, 2048
        $region56: #{tpu_custom_call.1} parent=43 // pred_fallthru
          _
        // Predicated region
        $region57: #{tpu_custom_call.1} parent=43 // pred_check
          %p348 = pneg %p159
        $region58: #{tpu_custom_call.1} parent=43 // pred_check_branch
          %350 = sbr.rel (%p348) target = $region60
        $region59: #{tpu_custom_call.1} parent=43 // pred_region
          %351 = dma.done [#allocation7], 2048
        $region60: #{tpu_custom_call.1} parent=43 // pred_fallthru
          _
        // Predicated region
        $region61: #{tpu_custom_call.1} parent=43 // pred_check
          %p352 = pneg %p180
        $region62: #{tpu_custom_call.1} parent=43 // pred_check_branch
          %354 = sbr.rel (%p352) target = $region64
        $region63: #{tpu_custom_call.1} parent=43 // pred_region
          %355 = dma.done [#allocation11], 16
        $region64: #{tpu_custom_call.1} parent=43 // pred_fallthru
          _
        %s356 = sand.u32 %s25, 1
        %s357 = scalar_lea.sflag [#allocation4], %s356
        %s358 = sand.u32 %s47, 1
        %s359 = smul.addr %s358, 1024
        %s360 = scalar_lea.vmem [#allocation3], %s359
        %p361 = pneg %p60
        %p362 = pneg %p57
        %p363 = pneg %p86
        %p364 = pneg %p83
        %s365 = smul.u32 32, %s29
        %p366 = scmp.lt.s32.totalorder %s365, 127
        %s367 = scalar_select %p366, %s365, 127
        %s368 = smul.addr %s367, 8
        %s369 = scalar_lea.vmem %s2, %s368
        %p370 = pneg %p112
        %p371 = pneg %p109
        %s372 = sand.u32 %s25, 1
        %s373 = scalar_lea.sflag [#allocation4], %s372
        %s374 = sand.u32 %s125, 1
        %s375 = smul.addr %s374, 128
        %s376 = scalar_lea.vmem [#allocation8], %s375
        %p377 = pneg %p138
        %p378 = pneg %p135
        %p379 = pneg %p159
        %p380 = pneg %p156
        %p381 = pneg %p180
        %p382 = pneg %p177
        %p383 = pneg %p206
        %p384 = pneg %p203
        %s385 = sand.u32 %s193, 1
        %s386 = scalar_lea.sflag [#allocation5], %s385
        %s387 = sand.u32 %s193, 1
        %s388 = smul.addr %s387, 128
        %s389 = scalar_lea.vmem [#allocation12], %s388
        %s390 = smul.u32 32, %s29
        %s391 = smul.u32 8, %s30
        %s392 = smul.u32 128, %s30
        %s393 = smul.u32 32, %s29
        %p394 = scmp.lt.s32.totalorder %s393, 127
        %s395 = scalar_select %p394, %s393, 127
        %s396 = smul.addr %s395, 8
        %s397 = scalar_lea.vmem %s2, %s396
        %s398 = smul.u32 32, %s29
        %s399 = smul.u32 32, %s29
        %s400 = smul.u32 32, %s29
        %p402 = scmp.eq.s32.totalorder %s30, 0
        // Predicated region
        $region65: #{tpu_custom_call.1} parent=43 // pred_check
          %p403 = pneg %p402
        $region66: #{tpu_custom_call.1} parent=43 // pred_check_branch
          %405 = sbr.rel (%p403) target = $region68
        $region67: #{tpu_custom_call.1} parent=43 // pred_region
          %406 = vst [vmem:[#allocation2] sm:$0xff] 0.0
          %407 = vst [vmem:[#allocation2 + $0x8] sm:$0xff] 0.0
          %408 = vst [vmem:[#allocation2 + $0x10] sm:$0xff] 0.0
          %409 = vst [vmem:[#allocation2 + $0x18] sm:$0xff] 0.0
          %410 = vst [vmem:[#allocation2 + $0x20] sm:$0xff] 0.0
          %411 = vst [vmem:[#allocation2 + $0x28] sm:$0xff] 0.0
          %412 = vst [vmem:[#allocation2 + $0x30] sm:$0xff] 0.0
          %413 = vst [vmem:[#allocation2 + $0x38] sm:$0xff] 0.0
          %414 = vst [vmem:[#allocation2 + $0x40] sm:$0xff] 0.0
          %415 = vst [vmem:[#allocation2 + $0x48] sm:$0xff] 0.0
          %416 = vst [vmem:[#allocation2 + $0x50] sm:$0xff] 0.0
          %417 = vst [vmem:[#allocation2 + $0x58] sm:$0xff] 0.0
          %418 = vst [vmem:[#allocation2 + $0x60] sm:$0xff] 0.0
          %419 = vst [vmem:[#allocation2 + $0x68] sm:$0xff] 0.0
          %420 = vst [vmem:[#allocation2 + $0x70] sm:$0xff] 0.0
          %421 = vst [vmem:[#allocation2 + $0x78] sm:$0xff] 0.0
          %422 = vst [vmem:[#allocation2 + $0x80] sm:$0xff] 0.0
          %423 = vst [vmem:[#allocation2 + $0x88] sm:$0xff] 0.0
          %424 = vst [vmem:[#allocation2 + $0x90] sm:$0xff] 0.0
          %425 = vst [vmem:[#allocation2 + $0x98] sm:$0xff] 0.0
          %426 = vst [vmem:[#allocation2 + $0xa0] sm:$0xff] 0.0
          %427 = vst [vmem:[#allocation2 + $0xa8] sm:$0xff] 0.0
          %428 = vst [vmem:[#allocation2 + $0xb0] sm:$0xff] 0.0
          %429 = vst [vmem:[#allocation2 + $0xb8] sm:$0xff] 0.0
          %430 = vst [vmem:[#allocation2 + $0xc0] sm:$0xff] 0.0
          %431 = vst [vmem:[#allocation2 + $0xc8] sm:$0xff] 0.0
          %432 = vst [vmem:[#allocation2 + $0xd0] sm:$0xff] 0.0
          %433 = vst [vmem:[#allocation2 + $0xd8] sm:$0xff] 0.0
          %434 = vst [vmem:[#allocation2 + $0xe0] sm:$0xff] 0.0
          %435 = vst [vmem:[#allocation2 + $0xe8] sm:$0xff] 0.0
          %436 = vst [vmem:[#allocation2 + $0xf0] sm:$0xff] 0.0
          %437 = vst [vmem:[#allocation2 + $0xf8] sm:$0xff] 0.0
        $region68: #{tpu_custom_call.1} parent=43 // pred_fallthru
          _
        %v438 = vld [vmem:[#allocation2] sm:$0xff]
        %v439 = vld [vmem:[#allocation2 + $0x8] sm:$0xff]
        %v440 = vld [vmem:[#allocation2 + $0x10] sm:$0xff]
        %v441 = vld [vmem:[#allocation2 + $0x18] sm:$0xff]
        %v442 = vld [vmem:[#allocation2 + $0x20] sm:$0xff]
        %v443 = vld [vmem:[#allocation2 + $0x28] sm:$0xff]
        %v444 = vld [vmem:[#allocation2 + $0x30] sm:$0xff]
        %v445 = vld [vmem:[#allocation2 + $0x38] sm:$0xff]
        %v446 = vld [vmem:[#allocation2 + $0x40] sm:$0xff]
        %v447 = vld [vmem:[#allocation2 + $0x48] sm:$0xff]
        %v448 = vld [vmem:[#allocation2 + $0x50] sm:$0xff]
        %v449 = vld [vmem:[#allocation2 + $0x58] sm:$0xff]
        %v450 = vld [vmem:[#allocation2 + $0x60] sm:$0xff]
        %v451 = vld [vmem:[#allocation2 + $0x68] sm:$0xff]
        %v452 = vld [vmem:[#allocation2 + $0x70] sm:$0xff]
        %v453 = vld [vmem:[#allocation2 + $0x78] sm:$0xff]
        %v454 = vld [vmem:[#allocation2 + $0x80] sm:$0xff]
        %v455 = vld [vmem:[#allocation2 + $0x88] sm:$0xff]
        %v456 = vld [vmem:[#allocation2 + $0x90] sm:$0xff]
        %v457 = vld [vmem:[#allocation2 + $0x98] sm:$0xff]
        %v458 = vld [vmem:[#allocation2 + $0xa0] sm:$0xff]
        %v459 = vld [vmem:[#allocation2 + $0xa8] sm:$0xff]
        %v460 = vld [vmem:[#allocation2 + $0xb0] sm:$0xff]
        %v461 = vld [vmem:[#allocation2 + $0xb8] sm:$0xff]
        %v462 = vld [vmem:[#allocation2 + $0xc0] sm:$0xff]
        %v463 = vld [vmem:[#allocation2 + $0xc8] sm:$0xff]
        %v464 = vld [vmem:[#allocation2 + $0xd0] sm:$0xff]
        %v465 = vld [vmem:[#allocation2 + $0xd8] sm:$0xff]
        %v466 = vld [vmem:[#allocation2 + $0xe0] sm:$0xff]
        %v467 = vld [vmem:[#allocation2 + $0xe8] sm:$0xff]
        %v468 = vld [vmem:[#allocation2 + $0xf0] sm:$0xff]
        %v469 = vld [vmem:[#allocation2 + $0xf8] sm:$0xff]
        %v470 = vld [vmem:[%s330] sm:$0xff]
        %v471 = vld [vmem:[%s330 + $0x8] sm:$0xff]
        %v472 = vld [vmem:[%s330 + $0x10] sm:$0xff]
        %v473 = vld [vmem:[%s330 + $0x18] sm:$0xff]
        %v474 = vld [vmem:[%s330 + $0x20] sm:$0xff]
        %v475 = vld [vmem:[%s330 + $0x28] sm:$0xff]
        %v476 = vld [vmem:[%s330 + $0x30] sm:$0xff]
        %v477 = vld [vmem:[%s330 + $0x38] sm:$0xff]
        %v478 = vld [vmem:[%s330 + $0x40] sm:$0xff]
        %v479 = vld [vmem:[%s330 + $0x48] sm:$0xff]
        %v480 = vld [vmem:[%s330 + $0x50] sm:$0xff]
        %v481 = vld [vmem:[%s330 + $0x58] sm:$0xff]
        %v482 = vld [vmem:[%s330 + $0x60] sm:$0xff]
        %v483 = vld [vmem:[%s330 + $0x68] sm:$0xff]
        %v484 = vld [vmem:[%s330 + $0x70] sm:$0xff]
        %v485 = vld [vmem:[%s330 + $0x78] sm:$0xff]
        %v486 = vld [vmem:[%s330 + $0x80] sm:$0xff]
        %v487 = vld [vmem:[%s330 + $0x88] sm:$0xff]
        %v488 = vld [vmem:[%s330 + $0x90] sm:$0xff]
        %v489 = vld [vmem:[%s330 + $0x98] sm:$0xff]
        %v490 = vld [vmem:[%s330 + $0xa0] sm:$0xff]
        %v491 = vld [vmem:[%s330 + $0xa8] sm:$0xff]
        %v492 = vld [vmem:[%s330 + $0xb0] sm:$0xff]
        %v493 = vld [vmem:[%s330 + $0xb8] sm:$0xff]
        %v494 = vld [vmem:[%s330 + $0xc0] sm:$0xff]
        %v495 = vld [vmem:[%s330 + $0xc8] sm:$0xff]
        %v496 = vld [vmem:[%s330 + $0xd0] sm:$0xff]
        %v497 = vld [vmem:[%s330 + $0xd8] sm:$0xff]
        %v498 = vld [vmem:[%s330 + $0xe0] sm:$0xff]
        %v499 = vld [vmem:[%s330 + $0xe8] sm:$0xff]
        %v500 = vld [vmem:[%s330 + $0xf0] sm:$0xff]
        %v501 = vld [vmem:[%s330 + $0xf8] sm:$0xff]
        %v502 = vld [vmem:[%s330 + $0x100] sm:$0xff]
        %v503 = vld [vmem:[%s330 + $0x108] sm:$0xff]
        %v504 = vld [vmem:[%s330 + $0x110] sm:$0xff]
        %v505 = vld [vmem:[%s330 + $0x118] sm:$0xff]
        %v506 = vld [vmem:[%s330 + $0x120] sm:$0xff]
        %v507 = vld [vmem:[%s330 + $0x128] sm:$0xff]
        %v508 = vld [vmem:[%s330 + $0x130] sm:$0xff]
        %v509 = vld [vmem:[%s330 + $0x138] sm:$0xff]
        %v510 = vld [vmem:[%s330 + $0x140] sm:$0xff]
        %v511 = vld [vmem:[%s330 + $0x148] sm:$0xff]
        %v512 = vld [vmem:[%s330 + $0x150] sm:$0xff]
        %v513 = vld [vmem:[%s330 + $0x158] sm:$0xff]
        %v514 = vld [vmem:[%s330 + $0x160] sm:$0xff]
        %v515 = vld [vmem:[%s330 + $0x168] sm:$0xff]
        %v516 = vld [vmem:[%s330 + $0x170] sm:$0xff]
        %v517 = vld [vmem:[%s330 + $0x178] sm:$0xff]
        %v518 = vld [vmem:[%s330 + $0x180] sm:$0xff]
        %v519 = vld [vmem:[%s330 + $0x188] sm:$0xff]
        %v520 = vld [vmem:[%s330 + $0x190] sm:$0xff]
        %v521 = vld [vmem:[%s330 + $0x198] sm:$0xff]
        %v522 = vld [vmem:[%s330 + $0x1a0] sm:$0xff]
        %v523 = vld [vmem:[%s330 + $0x1a8] sm:$0xff]
        %v524 = vld [vmem:[%s330 + $0x1b0] sm:$0xff]
        %v525 = vld [vmem:[%s330 + $0x1b8] sm:$0xff]
        %v526 = vld [vmem:[%s330 + $0x1c0] sm:$0xff]
        %v527 = vld [vmem:[%s330 + $0x1c8] sm:$0xff]
        %v528 = vld [vmem:[%s330 + $0x1d0] sm:$0xff]
        %v529 = vld [vmem:[%s330 + $0x1d8] sm:$0xff]
        %v530 = vld [vmem:[%s330 + $0x1e0] sm:$0xff]
        %v531 = vld [vmem:[%s330 + $0x1e8] sm:$0xff]
        %v532 = vld [vmem:[%s330 + $0x1f0] sm:$0xff]
        %v533 = vld [vmem:[%s330 + $0x1f8] sm:$0xff]
        %v534 = vld [vmem:[%s330 + $0x200] sm:$0xff]
        %v535 = vld [vmem:[%s330 + $0x208] sm:$0xff]
        %v536 = vld [vmem:[%s330 + $0x210] sm:$0xff]
        %v537 = vld [vmem:[%s330 + $0x218] sm:$0xff]
        %v538 = vld [vmem:[%s330 + $0x220] sm:$0xff]
        %v539 = vld [vmem:[%s330 + $0x228] sm:$0xff]
        %v540 = vld [vmem:[%s330 + $0x230] sm:$0xff]
        %v541 = vld [vmem:[%s330 + $0x238] sm:$0xff]
        %v542 = vld [vmem:[%s330 + $0x240] sm:$0xff]
        %v543 = vld [vmem:[%s330 + $0x248] sm:$0xff]
        %v544 = vld [vmem:[%s330 + $0x250] sm:$0xff]
        %v545 = vld [vmem:[%s330 + $0x258] sm:$0xff]
        %v546 = vld [vmem:[%s330 + $0x260] sm:$0xff]
        %v547 = vld [vmem:[%s330 + $0x268] sm:$0xff]
        %v548 = vld [vmem:[%s330 + $0x270] sm:$0xff]
        %v549 = vld [vmem:[%s330 + $0x278] sm:$0xff]
        %v550 = vld [vmem:[%s330 + $0x280] sm:$0xff]
        %v551 = vld [vmem:[%s330 + $0x288] sm:$0xff]
        %v552 = vld [vmem:[%s330 + $0x290] sm:$0xff]
        %v553 = vld [vmem:[%s330 + $0x298] sm:$0xff]
        %v554 = vld [vmem:[%s330 + $0x2a0] sm:$0xff]
        %v555 = vld [vmem:[%s330 + $0x2a8] sm:$0xff]
        %v556 = vld [vmem:[%s330 + $0x2b0] sm:$0xff]
        %v557 = vld [vmem:[%s330 + $0x2b8] sm:$0xff]
        %v558 = vld [vmem:[%s330 + $0x2c0] sm:$0xff]
        %v559 = vld [vmem:[%s330 + $0x2c8] sm:$0xff]
        %v560 = vld [vmem:[%s330 + $0x2d0] sm:$0xff]
        %v561 = vld [vmem:[%s330 + $0x2d8] sm:$0xff]
        %v562 = vld [vmem:[%s330 + $0x2e0] sm:$0xff]
        %v563 = vld [vmem:[%s330 + $0x2e8] sm:$0xff]
        %v564 = vld [vmem:[%s330 + $0x2f0] sm:$0xff]
        %v565 = vld [vmem:[%s330 + $0x2f8] sm:$0xff]
        %v566 = vld [vmem:[%s330 + $0x300] sm:$0xff]
        %v567 = vld [vmem:[%s330 + $0x308] sm:$0xff]
        %v568 = vld [vmem:[%s330 + $0x310] sm:$0xff]
        %v569 = vld [vmem:[%s330 + $0x318] sm:$0xff]
        %v570 = vld [vmem:[%s330 + $0x320] sm:$0xff]
        %v571 = vld [vmem:[%s330 + $0x328] sm:$0xff]
        %v572 = vld [vmem:[%s330 + $0x330] sm:$0xff]
        %v573 = vld [vmem:[%s330 + $0x338] sm:$0xff]
        %v574 = vld [vmem:[%s330 + $0x340] sm:$0xff]
        %v575 = vld [vmem:[%s330 + $0x348] sm:$0xff]
        %v576 = vld [vmem:[%s330 + $0x350] sm:$0xff]
        %v577 = vld [vmem:[%s330 + $0x358] sm:$0xff]
        %v578 = vld [vmem:[%s330 + $0x360] sm:$0xff]
        %v579 = vld [vmem:[%s330 + $0x368] sm:$0xff]
        %v580 = vld [vmem:[%s330 + $0x370] sm:$0xff]
        %v581 = vld [vmem:[%s330 + $0x378] sm:$0xff]
        %v582 = vld [vmem:[%s330 + $0x380] sm:$0xff]
        %v583 = vld [vmem:[%s330 + $0x388] sm:$0xff]
        %v584 = vld [vmem:[%s330 + $0x390] sm:$0xff]
        %v585 = vld [vmem:[%s330 + $0x398] sm:$0xff]
        %v586 = vld [vmem:[%s330 + $0x3a0] sm:$0xff]
        %v587 = vld [vmem:[%s330 + $0x3a8] sm:$0xff]
        %v588 = vld [vmem:[%s330 + $0x3b0] sm:$0xff]
        %v589 = vld [vmem:[%s330 + $0x3b8] sm:$0xff]
        %v590 = vld [vmem:[%s330 + $0x3c0] sm:$0xff]
        %v591 = vld [vmem:[%s330 + $0x3c8] sm:$0xff]
        %v592 = vld [vmem:[%s330 + $0x3d0] sm:$0xff]
        %v593 = vld [vmem:[%s330 + $0x3d8] sm:$0xff]
        %v594 = vld [vmem:[%s330 + $0x3e0] sm:$0xff]
        %v595 = vld [vmem:[%s330 + $0x3e8] sm:$0xff]
        %v596 = vld [vmem:[%s330 + $0x3f0] sm:$0xff]
        %v597 = vld [vmem:[%s330 + $0x3f8] sm:$0xff]
        %v598 = vld [vmem:[#allocation6] sm:$0xf]
        %v599 = vld [vmem:[#allocation6 + $0x4] sm:$0xf]
        %v600 = vld [vmem:[#allocation6 + $0x8] sm:$0xf]
        %v601 = vld [vmem:[#allocation6 + $0xc] sm:$0xf]
        %v602 = vld [vmem:[#allocation6 + $0x10] sm:$0xf]
        %v603 = vld [vmem:[#allocation6 + $0x14] sm:$0xf]
        %v604 = vld [vmem:[#allocation6 + $0x18] sm:$0xf]
        %v605 = vld [vmem:[#allocation6 + $0x1c] sm:$0xf]
        %v606 = vld [vmem:[#allocation6 + $0x20] sm:$0xf]
        %v607 = vld [vmem:[#allocation6 + $0x24] sm:$0xf]
        %v608 = vld [vmem:[#allocation6 + $0x28] sm:$0xf]
        %v609 = vld [vmem:[#allocation6 + $0x2c] sm:$0xf]
        %v610 = vld [vmem:[#allocation6 + $0x30] sm:$0xf]
        %v611 = vld [vmem:[#allocation6 + $0x34] sm:$0xf]
        %v612 = vld [vmem:[#allocation6 + $0x38] sm:$0xf]
        %v613 = vld [vmem:[#allocation6 + $0x3c] sm:$0xf]
        %v614 = vld [vmem:[#allocation6 + $0x40] sm:$0xf]
        %v615 = vld [vmem:[#allocation6 + $0x44] sm:$0xf]
        %v616 = vld [vmem:[#allocation6 + $0x48] sm:$0xf]
        %v617 = vld [vmem:[#allocation6 + $0x4c] sm:$0xf]
        %v618 = vld [vmem:[#allocation6 + $0x50] sm:$0xf]
        %v619 = vld [vmem:[#allocation6 + $0x54] sm:$0xf]
        %v620 = vld [vmem:[#allocation6 + $0x58] sm:$0xf]
        %v621 = vld [vmem:[#allocation6 + $0x5c] sm:$0xf]
        %v622 = vld [vmem:[#allocation6 + $0x60] sm:$0xf]
        %v623 = vld [vmem:[#allocation6 + $0x64] sm:$0xf]
        %v624 = vld [vmem:[#allocation6 + $0x68] sm:$0xf]
        %v625 = vld [vmem:[#allocation6 + $0x6c] sm:$0xf]
        %v626 = vld [vmem:[#allocation6 + $0x70] sm:$0xf]
        %v627 = vld [vmem:[#allocation6 + $0x74] sm:$0xf]
        %v628 = vld [vmem:[#allocation6 + $0x78] sm:$0xf]
        %v629 = vld [vmem:[#allocation6 + $0x7c] sm:$0xf]
        %v630 = vld [vmem:[#allocation6 + $0x80] sm:$0xf]
        %v631 = vld [vmem:[#allocation6 + $0x84] sm:$0xf]
        %v632 = vld [vmem:[#allocation6 + $0x88] sm:$0xf]
        %v633 = vld [vmem:[#allocation6 + $0x8c] sm:$0xf]
        %v634 = vld [vmem:[#allocation6 + $0x90] sm:$0xf]
        %v635 = vld [vmem:[#allocation6 + $0x94] sm:$0xf]
        %v636 = vld [vmem:[#allocation6 + $0x98] sm:$0xf]
        %v637 = vld [vmem:[#allocation6 + $0x9c] sm:$0xf]
        %v638 = vld [vmem:[#allocation6 + $0xa0] sm:$0xf]
        %v639 = vld [vmem:[#allocation6 + $0xa4] sm:$0xf]
        %v640 = vld [vmem:[#allocation6 + $0xa8] sm:$0xf]
        %v641 = vld [vmem:[#allocation6 + $0xac] sm:$0xf]
        %v642 = vld [vmem:[#allocation6 + $0xb0] sm:$0xf]
        %v643 = vld [vmem:[#allocation6 + $0xb4] sm:$0xf]
        %v644 = vld [vmem:[#allocation6 + $0xb8] sm:$0xf]
        %v645 = vld [vmem:[#allocation6 + $0xbc] sm:$0xf]
        %v646 = vld [vmem:[#allocation6 + $0xc0] sm:$0xf]
        %v647 = vld [vmem:[#allocation6 + $0xc4] sm:$0xf]
        %v648 = vld [vmem:[#allocation6 + $0xc8] sm:$0xf]
        %v649 = vld [vmem:[#allocation6 + $0xcc] sm:$0xf]
        %v650 = vld [vmem:[#allocation6 + $0xd0] sm:$0xf]
        %v651 = vld [vmem:[#allocation6 + $0xd4] sm:$0xf]
        %v652 = vld [vmem:[#allocation6 + $0xd8] sm:$0xf]
        %v653 = vld [vmem:[#allocation6 + $0xdc] sm:$0xf]
        %v654 = vld [vmem:[#allocation6 + $0xe0] sm:$0xf]
        %v655 = vld [vmem:[#allocation6 + $0xe4] sm:$0xf]
        %v656 = vld [vmem:[#allocation6 + $0xe8] sm:$0xf]
        %v657 = vld [vmem:[#allocation6 + $0xec] sm:$0xf]
        %v658 = vld [vmem:[#allocation6 + $0xf0] sm:$0xf]
        %v659 = vld [vmem:[#allocation6 + $0xf4] sm:$0xf]
        %v660 = vld [vmem:[#allocation6 + $0xf8] sm:$0xf]
        %v661 = vld [vmem:[#allocation6 + $0xfc] sm:$0xf]
        %v662 = vld [vmem:[#allocation6 + $0x100] sm:$0xf]
        %v663 = vld [vmem:[#allocation6 + $0x104] sm:$0xf]
        %v664 = vld [vmem:[#allocation6 + $0x108] sm:$0xf]
        %v665 = vld [vmem:[#allocation6 + $0x10c] sm:$0xf]
        %v666 = vld [vmem:[#allocation6 + $0x110] sm:$0xf]
        %v667 = vld [vmem:[#allocation6 + $0x114] sm:$0xf]
        %v668 = vld [vmem:[#allocation6 + $0x118] sm:$0xf]
        %v669 = vld [vmem:[#allocation6 + $0x11c] sm:$0xf]
        %v670 = vld [vmem:[#allocation6 + $0x120] sm:$0xf]
        %v671 = vld [vmem:[#allocation6 + $0x124] sm:$0xf]
        %v672 = vld [vmem:[#allocation6 + $0x128] sm:$0xf]
        %v673 = vld [vmem:[#allocation6 + $0x12c] sm:$0xf]
        %v674 = vld [vmem:[#allocation6 + $0x130] sm:$0xf]
        %v675 = vld [vmem:[#allocation6 + $0x134] sm:$0xf]
        %v676 = vld [vmem:[#allocation6 + $0x138] sm:$0xf]
        %v677 = vld [vmem:[#allocation6 + $0x13c] sm:$0xf]
        %v678 = vld [vmem:[#allocation6 + $0x140] sm:$0xf]
        %v679 = vld [vmem:[#allocation6 + $0x144] sm:$0xf]
        %v680 = vld [vmem:[#allocation6 + $0x148] sm:$0xf]
        %v681 = vld [vmem:[#allocation6 + $0x14c] sm:$0xf]
        %v682 = vld [vmem:[#allocation6 + $0x150] sm:$0xf]
        %v683 = vld [vmem:[#allocation6 + $0x154] sm:$0xf]
        %v684 = vld [vmem:[#allocation6 + $0x158] sm:$0xf]
        %v685 = vld [vmem:[#allocation6 + $0x15c] sm:$0xf]
        %v686 = vld [vmem:[#allocation6 + $0x160] sm:$0xf]
        %v687 = vld [vmem:[#allocation6 + $0x164] sm:$0xf]
        %v688 = vld [vmem:[#allocation6 + $0x168] sm:$0xf]
        %v689 = vld [vmem:[#allocation6 + $0x16c] sm:$0xf]
        %v690 = vld [vmem:[#allocation6 + $0x170] sm:$0xf]
        %v691 = vld [vmem:[#allocation6 + $0x174] sm:$0xf]
        %v692 = vld [vmem:[#allocation6 + $0x178] sm:$0xf]
        %v693 = vld [vmem:[#allocation6 + $0x17c] sm:$0xf]
        %v694 = vld [vmem:[#allocation6 + $0x180] sm:$0xf]
        %v695 = vld [vmem:[#allocation6 + $0x184] sm:$0xf]
        %v696 = vld [vmem:[#allocation6 + $0x188] sm:$0xf]
        %v697 = vld [vmem:[#allocation6 + $0x18c] sm:$0xf]
        %v698 = vld [vmem:[#allocation6 + $0x190] sm:$0xf]
        %v699 = vld [vmem:[#allocation6 + $0x194] sm:$0xf]
        %v700 = vld [vmem:[#allocation6 + $0x198] sm:$0xf]
        %v701 = vld [vmem:[#allocation6 + $0x19c] sm:$0xf]
        %v702 = vld [vmem:[#allocation6 + $0x1a0] sm:$0xf]
        %v703 = vld [vmem:[#allocation6 + $0x1a4] sm:$0xf]
        %v704 = vld [vmem:[#allocation6 + $0x1a8] sm:$0xf]
        %v705 = vld [vmem:[#allocation6 + $0x1ac] sm:$0xf]
        %v706 = vld [vmem:[#allocation6 + $0x1b0] sm:$0xf]
        %v707 = vld [vmem:[#allocation6 + $0x1b4] sm:$0xf]
        %v708 = vld [vmem:[#allocation6 + $0x1b8] sm:$0xf]
        %v709 = vld [vmem:[#allocation6 + $0x1bc] sm:$0xf]
        %v710 = vld [vmem:[#allocation6 + $0x1c0] sm:$0xf]
        %v711 = vld [vmem:[#allocation6 + $0x1c4] sm:$0xf]
        %v712 = vld [vmem:[#allocation6 + $0x1c8] sm:$0xf]
        %v713 = vld [vmem:[#allocation6 + $0x1cc] sm:$0xf]
        %v714 = vld [vmem:[#allocation6 + $0x1d0] sm:$0xf]
        %v715 = vld [vmem:[#allocation6 + $0x1d4] sm:$0xf]
        %v716 = vld [vmem:[#allocation6 + $0x1d8] sm:$0xf]
        %v717 = vld [vmem:[#allocation6 + $0x1dc] sm:$0xf]
        %v718 = vld [vmem:[#allocation6 + $0x1e0] sm:$0xf]
        %v719 = vld [vmem:[#allocation6 + $0x1e4] sm:$0xf]
        %v720 = vld [vmem:[#allocation6 + $0x1e8] sm:$0xf]
        %v721 = vld [vmem:[#allocation6 + $0x1ec] sm:$0xf]
        %v722 = vld [vmem:[#allocation6 + $0x1f0] sm:$0xf]
        %v723 = vld [vmem:[#allocation6 + $0x1f4] sm:$0xf]
        %v724 = vld [vmem:[#allocation6 + $0x1f8] sm:$0xf]
        %v725 = vld [vmem:[#allocation6 + $0x1fc] sm:$0xf]
        %v854 = vunpack.c.l.b16 %v470
        %v855 = vunpack.c.h.b16 %v470
        %v856 = vunpack.c.l.b16 %v471
        %v857 = vunpack.c.h.b16 %v471
        %v858 = vunpack.c.l.b16 %v472
        %v859 = vunpack.c.h.b16 %v472
        %v860 = vunpack.c.l.b16 %v473
        %v861 = vunpack.c.h.b16 %v473
        %v862 = vunpack.c.l.b16 %v474
        %v863 = vunpack.c.h.b16 %v474
        %v864 = vunpack.c.l.b16 %v475
        %v865 = vunpack.c.h.b16 %v475
        %v866 = vunpack.c.l.b16 %v476
        %v867 = vunpack.c.h.b16 %v476
        %v868 = vunpack.c.l.b16 %v477
        %v869 = vunpack.c.h.b16 %v477
        %v870 = vunpack.c.l.b16 %v478
        %v871 = vunpack.c.h.b16 %v478
        %v872 = vunpack.c.l.b16 %v479
        %v873 = vunpack.c.h.b16 %v479
        %v874 = vunpack.c.l.b16 %v480
        %v875 = vunpack.c.h.b16 %v480
        %v876 = vunpack.c.l.b16 %v481
        %v877 = vunpack.c.h.b16 %v481
        %v878 = vunpack.c.l.b16 %v482
        %v879 = vunpack.c.h.b16 %v482
        %v880 = vunpack.c.l.b16 %v483
        %v881 = vunpack.c.h.b16 %v483
        %v882 = vunpack.c.l.b16 %v484
        %v883 = vunpack.c.h.b16 %v484
        %v884 = vunpack.c.l.b16 %v485
        %v885 = vunpack.c.h.b16 %v485
        %v886 = vunpack.c.l.b16 %v486
        %v887 = vunpack.c.h.b16 %v486
        %v888 = vunpack.c.l.b16 %v487
        %v889 = vunpack.c.h.b16 %v487
        %v890 = vunpack.c.l.b16 %v488
        %v891 = vunpack.c.h.b16 %v488
        %v892 = vunpack.c.l.b16 %v489
        %v893 = vunpack.c.h.b16 %v489
        %v894 = vunpack.c.l.b16 %v490
        %v895 = vunpack.c.h.b16 %v490
        %v896 = vunpack.c.l.b16 %v491
        %v897 = vunpack.c.h.b16 %v491
        %v898 = vunpack.c.l.b16 %v492
        %v899 = vunpack.c.h.b16 %v492
        %v900 = vunpack.c.l.b16 %v493
        %v901 = vunpack.c.h.b16 %v493
        %v902 = vunpack.c.l.b16 %v494
        %v903 = vunpack.c.h.b16 %v494
        %v904 = vunpack.c.l.b16 %v495
        %v905 = vunpack.c.h.b16 %v495
        %v906 = vunpack.c.l.b16 %v496
        %v907 = vunpack.c.h.b16 %v496
        %v908 = vunpack.c.l.b16 %v497
        %v909 = vunpack.c.h.b16 %v497
        %v910 = vunpack.c.l.b16 %v498
        %v911 = vunpack.c.h.b16 %v498
        %v912 = vunpack.c.l.b16 %v499
        %v913 = vunpack.c.h.b16 %v499
        %v914 = vunpack.c.l.b16 %v500
        %v915 = vunpack.c.h.b16 %v500
        %v916 = vunpack.c.l.b16 %v501
        %v917 = vunpack.c.h.b16 %v501
        %v918 = vunpack.c.l.b16 %v502
        %v919 = vunpack.c.h.b16 %v502
        %v920 = vunpack.c.l.b16 %v503
        %v921 = vunpack.c.h.b16 %v503
        %v922 = vunpack.c.l.b16 %v504
        %v923 = vunpack.c.h.b16 %v504
        %v924 = vunpack.c.l.b16 %v505
        %v925 = vunpack.c.h.b16 %v505
        %v926 = vunpack.c.l.b16 %v506
        %v927 = vunpack.c.h.b16 %v506
        %v928 = vunpack.c.l.b16 %v507
        %v929 = vunpack.c.h.b16 %v507
        %v930 = vunpack.c.l.b16 %v508
        %v931 = vunpack.c.h.b16 %v508
        %v932 = vunpack.c.l.b16 %v509
        %v933 = vunpack.c.h.b16 %v509
        %v934 = vunpack.c.l.b16 %v510
        %v935 = vunpack.c.h.b16 %v510
        %v936 = vunpack.c.l.b16 %v511
        %v937 = vunpack.c.h.b16 %v511
        %v938 = vunpack.c.l.b16 %v512
        %v939 = vunpack.c.h.b16 %v512
        %v940 = vunpack.c.l.b16 %v513
        %v941 = vunpack.c.h.b16 %v513
        %v942 = vunpack.c.l.b16 %v514
        %v943 = vunpack.c.h.b16 %v514
        %v944 = vunpack.c.l.b16 %v515
        %v945 = vunpack.c.h.b16 %v515
        %v946 = vunpack.c.l.b16 %v516
        %v947 = vunpack.c.h.b16 %v516
        %v948 = vunpack.c.l.b16 %v517
        %v949 = vunpack.c.h.b16 %v517
        %v950 = vunpack.c.l.b16 %v518
        %v951 = vunpack.c.h.b16 %v518
        %v952 = vunpack.c.l.b16 %v519
        %v953 = vunpack.c.h.b16 %v519
        %v954 = vunpack.c.l.b16 %v520
        %v955 = vunpack.c.h.b16 %v520
        %v956 = vunpack.c.l.b16 %v521
        %v957 = vunpack.c.h.b16 %v521
        %v958 = vunpack.c.l.b16 %v522
        %v959 = vunpack.c.h.b16 %v522
        %v960 = vunpack.c.l.b16 %v523
        %v961 = vunpack.c.h.b16 %v523
        %v962 = vunpack.c.l.b16 %v524
        %v963 = vunpack.c.h.b16 %v524
        %v964 = vunpack.c.l.b16 %v525
        %v965 = vunpack.c.h.b16 %v525
        %v966 = vunpack.c.l.b16 %v526
        %v967 = vunpack.c.h.b16 %v526
        %v968 = vunpack.c.l.b16 %v527
        %v969 = vunpack.c.h.b16 %v527
        %v970 = vunpack.c.l.b16 %v528
        %v971 = vunpack.c.h.b16 %v528
        %v972 = vunpack.c.l.b16 %v529
        %v973 = vunpack.c.h.b16 %v529
        %v974 = vunpack.c.l.b16 %v530
        %v975 = vunpack.c.h.b16 %v530
        %v976 = vunpack.c.l.b16 %v531
        %v977 = vunpack.c.h.b16 %v531
        %v978 = vunpack.c.l.b16 %v532
        %v979 = vunpack.c.h.b16 %v532
        %v980 = vunpack.c.l.b16 %v533
        %v981 = vunpack.c.h.b16 %v533
        %v982 = vunpack.c.l.b16 %v534
        %v983 = vunpack.c.h.b16 %v534
        %v984 = vunpack.c.l.b16 %v535
        %v985 = vunpack.c.h.b16 %v535
        %v986 = vunpack.c.l.b16 %v536
        %v987 = vunpack.c.h.b16 %v536
        %v988 = vunpack.c.l.b16 %v537
        %v989 = vunpack.c.h.b16 %v537
        %v990 = vunpack.c.l.b16 %v538
        %v991 = vunpack.c.h.b16 %v538
        %v992 = vunpack.c.l.b16 %v539
        %v993 = vunpack.c.h.b16 %v539
        %v994 = vunpack.c.l.b16 %v540
        %v995 = vunpack.c.h.b16 %v540
        %v996 = vunpack.c.l.b16 %v541
        %v997 = vunpack.c.h.b16 %v541
        %v998 = vunpack.c.l.b16 %v542
        %v999 = vunpack.c.h.b16 %v542
        %v1000 = vunpack.c.l.b16 %v543
        %v1001 = vunpack.c.h.b16 %v543
        %v1002 = vunpack.c.l.b16 %v544
        %v1003 = vunpack.c.h.b16 %v544
        %v1004 = vunpack.c.l.b16 %v545
        %v1005 = vunpack.c.h.b16 %v545
        %v1006 = vunpack.c.l.b16 %v546
        %v1007 = vunpack.c.h.b16 %v546
        %v1008 = vunpack.c.l.b16 %v547
        %v1009 = vunpack.c.h.b16 %v547
        %v1010 = vunpack.c.l.b16 %v548
        %v1011 = vunpack.c.h.b16 %v548
        %v1012 = vunpack.c.l.b16 %v549
        %v1013 = vunpack.c.h.b16 %v549
        %v1014 = vunpack.c.l.b16 %v550
        %v1015 = vunpack.c.h.b16 %v550
        %v1016 = vunpack.c.l.b16 %v551
        %v1017 = vunpack.c.h.b16 %v551
        %v1018 = vunpack.c.l.b16 %v552
        %v1019 = vunpack.c.h.b16 %v552
        %v1020 = vunpack.c.l.b16 %v553
        %v1021 = vunpack.c.h.b16 %v553
        %v1022 = vunpack.c.l.b16 %v554
        %v1023 = vunpack.c.h.b16 %v554
        %v1024 = vunpack.c.l.b16 %v555
        %v1025 = vunpack.c.h.b16 %v555
        %v1026 = vunpack.c.l.b16 %v556
        %v1027 = vunpack.c.h.b16 %v556
        %v1028 = vunpack.c.l.b16 %v557
        %v1029 = vunpack.c.h.b16 %v557
        %v1030 = vunpack.c.l.b16 %v558
        %v1031 = vunpack.c.h.b16 %v558
        %v1032 = vunpack.c.l.b16 %v559
        %v1033 = vunpack.c.h.b16 %v559
        %v1034 = vunpack.c.l.b16 %v560
        %v1035 = vunpack.c.h.b16 %v560
        %v1036 = vunpack.c.l.b16 %v561
        %v1037 = vunpack.c.h.b16 %v561
        %v1038 = vunpack.c.l.b16 %v562
        %v1039 = vunpack.c.h.b16 %v562
        %v1040 = vunpack.c.l.b16 %v563
        %v1041 = vunpack.c.h.b16 %v563
        %v1042 = vunpack.c.l.b16 %v564
        %v1043 = vunpack.c.h.b16 %v564
        %v1044 = vunpack.c.l.b16 %v565
        %v1045 = vunpack.c.h.b16 %v565
        %v1046 = vunpack.c.l.b16 %v566
        %v1047 = vunpack.c.h.b16 %v566
        %v1048 = vunpack.c.l.b16 %v567
        %v1049 = vunpack.c.h.b16 %v567
        %v1050 = vunpack.c.l.b16 %v568
        %v1051 = vunpack.c.h.b16 %v568
        %v1052 = vunpack.c.l.b16 %v569
        %v1053 = vunpack.c.h.b16 %v569
        %v1054 = vunpack.c.l.b16 %v570
        %v1055 = vunpack.c.h.b16 %v570
        %v1056 = vunpack.c.l.b16 %v571
        %v1057 = vunpack.c.h.b16 %v571
        %v1058 = vunpack.c.l.b16 %v572
        %v1059 = vunpack.c.h.b16 %v572
        %v1060 = vunpack.c.l.b16 %v573
        %v1061 = vunpack.c.h.b16 %v573
        %v1062 = vunpack.c.l.b16 %v574
        %v1063 = vunpack.c.h.b16 %v574
        %v1064 = vunpack.c.l.b16 %v575
        %v1065 = vunpack.c.h.b16 %v575
        %v1066 = vunpack.c.l.b16 %v576
        %v1067 = vunpack.c.h.b16 %v576
        %v1068 = vunpack.c.l.b16 %v577
        %v1069 = vunpack.c.h.b16 %v577
        %v1070 = vunpack.c.l.b16 %v578
        %v1071 = vunpack.c.h.b16 %v578
        %v1072 = vunpack.c.l.b16 %v579
        %v1073 = vunpack.c.h.b16 %v579
        %v1074 = vunpack.c.l.b16 %v580
        %v1075 = vunpack.c.h.b16 %v580
        %v1076 = vunpack.c.l.b16 %v581
        %v1077 = vunpack.c.h.b16 %v581
        %v1078 = vunpack.c.l.b16 %v582
        %v1079 = vunpack.c.h.b16 %v582
        %v1080 = vunpack.c.l.b16 %v583
        %v1081 = vunpack.c.h.b16 %v583
        %v1082 = vunpack.c.l.b16 %v584
        %v1083 = vunpack.c.h.b16 %v584
        %v1084 = vunpack.c.l.b16 %v585
        %v1085 = vunpack.c.h.b16 %v585
        %v1086 = vunpack.c.l.b16 %v586
        %v1087 = vunpack.c.h.b16 %v586
        %v1088 = vunpack.c.l.b16 %v587
        %v1089 = vunpack.c.h.b16 %v587
        %v1090 = vunpack.c.l.b16 %v588
        %v1091 = vunpack.c.h.b16 %v588
        %v1092 = vunpack.c.l.b16 %v589
        %v1093 = vunpack.c.h.b16 %v589
        %v1094 = vunpack.c.l.b16 %v590
        %v1095 = vunpack.c.h.b16 %v590
        %v1096 = vunpack.c.l.b16 %v591
        %v1097 = vunpack.c.h.b16 %v591
        %v1098 = vunpack.c.l.b16 %v592
        %v1099 = vunpack.c.h.b16 %v592
        %v1100 = vunpack.c.l.b16 %v593
        %v1101 = vunpack.c.h.b16 %v593
        %v1102 = vunpack.c.l.b16 %v594
        %v1103 = vunpack.c.h.b16 %v594
        %v1104 = vunpack.c.l.b16 %v595
        %v1105 = vunpack.c.h.b16 %v595
        %v1106 = vunpack.c.l.b16 %v596
        %v1107 = vunpack.c.h.b16 %v596
        %v1108 = vunpack.c.l.b16 %v597
        %v1109 = vunpack.c.h.b16 %v597
        %v1110 = vpack.c.b16 %v862, %v854
        %v1111 = vpack.c.b16 %v863, %v855
        %v1112 = vpack.c.b16 %v864, %v856
        %v1113 = vpack.c.b16 %v865, %v857
        %v1114 = vpack.c.b16 %v866, %v858
        %v1115 = vpack.c.b16 %v867, %v859
        %v1116 = vpack.c.b16 %v868, %v860
        %v1117 = vpack.c.b16 %v869, %v861
        %v1118 = vpack.c.b16 %v878, %v870
        %v1119 = vpack.c.b16 %v879, %v871
        %v1120 = vpack.c.b16 %v880, %v872
        %v1121 = vpack.c.b16 %v881, %v873
        %v1122 = vpack.c.b16 %v882, %v874
        %v1123 = vpack.c.b16 %v883, %v875
        %v1124 = vpack.c.b16 %v884, %v876
        %v1125 = vpack.c.b16 %v885, %v877
        %v1126 = vpack.c.b16 %v894, %v886
        %v1127 = vpack.c.b16 %v895, %v887
        %v1128 = vpack.c.b16 %v896, %v888
        %v1129 = vpack.c.b16 %v897, %v889
        %v1130 = vpack.c.b16 %v898, %v890
        %v1131 = vpack.c.b16 %v899, %v891
        %v1132 = vpack.c.b16 %v900, %v892
        %v1133 = vpack.c.b16 %v901, %v893
        %v1134 = vpack.c.b16 %v910, %v902
        %v1135 = vpack.c.b16 %v911, %v903
        %v1136 = vpack.c.b16 %v912, %v904
        %v1137 = vpack.c.b16 %v913, %v905
        %v1138 = vpack.c.b16 %v914, %v906
        %v1139 = vpack.c.b16 %v915, %v907
        %v1140 = vpack.c.b16 %v916, %v908
        %v1141 = vpack.c.b16 %v917, %v909
        %v1142 = vpack.c.b16 %v926, %v918
        %v1143 = vpack.c.b16 %v927, %v919
        %v1144 = vpack.c.b16 %v928, %v920
        %v1145 = vpack.c.b16 %v929, %v921
        %v1146 = vpack.c.b16 %v930, %v922
        %v1147 = vpack.c.b16 %v931, %v923
        %v1148 = vpack.c.b16 %v932, %v924
        %v1149 = vpack.c.b16 %v933, %v925
        %v1150 = vpack.c.b16 %v942, %v934
        %v1151 = vpack.c.b16 %v943, %v935
        %v1152 = vpack.c.b16 %v944, %v936
        %v1153 = vpack.c.b16 %v945, %v937
        %v1154 = vpack.c.b16 %v946, %v938
        %v1155 = vpack.c.b16 %v947, %v939
        %v1156 = vpack.c.b16 %v948, %v940
        %v1157 = vpack.c.b16 %v949, %v941
        %v1158 = vpack.c.b16 %v958, %v950
        %v1159 = vpack.c.b16 %v959, %v951
        %v1160 = vpack.c.b16 %v960, %v952
        %v1161 = vpack.c.b16 %v961, %v953
        %v1162 = vpack.c.b16 %v962, %v954
        %v1163 = vpack.c.b16 %v963, %v955
        %v1164 = vpack.c.b16 %v964, %v956
        %v1165 = vpack.c.b16 %v965, %v957
        %v1166 = vpack.c.b16 %v974, %v966
        %v1167 = vpack.c.b16 %v975, %v967
        %v1168 = vpack.c.b16 %v976, %v968
        %v1169 = vpack.c.b16 %v977, %v969
        %v1170 = vpack.c.b16 %v978, %v970
        %v1171 = vpack.c.b16 %v979, %v971
        %v1172 = vpack.c.b16 %v980, %v972
        %v1173 = vpack.c.b16 %v981, %v973
        %v1174 = vpack.c.b16 %v990, %v982
        %v1175 = vpack.c.b16 %v991, %v983
        %v1176 = vpack.c.b16 %v992, %v984
        %v1177 = vpack.c.b16 %v993, %v985
        %v1178 = vpack.c.b16 %v994, %v986
        %v1179 = vpack.c.b16 %v995, %v987
        %v1180 = vpack.c.b16 %v996, %v988
        %v1181 = vpack.c.b16 %v997, %v989
        %v1182 = vpack.c.b16 %v1006, %v998
        %v1183 = vpack.c.b16 %v1007, %v999
        %v1184 = vpack.c.b16 %v1008, %v1000
        %v1185 = vpack.c.b16 %v1009, %v1001
        %v1186 = vpack.c.b16 %v1010, %v1002
        %v1187 = vpack.c.b16 %v1011, %v1003
        %v1188 = vpack.c.b16 %v1012, %v1004
        %v1189 = vpack.c.b16 %v1013, %v1005
        %v1190 = vpack.c.b16 %v1022, %v1014
        %v1191 = vpack.c.b16 %v1023, %v1015
        %v1192 = vpack.c.b16 %v1024, %v1016
        %v1193 = vpack.c.b16 %v1025, %v1017
        %v1194 = vpack.c.b16 %v1026, %v1018
        %v1195 = vpack.c.b16 %v1027, %v1019
        %v1196 = vpack.c.b16 %v1028, %v1020
        %v1197 = vpack.c.b16 %v1029, %v1021
        %v1198 = vpack.c.b16 %v1038, %v1030
        %v1199 = vpack.c.b16 %v1039, %v1031
        %v1200 = vpack.c.b16 %v1040, %v1032
        %v1201 = vpack.c.b16 %v1041, %v1033
        %v1202 = vpack.c.b16 %v1042, %v1034
        %v1203 = vpack.c.b16 %v1043, %v1035
        %v1204 = vpack.c.b16 %v1044, %v1036
        %v1205 = vpack.c.b16 %v1045, %v1037
        %v1206 = vpack.c.b16 %v1054, %v1046
        %v1207 = vpack.c.b16 %v1055, %v1047
        %v1208 = vpack.c.b16 %v1056, %v1048
        %v1209 = vpack.c.b16 %v1057, %v1049
        %v1210 = vpack.c.b16 %v1058, %v1050
        %v1211 = vpack.c.b16 %v1059, %v1051
        %v1212 = vpack.c.b16 %v1060, %v1052
        %v1213 = vpack.c.b16 %v1061, %v1053
        %v1214 = vpack.c.b16 %v1070, %v1062
        %v1215 = vpack.c.b16 %v1071, %v1063
        %v1216 = vpack.c.b16 %v1072, %v1064
        %v1217 = vpack.c.b16 %v1073, %v1065
        %v1218 = vpack.c.b16 %v1074, %v1066
        %v1219 = vpack.c.b16 %v1075, %v1067
        %v1220 = vpack.c.b16 %v1076, %v1068
        %v1221 = vpack.c.b16 %v1077, %v1069
        %v1222 = vpack.c.b16 %v1086, %v1078
        %v1223 = vpack.c.b16 %v1087, %v1079
        %v1224 = vpack.c.b16 %v1088, %v1080
        %v1225 = vpack.c.b16 %v1089, %v1081
        %v1226 = vpack.c.b16 %v1090, %v1082
        %v1227 = vpack.c.b16 %v1091, %v1083
        %v1228 = vpack.c.b16 %v1092, %v1084
        %v1229 = vpack.c.b16 %v1093, %v1085
        %v1230 = vpack.c.b16 %v1102, %v1094
        %v1231 = vpack.c.b16 %v1103, %v1095
        %v1232 = vpack.c.b16 %v1104, %v1096
        %v1233 = vpack.c.b16 %v1105, %v1097
        %v1234 = vpack.c.b16 %v1106, %v1098
        %v1235 = vpack.c.b16 %v1107, %v1099
        %v1236 = vpack.c.b16 %v1108, %v1100
        %v1237 = vpack.c.b16 %v1109, %v1101
        %v1494 = vunpack.c.l.b16 %v598
        %v1495 = vunpack.c.l.b16 %v599
        %v1496 = vunpack.c.l.b16 %v600
        %v1497 = vunpack.c.l.b16 %v601
        %v1498 = vunpack.c.l.b16 %v602
        %v1499 = vunpack.c.l.b16 %v603
        %v1500 = vunpack.c.l.b16 %v604
        %v1501 = vunpack.c.l.b16 %v605
        %v1502 = vunpack.c.l.b16 %v606
        %v1503 = vunpack.c.l.b16 %v607
        %v1504 = vunpack.c.l.b16 %v608
        %v1505 = vunpack.c.l.b16 %v609
        %v1506 = vunpack.c.l.b16 %v610
        %v1507 = vunpack.c.l.b16 %v611
        %v1508 = vunpack.c.l.b16 %v612
        %v1509 = vunpack.c.l.b16 %v613
        %v1510 = vunpack.c.l.b16 %v614
        %v1511 = vunpack.c.l.b16 %v615
        %v1512 = vunpack.c.l.b16 %v616
        %v1513 = vunpack.c.l.b16 %v617
        %v1514 = vunpack.c.l.b16 %v618
        %v1515 = vunpack.c.l.b16 %v619
        %v1516 = vunpack.c.l.b16 %v620
        %v1517 = vunpack.c.l.b16 %v621
        %v1518 = vunpack.c.l.b16 %v622
        %v1519 = vunpack.c.l.b16 %v623
        %v1520 = vunpack.c.l.b16 %v624
        %v1521 = vunpack.c.l.b16 %v625
        %v1522 = vunpack.c.l.b16 %v626
        %v1523 = vunpack.c.l.b16 %v627
        %v1524 = vunpack.c.l.b16 %v628
        %v1525 = vunpack.c.l.b16 %v629
        %v1526 = vunpack.c.l.b16 %v630
        %v1527 = vunpack.c.l.b16 %v631
        %v1528 = vunpack.c.l.b16 %v632
        %v1529 = vunpack.c.l.b16 %v633
        %v1530 = vunpack.c.l.b16 %v634
        %v1531 = vunpack.c.l.b16 %v635
        %v1532 = vunpack.c.l.b16 %v636
        %v1533 = vunpack.c.l.b16 %v637
        %v1534 = vunpack.c.l.b16 %v638
        %v1535 = vunpack.c.l.b16 %v639
        %v1536 = vunpack.c.l.b16 %v640
        %v1537 = vunpack.c.l.b16 %v641
        %v1538 = vunpack.c.l.b16 %v642
        %v1539 = vunpack.c.l.b16 %v643
        %v1540 = vunpack.c.l.b16 %v644
        %v1541 = vunpack.c.l.b16 %v645
        %v1542 = vunpack.c.l.b16 %v646
        %v1543 = vunpack.c.l.b16 %v647
        %v1544 = vunpack.c.l.b16 %v648
        %v1545 = vunpack.c.l.b16 %v649
        %v1546 = vunpack.c.l.b16 %v650
        %v1547 = vunpack.c.l.b16 %v651
        %v1548 = vunpack.c.l.b16 %v652
        %v1549 = vunpack.c.l.b16 %v653
        %v1550 = vunpack.c.l.b16 %v654
        %v1551 = vunpack.c.l.b16 %v655
        %v1552 = vunpack.c.l.b16 %v656
        %v1553 = vunpack.c.l.b16 %v657
        %v1554 = vunpack.c.l.b16 %v658
        %v1555 = vunpack.c.l.b16 %v659
        %v1556 = vunpack.c.l.b16 %v660
        %v1557 = vunpack.c.l.b16 %v661
        %v1558 = vunpack.c.l.b16 %v662
        %v1559 = vunpack.c.l.b16 %v663
        %v1560 = vunpack.c.l.b16 %v664
        %v1561 = vunpack.c.l.b16 %v665
        %v1562 = vunpack.c.l.b16 %v666
        %v1563 = vunpack.c.l.b16 %v667
        %v1564 = vunpack.c.l.b16 %v668
        %v1565 = vunpack.c.l.b16 %v669
        %v1566 = vunpack.c.l.b16 %v670
        %v1567 = vunpack.c.l.b16 %v671
        %v1568 = vunpack.c.l.b16 %v672
        %v1569 = vunpack.c.l.b16 %v673
        %v1570 = vunpack.c.l.b16 %v674
        %v1571 = vunpack.c.l.b16 %v675
        %v1572 = vunpack.c.l.b16 %v676
        %v1573 = vunpack.c.l.b16 %v677
        %v1574 = vunpack.c.l.b16 %v678
        %v1575 = vunpack.c.l.b16 %v679
        %v1576 = vunpack.c.l.b16 %v680
        %v1577 = vunpack.c.l.b16 %v681
        %v1578 = vunpack.c.l.b16 %v682
        %v1579 = vunpack.c.l.b16 %v683
        %v1580 = vunpack.c.l.b16 %v684
        %v1581 = vunpack.c.l.b16 %v685
        %v1582 = vunpack.c.l.b16 %v686
        %v1583 = vunpack.c.l.b16 %v687
        %v1584 = vunpack.c.l.b16 %v688
        %v1585 = vunpack.c.l.b16 %v689
        %v1586 = vunpack.c.l.b16 %v690
        %v1587 = vunpack.c.l.b16 %v691
        %v1588 = vunpack.c.l.b16 %v692
        %v1589 = vunpack.c.l.b16 %v693
        %v1590 = vunpack.c.l.b16 %v694
        %v1591 = vunpack.c.l.b16 %v695
        %v1592 = vunpack.c.l.b16 %v696
        %v1593 = vunpack.c.l.b16 %v697
        %v1594 = vunpack.c.l.b16 %v698
        %v1595 = vunpack.c.l.b16 %v699
        %v1596 = vunpack.c.l.b16 %v700
        %v1597 = vunpack.c.l.b16 %v701
        %v1598 = vunpack.c.l.b16 %v702
        %v1599 = vunpack.c.l.b16 %v703
        %v1600 = vunpack.c.l.b16 %v704
        %v1601 = vunpack.c.l.b16 %v705
        %v1602 = vunpack.c.l.b16 %v706
        %v1603 = vunpack.c.l.b16 %v707
        %v1604 = vunpack.c.l.b16 %v708
        %v1605 = vunpack.c.l.b16 %v709
        %v1606 = vunpack.c.l.b16 %v710
        %v1607 = vunpack.c.l.b16 %v711
        %v1608 = vunpack.c.l.b16 %v712
        %v1609 = vunpack.c.l.b16 %v713
        %v1610 = vunpack.c.l.b16 %v714
        %v1611 = vunpack.c.l.b16 %v715
        %v1612 = vunpack.c.l.b16 %v716
        %v1613 = vunpack.c.l.b16 %v717
        %v1614 = vunpack.c.l.b16 %v718
        %v1615 = vunpack.c.l.b16 %v719
        %v1616 = vunpack.c.l.b16 %v720
        %v1617 = vunpack.c.l.b16 %v721
        %v1618 = vunpack.c.l.b16 %v722
        %v1619 = vunpack.c.l.b16 %v723
        %v1620 = vunpack.c.l.b16 %v724
        %v1621 = vunpack.c.l.b16 %v725
        %v1622 = vpack.c.b16 %v1495, %v1494
        %v1623 = vpack.c.b16 %v1497, %v1496
        %v1624 = vpack.c.b16 %v1499, %v1498
        %v1625 = vpack.c.b16 %v1501, %v1500
        %v1626 = vpack.c.b16 %v1503, %v1502
        %v1627 = vpack.c.b16 %v1505, %v1504
        %v1628 = vpack.c.b16 %v1507, %v1506
        %v1629 = vpack.c.b16 %v1509, %v1508
        %v1630 = vpack.c.b16 %v1511, %v1510
        %v1631 = vpack.c.b16 %v1513, %v1512
        %v1632 = vpack.c.b16 %v1515, %v1514
        %v1633 = vpack.c.b16 %v1517, %v1516
        %v1634 = vpack.c.b16 %v1519, %v1518
        %v1635 = vpack.c.b16 %v1521, %v1520
        %v1636 = vpack.c.b16 %v1523, %v1522
        %v1637 = vpack.c.b16 %v1525, %v1524
        %v1638 = vpack.c.b16 %v1527, %v1526
        %v1639 = vpack.c.b16 %v1529, %v1528
        %v1640 = vpack.c.b16 %v1531, %v1530
        %v1641 = vpack.c.b16 %v1533, %v1532
        %v1642 = vpack.c.b16 %v1535, %v1534
        %v1643 = vpack.c.b16 %v1537, %v1536
        %v1644 = vpack.c.b16 %v1539, %v1538
        %v1645 = vpack.c.b16 %v1541, %v1540
        %v1646 = vpack.c.b16 %v1543, %v1542
        %v1647 = vpack.c.b16 %v1545, %v1544
        %v1648 = vpack.c.b16 %v1547, %v1546
        %v1649 = vpack.c.b16 %v1549, %v1548
        %v1650 = vpack.c.b16 %v1551, %v1550
        %v1651 = vpack.c.b16 %v1553, %v1552
        %v1652 = vpack.c.b16 %v1555, %v1554
        %v1653 = vpack.c.b16 %v1557, %v1556
        %v1654 = vpack.c.b16 %v1559, %v1558
        %v1655 = vpack.c.b16 %v1561, %v1560
        %v1656 = vpack.c.b16 %v1563, %v1562
        %v1657 = vpack.c.b16 %v1565, %v1564
        %v1658 = vpack.c.b16 %v1567, %v1566
        %v1659 = vpack.c.b16 %v1569, %v1568
        %v1660 = vpack.c.b16 %v1571, %v1570
        %v1661 = vpack.c.b16 %v1573, %v1572
        %v1662 = vpack.c.b16 %v1575, %v1574
        %v1663 = vpack.c.b16 %v1577, %v1576
        %v1664 = vpack.c.b16 %v1579, %v1578
        %v1665 = vpack.c.b16 %v1581, %v1580
        %v1666 = vpack.c.b16 %v1583, %v1582
        %v1667 = vpack.c.b16 %v1585, %v1584
        %v1668 = vpack.c.b16 %v1587, %v1586
        %v1669 = vpack.c.b16 %v1589, %v1588
        %v1670 = vpack.c.b16 %v1591, %v1590
        %v1671 = vpack.c.b16 %v1593, %v1592
        %v1672 = vpack.c.b16 %v1595, %v1594
        %v1673 = vpack.c.b16 %v1597, %v1596
        %v1674 = vpack.c.b16 %v1599, %v1598
        %v1675 = vpack.c.b16 %v1601, %v1600
        %v1676 = vpack.c.b16 %v1603, %v1602
        %v1677 = vpack.c.b16 %v1605, %v1604
        %v1678 = vpack.c.b16 %v1607, %v1606
        %v1679 = vpack.c.b16 %v1609, %v1608
        %v1680 = vpack.c.b16 %v1611, %v1610
        %v1681 = vpack.c.b16 %v1613, %v1612
        %v1682 = vpack.c.b16 %v1615, %v1614
        %v1683 = vpack.c.b16 %v1617, %v1616
        %v1684 = vpack.c.b16 %v1619, %v1618
        %v1685 = vpack.c.b16 %v1621, %v1620
        %1750 = vmatprep.subr.bf16.mxu0 0
        %1751 = vmatpush1.bf16.msra.mxu0 %v1629
        %1752 = vmatprep.subr.bf16.mxu0 0
        %1753 = vmatpush1.bf16.msra.mxu0 %v1628
        %1754 = vmatprep.subr.bf16.mxu0 0
        %1755 = vmatpush1.bf16.msra.mxu0 %v1627
        %1756 = vmatprep.subr.bf16.mxu0 0
        %1757 = vmatpush1.bf16.msra.mxu0 %v1626
        %1758 = vmatprep.subr.bf16.mxu0 0
        %1759 = vmatpush1.bf16.msra.mxu0 %v1625
        %1760 = vmatprep.subr.bf16.mxu0 0
        %1761 = vmatpush1.bf16.msra.mxu0 %v1624
        %1762 = vmatprep.subr.bf16.mxu0 0
        %1763 = vmatpush1.bf16.msra.mxu0 %v1623
        %1764 = vmatprep.subr.bf16.mxu0 0
        %1765 = vmatpush1.bf16.msra.mxu0 %v1622
        %1766 = vmatprep.subr.bf16.mxu0 0
        %1767 = vmatpush2.bf16.msra.mxu0 %v1637
        %1768 = vmatprep.subr.bf16.mxu0 0
        %1769 = vmatpush2.bf16.msra.mxu0 %v1636
        %1770 = vmatprep.subr.bf16.mxu0 0
        %1771 = vmatpush2.bf16.msra.mxu0 %v1635
        %1772 = vmatprep.subr.bf16.mxu0 0
        %1773 = vmatpush2.bf16.msra.mxu0 %v1634
        %1774 = vmatprep.subr.bf16.mxu0 0
        %1775 = vmatpush2.bf16.msra.mxu0 %v1633
        %1776 = vmatprep.subr.bf16.mxu0 0
        %1777 = vmatpush2.bf16.msra.mxu0 %v1632
        %1778 = vmatprep.subr.bf16.mxu0 0
        %1779 = vmatpush2.bf16.msra.mxu0 %v1631
        %1780 = vmatprep.subr.bf16.mxu0 0
        %1781 = vmatpush2.bf16.msra.mxu0 %v1630
        %1782 = vmatprep.mubr.bf16.mxu0 %v1111
        %1783 = vmatmul.mubr.bf16.gmra.mxu0 %v1110
        %v1784 = vpop.f32.mrf.mxu0
        %v1785 = vadd.f32 0.0, %v1784
        %v1786 = vpop.f32.mrf.mxu0
        %v1787 = vpop.f32.mrf.mxu0
        %v1788 = vadd.f32 0.0, %v1787
        %v1789 = vpop.f32.mrf.mxu0
        %1790 = vmatprep.mubr.bf16.mxu0 %v1119
        %1791 = vmatmul.mubr.bf16.gmra.mxu0 %v1118
        %v1792 = vpop.f32.mrf.mxu0
        %v1793 = vadd.f32 0.0, %v1792
        %v1794 = vpop.f32.mrf.mxu0
        %v1795 = vpop.f32.mrf.mxu0
        %v1796 = vadd.f32 0.0, %v1795
        %v1797 = vpop.f32.mrf.mxu0
        %1798 = vmatprep.mubr.bf16.mxu0 %v1127
        %1799 = vmatmul.mubr.bf16.gmra.mxu0 %v1126
        %v1800 = vpop.f32.mrf.mxu0
        %v1801 = vadd.f32 0.0, %v1800
        %v1802 = vpop.f32.mrf.mxu0
        %v1803 = vpop.f32.mrf.mxu0
        %v1804 = vadd.f32 0.0, %v1803
        %v1805 = vpop.f32.mrf.mxu0
        %1806 = vmatprep.mubr.bf16.mxu0 %v1135
        %1807 = vmatmul.mubr.bf16.gmra.mxu0 %v1134
        %v1808 = vpop.f32.mrf.mxu0
        %v1809 = vadd.f32 0.0, %v1808
        %v1810 = vpop.f32.mrf.mxu0
        %v1811 = vpop.f32.mrf.mxu0
        %v1812 = vadd.f32 0.0, %v1811
        %v1813 = vpop.f32.mrf.mxu0
        %1814 = vmatprep.mubr.bf16.mxu0 %v1143
        %1815 = vmatmul.mubr.bf16.gmra.mxu0 %v1142
        %v1816 = vpop.f32.mrf.mxu0
        %v1817 = vadd.f32 0.0, %v1816
        %v1818 = vpop.f32.mrf.mxu0
        %v1819 = vpop.f32.mrf.mxu0
        %v1820 = vadd.f32 0.0, %v1819
        %v1821 = vpop.f32.mrf.mxu0
        %1822 = vmatprep.mubr.bf16.mxu0 %v1151
        %1823 = vmatmul.mubr.bf16.gmra.mxu0 %v1150
        %v1824 = vpop.f32.mrf.mxu0
        %v1825 = vadd.f32 0.0, %v1824
        %v1826 = vpop.f32.mrf.mxu0
        %v1827 = vpop.f32.mrf.mxu0
        %v1828 = vadd.f32 0.0, %v1827
        %v1829 = vpop.f32.mrf.mxu0
        %1830 = vmatprep.mubr.bf16.mxu0 %v1159
        %1831 = vmatmul.mubr.bf16.gmra.mxu0 %v1158
        %v1832 = vpop.f32.mrf.mxu0
        %v1833 = vadd.f32 0.0, %v1832
        %v1834 = vpop.f32.mrf.mxu0
        %v1835 = vpop.f32.mrf.mxu0
        %v1836 = vadd.f32 0.0, %v1835
        %v1837 = vpop.f32.mrf.mxu0
        %1838 = vmatprep.mubr.bf16.mxu0 %v1167
        %1839 = vmatmul.mubr.bf16.gmra.mxu0 %v1166
        %v1840 = vpop.f32.mrf.mxu0
        %v1841 = vadd.f32 0.0, %v1840
        %v1842 = vpop.f32.mrf.mxu0
        %v1843 = vpop.f32.mrf.mxu0
        %v1844 = vadd.f32 0.0, %v1843
        %v1845 = vpop.f32.mrf.mxu0
        %1846 = vmatprep.mubr.bf16.mxu0 %v1175
        %1847 = vmatmul.mubr.bf16.gmra.mxu0 %v1174
        %v1848 = vpop.f32.mrf.mxu0
        %v1849 = vadd.f32 0.0, %v1848
        %v1850 = vpop.f32.mrf.mxu0
        %v1851 = vpop.f32.mrf.mxu0
        %v1852 = vadd.f32 0.0, %v1851
        %v1853 = vpop.f32.mrf.mxu0
        %1854 = vmatprep.mubr.bf16.mxu0 %v1183
        %1855 = vmatmul.mubr.bf16.gmra.mxu0 %v1182
        %v1856 = vpop.f32.mrf.mxu0
        %v1857 = vadd.f32 0.0, %v1856
        %v1858 = vpop.f32.mrf.mxu0
        %v1859 = vpop.f32.mrf.mxu0
        %v1860 = vadd.f32 0.0, %v1859
        %v1861 = vpop.f32.mrf.mxu0
        %1862 = vmatprep.mubr.bf16.mxu0 %v1191
        %1863 = vmatmul.mubr.bf16.gmra.mxu0 %v1190
        %v1864 = vpop.f32.mrf.mxu0
        %v1865 = vadd.f32 0.0, %v1864
        %v1866 = vpop.f32.mrf.mxu0
        %v1867 = vpop.f32.mrf.mxu0
        %v1868 = vadd.f32 0.0, %v1867
        %v1869 = vpop.f32.mrf.mxu0
        %1870 = vmatprep.mubr.bf16.mxu0 %v1199
        %1871 = vmatmul.mubr.bf16.gmra.mxu0 %v1198
        %v1872 = vpop.f32.mrf.mxu0
        %v1873 = vadd.f32 0.0, %v1872
        %v1874 = vpop.f32.mrf.mxu0
        %v1875 = vpop.f32.mrf.mxu0
        %v1876 = vadd.f32 0.0, %v1875
        %v1877 = vpop.f32.mrf.mxu0
        %1878 = vmatprep.mubr.bf16.mxu0 %v1207
        %1879 = vmatmul.mubr.bf16.gmra.mxu0 %v1206
        %v1880 = vpop.f32.mrf.mxu0
        %v1881 = vadd.f32 0.0, %v1880
        %v1882 = vpop.f32.mrf.mxu0
        %v1883 = vpop.f32.mrf.mxu0
        %v1884 = vadd.f32 0.0, %v1883
        %v1885 = vpop.f32.mrf.mxu0
        %1886 = vmatprep.mubr.bf16.mxu0 %v1215
        %1887 = vmatmul.mubr.bf16.gmra.mxu0 %v1214
        %v1888 = vpop.f32.mrf.mxu0
        %v1889 = vadd.f32 0.0, %v1888
        %v1890 = vpop.f32.mrf.mxu0
        %v1891 = vpop.f32.mrf.mxu0
        %v1892 = vadd.f32 0.0, %v1891
        %v1893 = vpop.f32.mrf.mxu0
        %1894 = vmatprep.mubr.bf16.mxu0 %v1223
        %1895 = vmatmul.mubr.bf16.gmra.mxu0 %v1222
        %v1896 = vpop.f32.mrf.mxu0
        %v1897 = vadd.f32 0.0, %v1896
        %v1898 = vpop.f32.mrf.mxu0
        %v1899 = vpop.f32.mrf.mxu0
        %v1900 = vadd.f32 0.0, %v1899
        %v1901 = vpop.f32.mrf.mxu0
        %1902 = vmatprep.mubr.bf16.mxu0 %v1231
        %1903 = vmatmul.mubr.bf16.gmra.mxu0 %v1230
        %v1904 = vpop.f32.mrf.mxu0
        %v1905 = vadd.f32 0.0, %v1904
        %v1906 = vpop.f32.mrf.mxu0
        %v1907 = vpop.f32.mrf.mxu0
        %v1908 = vadd.f32 0.0, %v1907
        %v1909 = vpop.f32.mrf.mxu0
        %1910 = vdwg.mxu0
        %1911 = vmatprep.subr.bf16.mxu0 0
        %1912 = vmatpush1.bf16.msra.mxu0 %v1645
        %1913 = vmatprep.subr.bf16.mxu0 0
        %1914 = vmatpush1.bf16.msra.mxu0 %v1644
        %1915 = vmatprep.subr.bf16.mxu0 0
        %1916 = vmatpush1.bf16.msra.mxu0 %v1643
        %1917 = vmatprep.subr.bf16.mxu0 0
        %1918 = vmatpush1.bf16.msra.mxu0 %v1642
        %1919 = vmatprep.subr.bf16.mxu0 0
        %1920 = vmatpush1.bf16.msra.mxu0 %v1641
        %1921 = vmatprep.subr.bf16.mxu0 0
        %1922 = vmatpush1.bf16.msra.mxu0 %v1640
        %1923 = vmatprep.subr.bf16.mxu0 0
        %1924 = vmatpush1.bf16.msra.mxu0 %v1639
        %1925 = vmatprep.subr.bf16.mxu0 0
        %1926 = vmatpush1.bf16.msra.mxu0 %v1638
        %1927 = vmatprep.subr.bf16.mxu0 0
        %1928 = vmatpush2.bf16.msra.mxu0 %v1653
        %1929 = vmatprep.subr.bf16.mxu0 0
        %1930 = vmatpush2.bf16.msra.mxu0 %v1652
        %1931 = vmatprep.subr.bf16.mxu0 0
        %1932 = vmatpush2.bf16.msra.mxu0 %v1651
        %1933 = vmatprep.subr.bf16.mxu0 0
        %1934 = vmatpush2.bf16.msra.mxu0 %v1650
        %1935 = vmatprep.subr.bf16.mxu0 0
        %1936 = vmatpush2.bf16.msra.mxu0 %v1649
        %1937 = vmatprep.subr.bf16.mxu0 0
        %1938 = vmatpush2.bf16.msra.mxu0 %v1648
        %1939 = vmatprep.subr.bf16.mxu0 0
        %1940 = vmatpush2.bf16.msra.mxu0 %v1647
        %1941 = vmatprep.subr.bf16.mxu0 0
        %1942 = vmatpush2.bf16.msra.mxu0 %v1646
        %1943 = vmatprep.mubr.bf16.mxu0 %v1113
        %1944 = vmatmul.mubr.bf16.gmra.mxu0 %v1112
        %v1945 = vpop.f32.mrf.mxu0
        %v1946 = vadd.f32 %v1785, %v1945
        %v1947 = vpop.f32.mrf.mxu0
        %v1948 = vpop.f32.mrf.mxu0
        %v1949 = vadd.f32 %v1788, %v1948
        %v1950 = vpop.f32.mrf.mxu0
        %1951 = vmatprep.mubr.bf16.mxu0 %v1121
        %1952 = vmatmul.mubr.bf16.gmra.mxu0 %v1120
        %v1953 = vpop.f32.mrf.mxu0
        %v1954 = vadd.f32 %v1793, %v1953
        %v1955 = vpop.f32.mrf.mxu0
        %v1956 = vpop.f32.mrf.mxu0
        %v1957 = vadd.f32 %v1796, %v1956
        %v1958 = vpop.f32.mrf.mxu0
        %1959 = vmatprep.mubr.bf16.mxu0 %v1129
        %1960 = vmatmul.mubr.bf16.gmra.mxu0 %v1128
        %v1961 = vpop.f32.mrf.mxu0
        %v1962 = vadd.f32 %v1801, %v1961
        %v1963 = vpop.f32.mrf.mxu0
        %v1964 = vpop.f32.mrf.mxu0
        %v1965 = vadd.f32 %v1804, %v1964
        %v1966 = vpop.f32.mrf.mxu0
        %1967 = vmatprep.mubr.bf16.mxu0 %v1137
        %1968 = vmatmul.mubr.bf16.gmra.mxu0 %v1136
        %v1969 = vpop.f32.mrf.mxu0
        %v1970 = vadd.f32 %v1809, %v1969
        %v1971 = vpop.f32.mrf.mxu0
        %v1972 = vpop.f32.mrf.mxu0
        %v1973 = vadd.f32 %v1812, %v1972
        %v1974 = vpop.f32.mrf.mxu0
        %1975 = vmatprep.mubr.bf16.mxu0 %v1145
        %1976 = vmatmul.mubr.bf16.gmra.mxu0 %v1144
        %v1977 = vpop.f32.mrf.mxu0
        %v1978 = vadd.f32 %v1817, %v1977
        %v1979 = vpop.f32.mrf.mxu0
        %v1980 = vpop.f32.mrf.mxu0
        %v1981 = vadd.f32 %v1820, %v1980
        %v1982 = vpop.f32.mrf.mxu0
        %1983 = vmatprep.mubr.bf16.mxu0 %v1153
        %1984 = vmatmul.mubr.bf16.gmra.mxu0 %v1152
        %v1985 = vpop.f32.mrf.mxu0
        %v1986 = vadd.f32 %v1825, %v1985
        %v1987 = vpop.f32.mrf.mxu0
        %v1988 = vpop.f32.mrf.mxu0
        %v1989 = vadd.f32 %v1828, %v1988
        %v1990 = vpop.f32.mrf.mxu0
        %1991 = vmatprep.mubr.bf16.mxu0 %v1161
        %1992 = vmatmul.mubr.bf16.gmra.mxu0 %v1160
        %v1993 = vpop.f32.mrf.mxu0
        %v1994 = vadd.f32 %v1833, %v1993
        %v1995 = vpop.f32.mrf.mxu0
        %v1996 = vpop.f32.mrf.mxu0
        %v1997 = vadd.f32 %v1836, %v1996
        %v1998 = vpop.f32.mrf.mxu0
        %1999 = vmatprep.mubr.bf16.mxu0 %v1169
        %2000 = vmatmul.mubr.bf16.gmra.mxu0 %v1168
        %v2001 = vpop.f32.mrf.mxu0
        %v2002 = vadd.f32 %v1841, %v2001
        %v2003 = vpop.f32.mrf.mxu0
        %v2004 = vpop.f32.mrf.mxu0
        %v2005 = vadd.f32 %v1844, %v2004
        %v2006 = vpop.f32.mrf.mxu0
        %2007 = vmatprep.mubr.bf16.mxu0 %v1177
        %2008 = vmatmul.mubr.bf16.gmra.mxu0 %v1176
        %v2009 = vpop.f32.mrf.mxu0
        %v2010 = vadd.f32 %v1849, %v2009
        %v2011 = vpop.f32.mrf.mxu0
        %v2012 = vpop.f32.mrf.mxu0
        %v2013 = vadd.f32 %v1852, %v2012
        %v2014 = vpop.f32.mrf.mxu0
        %2015 = vmatprep.mubr.bf16.mxu0 %v1185
        %2016 = vmatmul.mubr.bf16.gmra.mxu0 %v1184
        %v2017 = vpop.f32.mrf.mxu0
        %v2018 = vadd.f32 %v1857, %v2017
        %v2019 = vpop.f32.mrf.mxu0
        %v2020 = vpop.f32.mrf.mxu0
        %v2021 = vadd.f32 %v1860, %v2020
        %v2022 = vpop.f32.mrf.mxu0
        %2023 = vmatprep.mubr.bf16.mxu0 %v1193
        %2024 = vmatmul.mubr.bf16.gmra.mxu0 %v1192
        %v2025 = vpop.f32.mrf.mxu0
        %v2026 = vadd.f32 %v1865, %v2025
        %v2027 = vpop.f32.mrf.mxu0
        %v2028 = vpop.f32.mrf.mxu0
        %v2029 = vadd.f32 %v1868, %v2028
        %v2030 = vpop.f32.mrf.mxu0
        %2031 = vmatprep.mubr.bf16.mxu0 %v1201
        %2032 = vmatmul.mubr.bf16.gmra.mxu0 %v1200
        %v2033 = vpop.f32.mrf.mxu0
        %v2034 = vadd.f32 %v1873, %v2033
        %v2035 = vpop.f32.mrf.mxu0
        %v2036 = vpop.f32.mrf.mxu0
        %v2037 = vadd.f32 %v1876, %v2036
        %v2038 = vpop.f32.mrf.mxu0
        %2039 = vmatprep.mubr.bf16.mxu0 %v1209
        %2040 = vmatmul.mubr.bf16.gmra.mxu0 %v1208
        %v2041 = vpop.f32.mrf.mxu0
        %v2042 = vadd.f32 %v1881, %v2041
        %v2043 = vpop.f32.mrf.mxu0
        %v2044 = vpop.f32.mrf.mxu0
        %v2045 = vadd.f32 %v1884, %v2044
        %v2046 = vpop.f32.mrf.mxu0
        %2047 = vmatprep.mubr.bf16.mxu0 %v1217
        %2048 = vmatmul.mubr.bf16.gmra.mxu0 %v1216
        %v2049 = vpop.f32.mrf.mxu0
        %v2050 = vadd.f32 %v1889, %v2049
        %v2051 = vpop.f32.mrf.mxu0
        %v2052 = vpop.f32.mrf.mxu0
        %v2053 = vadd.f32 %v1892, %v2052
        %v2054 = vpop.f32.mrf.mxu0
        %2055 = vmatprep.mubr.bf16.mxu0 %v1225
        %2056 = vmatmul.mubr.bf16.gmra.mxu0 %v1224
        %v2057 = vpop.f32.mrf.mxu0
        %v2058 = vadd.f32 %v1897, %v2057
        %v2059 = vpop.f32.mrf.mxu0
        %v2060 = vpop.f32.mrf.mxu0
        %v2061 = vadd.f32 %v1900, %v2060
        %v2062 = vpop.f32.mrf.mxu0
        %2063 = vmatprep.mubr.bf16.mxu0 %v1233
        %2064 = vmatmul.mubr.bf16.gmra.mxu0 %v1232
        %v2065 = vpop.f32.mrf.mxu0
        %v2066 = vadd.f32 %v1905, %v2065
        %v2067 = vpop.f32.mrf.mxu0
        %v2068 = vpop.f32.mrf.mxu0
        %v2069 = vadd.f32 %v1908, %v2068
        %v2070 = vpop.f32.mrf.mxu0
        %2071 = vdwg.mxu0
        %2072 = vmatprep.subr.bf16.mxu0 0
        %2073 = vmatpush1.bf16.msra.mxu0 %v1661
        %2074 = vmatprep.subr.bf16.mxu0 0
        %2075 = vmatpush1.bf16.msra.mxu0 %v1660
        %2076 = vmatprep.subr.bf16.mxu0 0
        %2077 = vmatpush1.bf16.msra.mxu0 %v1659
        %2078 = vmatprep.subr.bf16.mxu0 0
        %2079 = vmatpush1.bf16.msra.mxu0 %v1658
        %2080 = vmatprep.subr.bf16.mxu0 0
        %2081 = vmatpush1.bf16.msra.mxu0 %v1657
        %2082 = vmatprep.subr.bf16.mxu0 0
        %2083 = vmatpush1.bf16.msra.mxu0 %v1656
        %2084 = vmatprep.subr.bf16.mxu0 0
        %2085 = vmatpush1.bf16.msra.mxu0 %v1655
        %2086 = vmatprep.subr.bf16.mxu0 0
        %2087 = vmatpush1.bf16.msra.mxu0 %v1654
        %2088 = vmatprep.subr.bf16.mxu0 0
        %2089 = vmatpush2.bf16.msra.mxu0 %v1669
        %2090 = vmatprep.subr.bf16.mxu0 0
        %2091 = vmatpush2.bf16.msra.mxu0 %v1668
        %2092 = vmatprep.subr.bf16.mxu0 0
        %2093 = vmatpush2.bf16.msra.mxu0 %v1667
        %2094 = vmatprep.subr.bf16.mxu0 0
        %2095 = vmatpush2.bf16.msra.mxu0 %v1666
        %2096 = vmatprep.subr.bf16.mxu0 0
        %2097 = vmatpush2.bf16.msra.mxu0 %v1665
        %2098 = vmatprep.subr.bf16.mxu0 0
        %2099 = vmatpush2.bf16.msra.mxu0 %v1664
        %2100 = vmatprep.subr.bf16.mxu0 0
        %2101 = vmatpush2.bf16.msra.mxu0 %v1663
        %2102 = vmatprep.subr.bf16.mxu0 0
        %2103 = vmatpush2.bf16.msra.mxu0 %v1662
        %2104 = vmatprep.mubr.bf16.mxu0 %v1115
        %2105 = vmatmul.mubr.bf16.gmra.mxu0 %v1114
        %v2106 = vpop.f32.mrf.mxu0
        %v2107 = vadd.f32 %v1946, %v2106
        %v2108 = vpop.f32.mrf.mxu0
        %v2109 = vpop.f32.mrf.mxu0
        %v2110 = vadd.f32 %v1949, %v2109
        %v2111 = vpop.f32.mrf.mxu0
        %2112 = vmatprep.mubr.bf16.mxu0 %v1123
        %2113 = vmatmul.mubr.bf16.gmra.mxu0 %v1122
        %v2114 = vpop.f32.mrf.mxu0
        %v2115 = vadd.f32 %v1954, %v2114
        %v2116 = vpop.f32.mrf.mxu0
        %v2117 = vpop.f32.mrf.mxu0
        %v2118 = vadd.f32 %v1957, %v2117
        %v2119 = vpop.f32.mrf.mxu0
        %2120 = vmatprep.mubr.bf16.mxu0 %v1131
        %2121 = vmatmul.mubr.bf16.gmra.mxu0 %v1130
        %v2122 = vpop.f32.mrf.mxu0
        %v2123 = vadd.f32 %v1962, %v2122
        %v2124 = vpop.f32.mrf.mxu0
        %v2125 = vpop.f32.mrf.mxu0
        %v2126 = vadd.f32 %v1965, %v2125
        %v2127 = vpop.f32.mrf.mxu0
        %2128 = vmatprep.mubr.bf16.mxu0 %v1139
        %2129 = vmatmul.mubr.bf16.gmra.mxu0 %v1138
        %v2130 = vpop.f32.mrf.mxu0
        %v2131 = vadd.f32 %v1970, %v2130
        %v2132 = vpop.f32.mrf.mxu0
        %v2133 = vpop.f32.mrf.mxu0
        %v2134 = vadd.f32 %v1973, %v2133
        %v2135 = vpop.f32.mrf.mxu0
        %2136 = vmatprep.mubr.bf16.mxu0 %v1147
        %2137 = vmatmul.mubr.bf16.gmra.mxu0 %v1146
        %v2138 = vpop.f32.mrf.mxu0
        %v2139 = vadd.f32 %v1978, %v2138
        %v2140 = vpop.f32.mrf.mxu0
        %v2141 = vpop.f32.mrf.mxu0
        %v2142 = vadd.f32 %v1981, %v2141
        %v2143 = vpop.f32.mrf.mxu0
        %2144 = vmatprep.mubr.bf16.mxu0 %v1155
        %2145 = vmatmul.mubr.bf16.gmra.mxu0 %v1154
        %v2146 = vpop.f32.mrf.mxu0
        %v2147 = vadd.f32 %v1986, %v2146
        %v2148 = vpop.f32.mrf.mxu0
        %v2149 = vpop.f32.mrf.mxu0
        %v2150 = vadd.f32 %v1989, %v2149
        %v2151 = vpop.f32.mrf.mxu0
        %2152 = vmatprep.mubr.bf16.mxu0 %v1163
        %2153 = vmatmul.mubr.bf16.gmra.mxu0 %v1162
        %v2154 = vpop.f32.mrf.mxu0
        %v2155 = vadd.f32 %v1994, %v2154
        %v2156 = vpop.f32.mrf.mxu0
        %v2157 = vpop.f32.mrf.mxu0
        %v2158 = vadd.f32 %v1997, %v2157
        %v2159 = vpop.f32.mrf.mxu0
        %2160 = vmatprep.mubr.bf16.mxu0 %v1171
        %2161 = vmatmul.mubr.bf16.gmra.mxu0 %v1170
        %v2162 = vpop.f32.mrf.mxu0
        %v2163 = vadd.f32 %v2002, %v2162
        %v2164 = vpop.f32.mrf.mxu0
        %v2165 = vpop.f32.mrf.mxu0
        %v2166 = vadd.f32 %v2005, %v2165
        %v2167 = vpop.f32.mrf.mxu0
        %2168 = vmatprep.mubr.bf16.mxu0 %v1179
        %2169 = vmatmul.mubr.bf16.gmra.mxu0 %v1178
        %v2170 = vpop.f32.mrf.mxu0
        %v2171 = vadd.f32 %v2010, %v2170
        %v2172 = vpop.f32.mrf.mxu0
        %v2173 = vpop.f32.mrf.mxu0
        %v2174 = vadd.f32 %v2013, %v2173
        %v2175 = vpop.f32.mrf.mxu0
        %2176 = vmatprep.mubr.bf16.mxu0 %v1187
        %2177 = vmatmul.mubr.bf16.gmra.mxu0 %v1186
        %v2178 = vpop.f32.mrf.mxu0
        %v2179 = vadd.f32 %v2018, %v2178
        %v2180 = vpop.f32.mrf.mxu0
        %v2181 = vpop.f32.mrf.mxu0
        %v2182 = vadd.f32 %v2021, %v2181
        %v2183 = vpop.f32.mrf.mxu0
        %2184 = vmatprep.mubr.bf16.mxu0 %v1195
        %2185 = vmatmul.mubr.bf16.gmra.mxu0 %v1194
        %v2186 = vpop.f32.mrf.mxu0
        %v2187 = vadd.f32 %v2026, %v2186
        %v2188 = vpop.f32.mrf.mxu0
        %v2189 = vpop.f32.mrf.mxu0
        %v2190 = vadd.f32 %v2029, %v2189
        %v2191 = vpop.f32.mrf.mxu0
        %2192 = vmatprep.mubr.bf16.mxu0 %v1203
        %2193 = vmatmul.mubr.bf16.gmra.mxu0 %v1202
        %v2194 = vpop.f32.mrf.mxu0
        %v2195 = vadd.f32 %v2034, %v2194
        %v2196 = vpop.f32.mrf.mxu0
        %v2197 = vpop.f32.mrf.mxu0
        %v2198 = vadd.f32 %v2037, %v2197
        %v2199 = vpop.f32.mrf.mxu0
        %2200 = vmatprep.mubr.bf16.mxu0 %v1211
        %2201 = vmatmul.mubr.bf16.gmra.mxu0 %v1210
        %v2202 = vpop.f32.mrf.mxu0
        %v2203 = vadd.f32 %v2042, %v2202
        %v2204 = vpop.f32.mrf.mxu0
        %v2205 = vpop.f32.mrf.mxu0
        %v2206 = vadd.f32 %v2045, %v2205
        %v2207 = vpop.f32.mrf.mxu0
        %2208 = vmatprep.mubr.bf16.mxu0 %v1219
        %2209 = vmatmul.mubr.bf16.gmra.mxu0 %v1218
        %v2210 = vpop.f32.mrf.mxu0
        %v2211 = vadd.f32 %v2050, %v2210
        %v2212 = vpop.f32.mrf.mxu0
        %v2213 = vpop.f32.mrf.mxu0
        %v2214 = vadd.f32 %v2053, %v2213
        %v2215 = vpop.f32.mrf.mxu0
        %2216 = vmatprep.mubr.bf16.mxu0 %v1227
        %2217 = vmatmul.mubr.bf16.gmra.mxu0 %v1226
        %v2218 = vpop.f32.mrf.mxu0
        %v2219 = vadd.f32 %v2058, %v2218
        %v2220 = vpop.f32.mrf.mxu0
        %v2221 = vpop.f32.mrf.mxu0
        %v2222 = vadd.f32 %v2061, %v2221
        %v2223 = vpop.f32.mrf.mxu0
        %2224 = vmatprep.mubr.bf16.mxu0 %v1235
        %2225 = vmatmul.mubr.bf16.gmra.mxu0 %v1234
        %v2226 = vpop.f32.mrf.mxu0
        %v2227 = vadd.f32 %v2066, %v2226
        %v2228 = vpop.f32.mrf.mxu0
        %v2229 = vpop.f32.mrf.mxu0
        %v2230 = vadd.f32 %v2069, %v2229
        %v2231 = vpop.f32.mrf.mxu0
        %2232 = vdwg.mxu0
        %2233 = vmatprep.subr.bf16.mxu0 0
        %2234 = vmatpush1.bf16.msra.mxu0 %v1677
        %2235 = vmatprep.subr.bf16.mxu0 0
        %2236 = vmatpush1.bf16.msra.mxu0 %v1676
        %2237 = vmatprep.subr.bf16.mxu0 0
        %2238 = vmatpush1.bf16.msra.mxu0 %v1675
        %2239 = vmatprep.subr.bf16.mxu0 0
        %2240 = vmatpush1.bf16.msra.mxu0 %v1674
        %2241 = vmatprep.subr.bf16.mxu0 0
        %2242 = vmatpush1.bf16.msra.mxu0 %v1673
        %2243 = vmatprep.subr.bf16.mxu0 0
        %2244 = vmatpush1.bf16.msra.mxu0 %v1672
        %2245 = vmatprep.subr.bf16.mxu0 0
        %2246 = vmatpush1.bf16.msra.mxu0 %v1671
        %2247 = vmatprep.subr.bf16.mxu0 0
        %2248 = vmatpush1.bf16.msra.mxu0 %v1670
        %2249 = vmatprep.subr.bf16.mxu0 0
        %2250 = vmatpush2.bf16.msra.mxu0 %v1685
        %2251 = vmatprep.subr.bf16.mxu0 0
        %2252 = vmatpush2.bf16.msra.mxu0 %v1684
        %2253 = vmatprep.subr.bf16.mxu0 0
        %2254 = vmatpush2.bf16.msra.mxu0 %v1683
        %2255 = vmatprep.subr.bf16.mxu0 0
        %2256 = vmatpush2.bf16.msra.mxu0 %v1682
        %2257 = vmatprep.subr.bf16.mxu0 0
        %2258 = vmatpush2.bf16.msra.mxu0 %v1681
        %2259 = vmatprep.subr.bf16.mxu0 0
        %2260 = vmatpush2.bf16.msra.mxu0 %v1680
        %2261 = vmatprep.subr.bf16.mxu0 0
        %2262 = vmatpush2.bf16.msra.mxu0 %v1679
        %2263 = vmatprep.subr.bf16.mxu0 0
        %2264 = vmatpush2.bf16.msra.mxu0 %v1678
        %2265 = vmatprep.mubr.bf16.mxu0 %v1117
        %2266 = vmatmul.mubr.bf16.gmra.mxu0 %v1116
        %v2267 = vpop.f32.mrf.mxu0
        %v2268 = vadd.f32 %v2107, %v2267
        %v2269 = vpop.f32.mrf.mxu0
        %v2270 = vpop.f32.mrf.mxu0
        %v2271 = vadd.f32 %v2110, %v2270
        %v2272 = vpop.f32.mrf.mxu0
        %2273 = vmatprep.mubr.bf16.mxu0 %v1125
        %2274 = vmatmul.mubr.bf16.gmra.mxu0 %v1124
        %v2275 = vpop.f32.mrf.mxu0
        %v2276 = vadd.f32 %v2115, %v2275
        %v2277 = vpop.f32.mrf.mxu0
        %v2278 = vpop.f32.mrf.mxu0
        %v2279 = vadd.f32 %v2118, %v2278
        %v2280 = vpop.f32.mrf.mxu0
        %2281 = vmatprep.mubr.bf16.mxu0 %v1133
        %2282 = vmatmul.mubr.bf16.gmra.mxu0 %v1132
        %v2283 = vpop.f32.mrf.mxu0
        %v2284 = vadd.f32 %v2123, %v2283
        %v2285 = vpop.f32.mrf.mxu0
        %v2286 = vpop.f32.mrf.mxu0
        %v2287 = vadd.f32 %v2126, %v2286
        %v2288 = vpop.f32.mrf.mxu0
        %2289 = vmatprep.mubr.bf16.mxu0 %v1141
        %2290 = vmatmul.mubr.bf16.gmra.mxu0 %v1140
        %v2291 = vpop.f32.mrf.mxu0
        %v2292 = vadd.f32 %v2131, %v2291
        %v2293 = vpop.f32.mrf.mxu0
        %v2294 = vpop.f32.mrf.mxu0
        %v2295 = vadd.f32 %v2134, %v2294
        %v2296 = vpop.f32.mrf.mxu0
        %2297 = vmatprep.mubr.bf16.mxu0 %v1149
        %2298 = vmatmul.mubr.bf16.gmra.mxu0 %v1148
        %v2299 = vpop.f32.mrf.mxu0
        %v2300 = vadd.f32 %v2139, %v2299
        %v2301 = vpop.f32.mrf.mxu0
        %v2302 = vpop.f32.mrf.mxu0
        %v2303 = vadd.f32 %v2142, %v2302
        %v2304 = vpop.f32.mrf.mxu0
        %2305 = vmatprep.mubr.bf16.mxu0 %v1157
        %2306 = vmatmul.mubr.bf16.gmra.mxu0 %v1156
        %v2307 = vpop.f32.mrf.mxu0
        %v2308 = vadd.f32 %v2147, %v2307
        %v2309 = vpop.f32.mrf.mxu0
        %v2310 = vpop.f32.mrf.mxu0
        %v2311 = vadd.f32 %v2150, %v2310
        %v2312 = vpop.f32.mrf.mxu0
        %2313 = vmatprep.mubr.bf16.mxu0 %v1165
        %2314 = vmatmul.mubr.bf16.gmra.mxu0 %v1164
        %v2315 = vpop.f32.mrf.mxu0
        %v2316 = vadd.f32 %v2155, %v2315
        %v2317 = vpop.f32.mrf.mxu0
        %v2318 = vpop.f32.mrf.mxu0
        %v2319 = vadd.f32 %v2158, %v2318
        %v2320 = vpop.f32.mrf.mxu0
        %2321 = vmatprep.mubr.bf16.mxu0 %v1173
        %2322 = vmatmul.mubr.bf16.gmra.mxu0 %v1172
        %v2323 = vpop.f32.mrf.mxu0
        %v2324 = vadd.f32 %v2163, %v2323
        %v2325 = vpop.f32.mrf.mxu0
        %v2326 = vpop.f32.mrf.mxu0
        %v2327 = vadd.f32 %v2166, %v2326
        %v2328 = vpop.f32.mrf.mxu0
        %2329 = vmatprep.mubr.bf16.mxu0 %v1181
        %2330 = vmatmul.mubr.bf16.gmra.mxu0 %v1180
        %v2331 = vpop.f32.mrf.mxu0
        %v2332 = vadd.f32 %v2171, %v2331
        %v2333 = vpop.f32.mrf.mxu0
        %v2334 = vpop.f32.mrf.mxu0
        %v2335 = vadd.f32 %v2174, %v2334
        %v2336 = vpop.f32.mrf.mxu0
        %2337 = vmatprep.mubr.bf16.mxu0 %v1189
        %2338 = vmatmul.mubr.bf16.gmra.mxu0 %v1188
        %v2339 = vpop.f32.mrf.mxu0
        %v2340 = vadd.f32 %v2179, %v2339
        %v2341 = vpop.f32.mrf.mxu0
        %v2342 = vpop.f32.mrf.mxu0
        %v2343 = vadd.f32 %v2182, %v2342
        %v2344 = vpop.f32.mrf.mxu0
        %2345 = vmatprep.mubr.bf16.mxu0 %v1197
        %2346 = vmatmul.mubr.bf16.gmra.mxu0 %v1196
        %v2347 = vpop.f32.mrf.mxu0
        %v2348 = vadd.f32 %v2187, %v2347
        %v2349 = vpop.f32.mrf.mxu0
        %v2350 = vpop.f32.mrf.mxu0
        %v2351 = vadd.f32 %v2190, %v2350
        %v2352 = vpop.f32.mrf.mxu0
        %2353 = vmatprep.mubr.bf16.mxu0 %v1205
        %2354 = vmatmul.mubr.bf16.gmra.mxu0 %v1204
        %v2355 = vpop.f32.mrf.mxu0
        %v2356 = vadd.f32 %v2195, %v2355
        %v2357 = vpop.f32.mrf.mxu0
        %v2358 = vpop.f32.mrf.mxu0
        %v2359 = vadd.f32 %v2198, %v2358
        %v2360 = vpop.f32.mrf.mxu0
        %2361 = vmatprep.mubr.bf16.mxu0 %v1213
        %2362 = vmatmul.mubr.bf16.gmra.mxu0 %v1212
        %v2363 = vpop.f32.mrf.mxu0
        %v2364 = vadd.f32 %v2203, %v2363
        %v2365 = vpop.f32.mrf.mxu0
        %v2366 = vpop.f32.mrf.mxu0
        %v2367 = vadd.f32 %v2206, %v2366
        %v2368 = vpop.f32.mrf.mxu0
        %2369 = vmatprep.mubr.bf16.mxu0 %v1221
        %2370 = vmatmul.mubr.bf16.gmra.mxu0 %v1220
        %v2371 = vpop.f32.mrf.mxu0
        %v2372 = vadd.f32 %v2211, %v2371
        %v2373 = vpop.f32.mrf.mxu0
        %v2374 = vpop.f32.mrf.mxu0
        %v2375 = vadd.f32 %v2214, %v2374
        %v2376 = vpop.f32.mrf.mxu0
        %2377 = vmatprep.mubr.bf16.mxu0 %v1229
        %2378 = vmatmul.mubr.bf16.gmra.mxu0 %v1228
        %v2379 = vpop.f32.mrf.mxu0
        %v2380 = vadd.f32 %v2219, %v2379
        %v2381 = vpop.f32.mrf.mxu0
        %v2382 = vpop.f32.mrf.mxu0
        %v2383 = vadd.f32 %v2222, %v2382
        %v2384 = vpop.f32.mrf.mxu0
        %2385 = vmatprep.mubr.bf16.mxu0 %v1237
        %2386 = vmatmul.mubr.bf16.gmra.mxu0 %v1236
        %v2387 = vpop.f32.mrf.mxu0
        %v2388 = vadd.f32 %v2227, %v2387
        %v2389 = vpop.f32.mrf.mxu0
        %v2390 = vpop.f32.mrf.mxu0
        %v2391 = vadd.f32 %v2230, %v2390
        %v2392 = vpop.f32.mrf.mxu0
        %2393 = vdwg.mxu0
        %v2394 = vadd.f32 %v438, %v2268
        %v2395 = vadd.f32 %v439, %v2271
        %v2396 = vadd.f32 %v440, %v2276
        %v2397 = vadd.f32 %v441, %v2279
        %v2398 = vadd.f32 %v442, %v2284
        %v2399 = vadd.f32 %v443, %v2287
        %v2400 = vadd.f32 %v444, %v2292
        %v2401 = vadd.f32 %v445, %v2295
        %v2402 = vadd.f32 %v446, %v2300
        %v2403 = vadd.f32 %v447, %v2303
        %v2404 = vadd.f32 %v448, %v2308
        %v2405 = vadd.f32 %v449, %v2311
        %v2406 = vadd.f32 %v450, %v2316
        %v2407 = vadd.f32 %v451, %v2319
        %v2408 = vadd.f32 %v452, %v2324
        %v2409 = vadd.f32 %v453, %v2327
        %v2410 = vadd.f32 %v454, %v2332
        %v2411 = vadd.f32 %v455, %v2335
        %v2412 = vadd.f32 %v456, %v2340
        %v2413 = vadd.f32 %v457, %v2343
        %v2414 = vadd.f32 %v458, %v2348
        %v2415 = vadd.f32 %v459, %v2351
        %v2416 = vadd.f32 %v460, %v2356
        %v2417 = vadd.f32 %v461, %v2359
        %v2418 = vadd.f32 %v462, %v2364
        %v2419 = vadd.f32 %v463, %v2367
        %v2420 = vadd.f32 %v464, %v2372
        %v2421 = vadd.f32 %v465, %v2375
        %v2422 = vadd.f32 %v466, %v2380
        %v2423 = vadd.f32 %v467, %v2383
        %v2424 = vadd.f32 %v468, %v2388
        %v2425 = vadd.f32 %v469, %v2391
        %2426 = vst [vmem:[#allocation2] sm:$0xff] %v2394
        %2427 = vst [vmem:[#allocation2 + $0x8] sm:$0xff] %v2395
        %2428 = vst [vmem:[#allocation2 + $0x10] sm:$0xff] %v2396
        %2429 = vst [vmem:[#allocation2 + $0x18] sm:$0xff] %v2397
        %2430 = vst [vmem:[#allocation2 + $0x20] sm:$0xff] %v2398
        %2431 = vst [vmem:[#allocation2 + $0x28] sm:$0xff] %v2399
        %2432 = vst [vmem:[#allocation2 + $0x30] sm:$0xff] %v2400
        %2433 = vst [vmem:[#allocation2 + $0x38] sm:$0xff] %v2401
        %2434 = vst [vmem:[#allocation2 + $0x40] sm:$0xff] %v2402
        %2435 = vst [vmem:[#allocation2 + $0x48] sm:$0xff] %v2403
        %2436 = vst [vmem:[#allocation2 + $0x50] sm:$0xff] %v2404
        %2437 = vst [vmem:[#allocation2 + $0x58] sm:$0xff] %v2405
        %2438 = vst [vmem:[#allocation2 + $0x60] sm:$0xff] %v2406
        %2439 = vst [vmem:[#allocation2 + $0x68] sm:$0xff] %v2407
        %2440 = vst [vmem:[#allocation2 + $0x70] sm:$0xff] %v2408
        %2441 = vst [vmem:[#allocation2 + $0x78] sm:$0xff] %v2409
        %2442 = vst [vmem:[#allocation2 + $0x80] sm:$0xff] %v2410
        %2443 = vst [vmem:[#allocation2 + $0x88] sm:$0xff] %v2411
        %2444 = vst [vmem:[#allocation2 + $0x90] sm:$0xff] %v2412
        %2445 = vst [vmem:[#allocation2 + $0x98] sm:$0xff] %v2413
        %2446 = vst [vmem:[#allocation2 + $0xa0] sm:$0xff] %v2414
        %2447 = vst [vmem:[#allocation2 + $0xa8] sm:$0xff] %v2415
        %2448 = vst [vmem:[#allocation2 + $0xb0] sm:$0xff] %v2416
        %2449 = vst [vmem:[#allocation2 + $0xb8] sm:$0xff] %v2417
        %2450 = vst [vmem:[#allocation2 + $0xc0] sm:$0xff] %v2418
        %2451 = vst [vmem:[#allocation2 + $0xc8] sm:$0xff] %v2419
        %2452 = vst [vmem:[#allocation2 + $0xd0] sm:$0xff] %v2420
        %2453 = vst [vmem:[#allocation2 + $0xd8] sm:$0xff] %v2421
        %2454 = vst [vmem:[#allocation2 + $0xe0] sm:$0xff] %v2422
        %2455 = vst [vmem:[#allocation2 + $0xe8] sm:$0xff] %v2423
        %2456 = vst [vmem:[#allocation2 + $0xf0] sm:$0xff] %v2424
        %2457 = vst [vmem:[#allocation2 + $0xf8] sm:$0xff] %v2425
        // Predicated region
        $region69: #{tpu_custom_call.1} parent=43 // pred_check
          %p2458 = pneg %p402
        $region70: #{tpu_custom_call.1} parent=43 // pred_check_branch
          %2460 = sbr.rel (%p2458) target = $region72
        $region71: #{tpu_custom_call.1} parent=43 // pred_region
          %v2461 = vld [vmem:[#allocation2] sm:$0xff]
          %v2462 = vld [vmem:[#allocation2 + $0x8] sm:$0xff]
          %v2463 = vld [vmem:[#allocation2 + $0x10] sm:$0xff]
          %v2464 = vld [vmem:[#allocation2 + $0x18] sm:$0xff]
          %v2465 = vld [vmem:[#allocation2 + $0x20] sm:$0xff]
          %v2466 = vld [vmem:[#allocation2 + $0x28] sm:$0xff]
          %v2467 = vld [vmem:[#allocation2 + $0x30] sm:$0xff]
          %v2468 = vld [vmem:[#allocation2 + $0x38] sm:$0xff]
          %v2469 = vld [vmem:[#allocation2 + $0x40] sm:$0xff]
          %v2470 = vld [vmem:[#allocation2 + $0x48] sm:$0xff]
          %v2471 = vld [vmem:[#allocation2 + $0x50] sm:$0xff]
          %v2472 = vld [vmem:[#allocation2 + $0x58] sm:$0xff]
          %v2473 = vld [vmem:[#allocation2 + $0x60] sm:$0xff]
          %v2474 = vld [vmem:[#allocation2 + $0x68] sm:$0xff]
          %v2475 = vld [vmem:[#allocation2 + $0x70] sm:$0xff]
          %v2476 = vld [vmem:[#allocation2 + $0x78] sm:$0xff]
          %v2477 = vld [vmem:[#allocation2 + $0x80] sm:$0xff]
          %v2478 = vld [vmem:[#allocation2 + $0x88] sm:$0xff]
          %v2479 = vld [vmem:[#allocation2 + $0x90] sm:$0xff]
          %v2480 = vld [vmem:[#allocation2 + $0x98] sm:$0xff]
          %v2481 = vld [vmem:[#allocation2 + $0xa0] sm:$0xff]
          %v2482 = vld [vmem:[#allocation2 + $0xa8] sm:$0xff]
          %v2483 = vld [vmem:[#allocation2 + $0xb0] sm:$0xff]
          %v2484 = vld [vmem:[#allocation2 + $0xb8] sm:$0xff]
          %v2485 = vld [vmem:[#allocation2 + $0xc0] sm:$0xff]
          %v2486 = vld [vmem:[#allocation2 + $0xc8] sm:$0xff]
          %v2487 = vld [vmem:[#allocation2 + $0xd0] sm:$0xff]
          %v2488 = vld [vmem:[#allocation2 + $0xd8] sm:$0xff]
          %v2489 = vld [vmem:[#allocation2 + $0xe0] sm:$0xff]
          %v2490 = vld [vmem:[#allocation2 + $0xe8] sm:$0xff]
          %v2491 = vld [vmem:[#allocation2 + $0xf0] sm:$0xff]
          %v2492 = vld [vmem:[#allocation2 + $0xf8] sm:$0xff]
          %v2493 = vld [vmem:[%s397] sm:$0xff]
          %v2494 = vld [vmem:[%s397 + $0x8] sm:$0xff]
          %v2495 = vld [vmem:[%s397 + $0x10] sm:$0xff]
          %v2496 = vld [vmem:[%s397 + $0x18] sm:$0xff]
          %v2497 = vld [vmem:[%s397 + $0x20] sm:$0xff]
          %v2498 = vld [vmem:[%s397 + $0x28] sm:$0xff]
          %v2499 = vld [vmem:[%s397 + $0x30] sm:$0xff]
          %v2500 = vld [vmem:[%s397 + $0x38] sm:$0xff]
          %v2501 = vld [vmem:[%s397 + $0x40] sm:$0xff]
          %v2502 = vld [vmem:[%s397 + $0x48] sm:$0xff]
          %v2503 = vld [vmem:[%s397 + $0x50] sm:$0xff]
          %v2504 = vld [vmem:[%s397 + $0x58] sm:$0xff]
          %v2505 = vld [vmem:[%s397 + $0x60] sm:$0xff]
          %v2506 = vld [vmem:[%s397 + $0x68] sm:$0xff]
          %v2507 = vld [vmem:[%s397 + $0x70] sm:$0xff]
          %v2508 = vld [vmem:[%s397 + $0x78] sm:$0xff]
          %v2509 = vld [vmem:[%s397 + $0x80] sm:$0xff]
          %v2510 = vld [vmem:[%s397 + $0x88] sm:$0xff]
          %v2511 = vld [vmem:[%s397 + $0x90] sm:$0xff]
          %v2512 = vld [vmem:[%s397 + $0x98] sm:$0xff]
          %v2513 = vld [vmem:[%s397 + $0xa0] sm:$0xff]
          %v2514 = vld [vmem:[%s397 + $0xa8] sm:$0xff]
          %v2515 = vld [vmem:[%s397 + $0xb0] sm:$0xff]
          %v2516 = vld [vmem:[%s397 + $0xb8] sm:$0xff]
          %v2517 = vld [vmem:[%s397 + $0xc0] sm:$0xff]
          %v2518 = vld [vmem:[%s397 + $0xc8] sm:$0xff]
          %v2519 = vld [vmem:[%s397 + $0xd0] sm:$0xff]
          %v2520 = vld [vmem:[%s397 + $0xd8] sm:$0xff]
          %v2521 = vld [vmem:[%s397 + $0xe0] sm:$0xff]
          %v2522 = vld [vmem:[%s397 + $0xe8] sm:$0xff]
          %v2523 = vld [vmem:[%s397 + $0xf0] sm:$0xff]
          %v2524 = vld [vmem:[%s397 + $0xf8] sm:$0xff]
          %2526 = vset.pattern.permute.xlu0 0
          %2527 = vperm.xlu0 %2526, %v2493
          %v2528 = vpop.permute.xlu0 %2527
          %2531 = vset.pattern.permute.xlu0 0
          %2532 = vperm.xlu0 %2531, %v2494
          %v2533 = vpop.permute.xlu0 %2532
          %2536 = vset.pattern.permute.xlu0 0
          %2537 = vperm.xlu0 %2536, %v2495
          %v2538 = vpop.permute.xlu0 %2537
          %2541 = vset.pattern.permute.xlu0 0
          %2542 = vperm.xlu0 %2541, %v2496
          %v2543 = vpop.permute.xlu0 %2542
          %2546 = vset.pattern.permute.xlu0 0
          %2547 = vperm.xlu0 %2546, %v2497
          %v2548 = vpop.permute.xlu0 %2547
          %2551 = vset.pattern.permute.xlu0 0
          %2552 = vperm.xlu0 %2551, %v2498
          %v2553 = vpop.permute.xlu0 %2552
          %2556 = vset.pattern.permute.xlu0 0
          %2557 = vperm.xlu0 %2556, %v2499
          %v2558 = vpop.permute.xlu0 %2557
          %2561 = vset.pattern.permute.xlu0 0
          %2562 = vperm.xlu0 %2561, %v2500
          %v2563 = vpop.permute.xlu0 %2562
          %2566 = vset.pattern.permute.xlu0 0
          %2567 = vperm.xlu0 %2566, %v2501
          %v2568 = vpop.permute.xlu0 %2567
          %2571 = vset.pattern.permute.xlu0 0
          %2572 = vperm.xlu0 %2571, %v2502
          %v2573 = vpop.permute.xlu0 %2572
          %2576 = vset.pattern.permute.xlu0 0
          %2577 = vperm.xlu0 %2576, %v2503
          %v2578 = vpop.permute.xlu0 %2577
          %2581 = vset.pattern.permute.xlu0 0
          %2582 = vperm.xlu0 %2581, %v2504
          %v2583 = vpop.permute.xlu0 %2582
          %2586 = vset.pattern.permute.xlu0 0
          %2587 = vperm.xlu0 %2586, %v2505
          %v2588 = vpop.permute.xlu0 %2587
          %2591 = vset.pattern.permute.xlu0 0
          %2592 = vperm.xlu0 %2591, %v2506
          %v2593 = vpop.permute.xlu0 %2592
          %2596 = vset.pattern.permute.xlu0 0
          %2597 = vperm.xlu0 %2596, %v2507
          %v2598 = vpop.permute.xlu0 %2597
          %2601 = vset.pattern.permute.xlu0 0
          %2602 = vperm.xlu0 %2601, %v2508
          %v2603 = vpop.permute.xlu0 %2602
          %2606 = vset.pattern.permute.xlu0 0
          %2607 = vperm.xlu0 %2606, %v2509
          %v2608 = vpop.permute.xlu0 %2607
          %2611 = vset.pattern.permute.xlu0 0
          %2612 = vperm.xlu0 %2611, %v2510
          %v2613 = vpop.permute.xlu0 %2612
          %2616 = vset.pattern.permute.xlu0 0
          %2617 = vperm.xlu0 %2616, %v2511
          %v2618 = vpop.permute.xlu0 %2617
          %2621 = vset.pattern.permute.xlu0 0
          %2622 = vperm.xlu0 %2621, %v2512
          %v2623 = vpop.permute.xlu0 %2622
          %2626 = vset.pattern.permute.xlu0 0
          %2627 = vperm.xlu0 %2626, %v2513
          %v2628 = vpop.permute.xlu0 %2627
          %2631 = vset.pattern.permute.xlu0 0
          %2632 = vperm.xlu0 %2631, %v2514
          %v2633 = vpop.permute.xlu0 %2632
          %2636 = vset.pattern.permute.xlu0 0
          %2637 = vperm.xlu0 %2636, %v2515
          %v2638 = vpop.permute.xlu0 %2637
          %2641 = vset.pattern.permute.xlu0 0
          %2642 = vperm.xlu0 %2641, %v2516
          %v2643 = vpop.permute.xlu0 %2642
          %2646 = vset.pattern.permute.xlu0 0
          %2647 = vperm.xlu0 %2646, %v2517
          %v2648 = vpop.permute.xlu0 %2647
          %2651 = vset.pattern.permute.xlu0 0
          %2652 = vperm.xlu0 %2651, %v2518
          %v2653 = vpop.permute.xlu0 %2652
          %2656 = vset.pattern.permute.xlu0 0
          %2657 = vperm.xlu0 %2656, %v2519
          %v2658 = vpop.permute.xlu0 %2657
          %2661 = vset.pattern.permute.xlu0 0
          %2662 = vperm.xlu0 %2661, %v2520
          %v2663 = vpop.permute.xlu0 %2662
          %2666 = vset.pattern.permute.xlu0 0
          %2667 = vperm.xlu0 %2666, %v2521
          %v2668 = vpop.permute.xlu0 %2667
          %2671 = vset.pattern.permute.xlu0 0
          %2672 = vperm.xlu0 %2671, %v2522
          %v2673 = vpop.permute.xlu0 %2672
          %2676 = vset.pattern.permute.xlu0 0
          %2677 = vperm.xlu0 %2676, %v2523
          %v2678 = vpop.permute.xlu0 %2677
          %2681 = vset.pattern.permute.xlu0 0
          %2682 = vperm.xlu0 %2681, %v2524
          %v2683 = vpop.permute.xlu0 %2682
          %v2685 = vmul.f32 %v2461, %v2528
          %v2686 = vmul.f32 %v2462, %v2533
          %v2687 = vmul.f32 %v2463, %v2538
          %v2688 = vmul.f32 %v2464, %v2543
          %v2689 = vmul.f32 %v2465, %v2548
          %v2690 = vmul.f32 %v2466, %v2553
          %v2691 = vmul.f32 %v2467, %v2558
          %v2692 = vmul.f32 %v2468, %v2563
          %v2693 = vmul.f32 %v2469, %v2568
          %v2694 = vmul.f32 %v2470, %v2573
          %v2695 = vmul.f32 %v2471, %v2578
          %v2696 = vmul.f32 %v2472, %v2583
          %v2697 = vmul.f32 %v2473, %v2588
          %v2698 = vmul.f32 %v2474, %v2593
          %v2699 = vmul.f32 %v2475, %v2598
          %v2700 = vmul.f32 %v2476, %v2603
          %v2701 = vmul.f32 %v2477, %v2608
          %v2702 = vmul.f32 %v2478, %v2613
          %v2703 = vmul.f32 %v2479, %v2618
          %v2704 = vmul.f32 %v2480, %v2623
          %v2705 = vmul.f32 %v2481, %v2628
          %v2706 = vmul.f32 %v2482, %v2633
          %v2707 = vmul.f32 %v2483, %v2638
          %v2708 = vmul.f32 %v2484, %v2643
          %v2709 = vmul.f32 %v2485, %v2648
          %v2710 = vmul.f32 %v2486, %v2653
          %v2711 = vmul.f32 %v2487, %v2658
          %v2712 = vmul.f32 %v2488, %v2663
          %v2713 = vmul.f32 %v2489, %v2668
          %v2714 = vmul.f32 %v2490, %v2673
          %v2715 = vmul.f32 %v2491, %v2678
          %v2716 = vmul.f32 %v2492, %v2683
          %v2717 = vpack.c.bf16 %v2686, %v2685
          %v2718 = vpack.c.bf16 %v2688, %v2687
          %v2719 = vpack.c.bf16 %v2690, %v2689
          %v2720 = vpack.c.bf16 %v2692, %v2691
          %v2721 = vpack.c.bf16 %v2694, %v2693
          %v2722 = vpack.c.bf16 %v2696, %v2695
          %v2723 = vpack.c.bf16 %v2698, %v2697
          %v2724 = vpack.c.bf16 %v2700, %v2699
          %v2725 = vpack.c.bf16 %v2702, %v2701
          %v2726 = vpack.c.bf16 %v2704, %v2703
          %v2727 = vpack.c.bf16 %v2706, %v2705
          %v2728 = vpack.c.bf16 %v2708, %v2707
          %v2729 = vpack.c.bf16 %v2710, %v2709
          %v2730 = vpack.c.bf16 %v2712, %v2711
          %v2731 = vpack.c.bf16 %v2714, %v2713
          %v2732 = vpack.c.bf16 %v2716, %v2715
          %v2733 = vld [vmem:[%s343] sm:$0xf]
          %v2734 = vld [vmem:[%s343 + $0x4] sm:$0xf]
          %v2735 = vld [vmem:[%s343 + $0x8] sm:$0xf]
          %v2736 = vld [vmem:[%s343 + $0xc] sm:$0xf]
          %v2737 = vld [vmem:[%s343 + $0x10] sm:$0xf]
          %v2738 = vld [vmem:[%s343 + $0x14] sm:$0xf]
          %v2739 = vld [vmem:[%s343 + $0x18] sm:$0xf]
          %v2740 = vld [vmem:[%s343 + $0x1c] sm:$0xf]
          %v2741 = vld [vmem:[%s343 + $0x20] sm:$0xf]
          %v2742 = vld [vmem:[%s343 + $0x24] sm:$0xf]
          %v2743 = vld [vmem:[%s343 + $0x28] sm:$0xf]
          %v2744 = vld [vmem:[%s343 + $0x2c] sm:$0xf]
          %v2745 = vld [vmem:[%s343 + $0x30] sm:$0xf]
          %v2746 = vld [vmem:[%s343 + $0x34] sm:$0xf]
          %v2747 = vld [vmem:[%s343 + $0x38] sm:$0xf]
          %v2748 = vld [vmem:[%s343 + $0x3c] sm:$0xf]
          %v2749 = vld [vmem:[%s343 + $0x40] sm:$0xf]
          %v2750 = vld [vmem:[%s343 + $0x44] sm:$0xf]
          %v2751 = vld [vmem:[%s343 + $0x48] sm:$0xf]
          %v2752 = vld [vmem:[%s343 + $0x4c] sm:$0xf]
          %v2753 = vld [vmem:[%s343 + $0x50] sm:$0xf]
          %v2754 = vld [vmem:[%s343 + $0x54] sm:$0xf]
          %v2755 = vld [vmem:[%s343 + $0x58] sm:$0xf]
          %v2756 = vld [vmem:[%s343 + $0x5c] sm:$0xf]
          %v2757 = vld [vmem:[%s343 + $0x60] sm:$0xf]
          %v2758 = vld [vmem:[%s343 + $0x64] sm:$0xf]
          %v2759 = vld [vmem:[%s343 + $0x68] sm:$0xf]
          %v2760 = vld [vmem:[%s343 + $0x6c] sm:$0xf]
          %v2761 = vld [vmem:[%s343 + $0x70] sm:$0xf]
          %v2762 = vld [vmem:[%s343 + $0x74] sm:$0xf]
          %v2763 = vld [vmem:[%s343 + $0x78] sm:$0xf]
          %v2764 = vld [vmem:[%s343 + $0x7c] sm:$0xf]
          %v2797 = vunpack.c.l.b16 %v2733
          %v2798 = vunpack.c.l.b16 %v2734
          %v2799 = vunpack.c.l.b16 %v2735
          %v2800 = vunpack.c.l.b16 %v2736
          %v2801 = vunpack.c.l.b16 %v2737
          %v2802 = vunpack.c.l.b16 %v2738
          %v2803 = vunpack.c.l.b16 %v2739
          %v2804 = vunpack.c.l.b16 %v2740
          %v2805 = vunpack.c.l.b16 %v2741
          %v2806 = vunpack.c.l.b16 %v2742
          %v2807 = vunpack.c.l.b16 %v2743
          %v2808 = vunpack.c.l.b16 %v2744
          %v2809 = vunpack.c.l.b16 %v2745
          %v2810 = vunpack.c.l.b16 %v2746
          %v2811 = vunpack.c.l.b16 %v2747
          %v2812 = vunpack.c.l.b16 %v2748
          %v2813 = vunpack.c.l.b16 %v2749
          %v2814 = vunpack.c.l.b16 %v2750
          %v2815 = vunpack.c.l.b16 %v2751
          %v2816 = vunpack.c.l.b16 %v2752
          %v2817 = vunpack.c.l.b16 %v2753
          %v2818 = vunpack.c.l.b16 %v2754
          %v2819 = vunpack.c.l.b16 %v2755
          %v2820 = vunpack.c.l.b16 %v2756
          %v2821 = vunpack.c.l.b16 %v2757
          %v2822 = vunpack.c.l.b16 %v2758
          %v2823 = vunpack.c.l.b16 %v2759
          %v2824 = vunpack.c.l.b16 %v2760
          %v2825 = vunpack.c.l.b16 %v2761
          %v2826 = vunpack.c.l.b16 %v2762
          %v2827 = vunpack.c.l.b16 %v2763
          %v2828 = vunpack.c.l.b16 %v2764
          %v2829 = vpack.c.b16 %v2798, %v2797
          %v2830 = vpack.c.b16 %v2800, %v2799
          %v2831 = vpack.c.b16 %v2802, %v2801
          %v2832 = vpack.c.b16 %v2804, %v2803
          %v2833 = vpack.c.b16 %v2806, %v2805
          %v2834 = vpack.c.b16 %v2808, %v2807
          %v2835 = vpack.c.b16 %v2810, %v2809
          %v2836 = vpack.c.b16 %v2812, %v2811
          %v2837 = vpack.c.b16 %v2814, %v2813
          %v2838 = vpack.c.b16 %v2816, %v2815
          %v2839 = vpack.c.b16 %v2818, %v2817
          %v2840 = vpack.c.b16 %v2820, %v2819
          %v2841 = vpack.c.b16 %v2822, %v2821
          %v2842 = vpack.c.b16 %v2824, %v2823
          %v2843 = vpack.c.b16 %v2826, %v2825
          %v2844 = vpack.c.b16 %v2828, %v2827
          %v2861 = vld [vmem:[#allocation9] sm:$0xf]
          %v2862 = vld [vmem:[#allocation9 + $0x4] sm:$0xf]
          %v2863 = vld [vmem:[#allocation9 + $0x8] sm:$0xf]
          %v2864 = vld [vmem:[#allocation9 + $0xc] sm:$0xf]
          %v2865 = vld [vmem:[#allocation9 + $0x10] sm:$0xf]
          %v2866 = vld [vmem:[#allocation9 + $0x14] sm:$0xf]
          %v2867 = vld [vmem:[#allocation9 + $0x18] sm:$0xf]
          %v2868 = vld [vmem:[#allocation9 + $0x1c] sm:$0xf]
          %v2869 = vld [vmem:[#allocation9 + $0x20] sm:$0xf]
          %v2870 = vld [vmem:[#allocation9 + $0x24] sm:$0xf]
          %v2871 = vld [vmem:[#allocation9 + $0x28] sm:$0xf]
          %v2872 = vld [vmem:[#allocation9 + $0x2c] sm:$0xf]
          %v2873 = vld [vmem:[#allocation9 + $0x30] sm:$0xf]
          %v2874 = vld [vmem:[#allocation9 + $0x34] sm:$0xf]
          %v2875 = vld [vmem:[#allocation9 + $0x38] sm:$0xf]
          %v2876 = vld [vmem:[#allocation9 + $0x3c] sm:$0xf]
          %v2877 = vld [vmem:[#allocation9 + $0x40] sm:$0xf]
          %v2878 = vld [vmem:[#allocation9 + $0x44] sm:$0xf]
          %v2879 = vld [vmem:[#allocation9 + $0x48] sm:$0xf]
          %v2880 = vld [vmem:[#allocation9 + $0x4c] sm:$0xf]
          %v2881 = vld [vmem:[#allocation9 + $0x50] sm:$0xf]
          %v2882 = vld [vmem:[#allocation9 + $0x54] sm:$0xf]
          %v2883 = vld [vmem:[#allocation9 + $0x58] sm:$0xf]
          %v2884 = vld [vmem:[#allocation9 + $0x5c] sm:$0xf]
          %v2885 = vld [vmem:[#allocation9 + $0x60] sm:$0xf]
          %v2886 = vld [vmem:[#allocation9 + $0x64] sm:$0xf]
          %v2887 = vld [vmem:[#allocation9 + $0x68] sm:$0xf]
          %v2888 = vld [vmem:[#allocation9 + $0x6c] sm:$0xf]
          %v2889 = vld [vmem:[#allocation9 + $0x70] sm:$0xf]
          %v2890 = vld [vmem:[#allocation9 + $0x74] sm:$0xf]
          %v2891 = vld [vmem:[#allocation9 + $0x78] sm:$0xf]
          %v2892 = vld [vmem:[#allocation9 + $0x7c] sm:$0xf]
          %v2893 = vld [vmem:[#allocation10] sm:$0x1]
          %v2895 = vlaneseq
          %v2896 = vshrl.u32 %v2895, 7
          %v2897 = vsub.s32 0, %v2896
          %v2898 = vrot.slane %v2893, %v2897
          %v2932 = vunpack.c.l.b16 %v2861
          %v2933 = vunpack.c.l.b16 %v2862
          %v2934 = vunpack.c.l.b16 %v2863
          %v2935 = vunpack.c.l.b16 %v2864
          %v2936 = vunpack.c.l.b16 %v2865
          %v2937 = vunpack.c.l.b16 %v2866
          %v2938 = vunpack.c.l.b16 %v2867
          %v2939 = vunpack.c.l.b16 %v2868
          %v2940 = vunpack.c.l.b16 %v2869
          %v2941 = vunpack.c.l.b16 %v2870
          %v2942 = vunpack.c.l.b16 %v2871
          %v2943 = vunpack.c.l.b16 %v2872
          %v2944 = vunpack.c.l.b16 %v2873
          %v2945 = vunpack.c.l.b16 %v2874
          %v2946 = vunpack.c.l.b16 %v2875
          %v2947 = vunpack.c.l.b16 %v2876
          %v2948 = vunpack.c.l.b16 %v2877
          %v2949 = vunpack.c.l.b16 %v2878
          %v2950 = vunpack.c.l.b16 %v2879
          %v2951 = vunpack.c.l.b16 %v2880
          %v2952 = vunpack.c.l.b16 %v2881
          %v2953 = vunpack.c.l.b16 %v2882
          %v2954 = vunpack.c.l.b16 %v2883
          %v2955 = vunpack.c.l.b16 %v2884
          %v2956 = vunpack.c.l.b16 %v2885
          %v2957 = vunpack.c.l.b16 %v2886
          %v2958 = vunpack.c.l.b16 %v2887
          %v2959 = vunpack.c.l.b16 %v2888
          %v2960 = vunpack.c.l.b16 %v2889
          %v2961 = vunpack.c.l.b16 %v2890
          %v2962 = vunpack.c.l.b16 %v2891
          %v2963 = vunpack.c.l.b16 %v2892
          %v2964 = vpack.c.b16 %v2933, %v2932
          %v2965 = vpack.c.b16 %v2935, %v2934
          %v2966 = vpack.c.b16 %v2937, %v2936
          %v2967 = vpack.c.b16 %v2939, %v2938
          %v2968 = vpack.c.b16 %v2941, %v2940
          %v2969 = vpack.c.b16 %v2943, %v2942
          %v2970 = vpack.c.b16 %v2945, %v2944
          %v2971 = vpack.c.b16 %v2947, %v2946
          %v2972 = vpack.c.b16 %v2949, %v2948
          %v2973 = vpack.c.b16 %v2951, %v2950
          %v2974 = vpack.c.b16 %v2953, %v2952
          %v2975 = vpack.c.b16 %v2955, %v2954
          %v2976 = vpack.c.b16 %v2957, %v2956
          %v2977 = vpack.c.b16 %v2959, %v2958
          %v2978 = vpack.c.b16 %v2961, %v2960
          %v2979 = vpack.c.b16 %v2963, %v2962
          %2996 = vmatprep.subr.bf16.mxu0 0
          %2997 = vmatpush1.bf16.msra.mxu0 %v2971
          %2998 = vmatprep.subr.bf16.mxu0 0
          %2999 = vmatpush1.bf16.msra.mxu0 %v2970
          %3000 = vmatprep.subr.bf16.mxu0 0
          %3001 = vmatpush1.bf16.msra.mxu0 %v2969
          %3002 = vmatprep.subr.bf16.mxu0 0
          %3003 = vmatpush1.bf16.msra.mxu0 %v2968
          %3004 = vmatprep.subr.bf16.mxu0 0
          %3005 = vmatpush1.bf16.msra.mxu0 %v2967
          %3006 = vmatprep.subr.bf16.mxu0 0
          %3007 = vmatpush1.bf16.msra.mxu0 %v2966
          %3008 = vmatprep.subr.bf16.mxu0 0
          %3009 = vmatpush1.bf16.msra.mxu0 %v2965
          %3010 = vmatprep.subr.bf16.mxu0 0
          %3011 = vmatpush1.bf16.msra.mxu0 %v2964
          %3012 = vmatprep.subr.bf16.mxu0 0
          %3013 = vmatpush2.bf16.msra.mxu0 %v2979
          %3014 = vmatprep.subr.bf16.mxu0 0
          %3015 = vmatpush2.bf16.msra.mxu0 %v2978
          %3016 = vmatprep.subr.bf16.mxu0 0
          %3017 = vmatpush2.bf16.msra.mxu0 %v2977
          %3018 = vmatprep.subr.bf16.mxu0 0
          %3019 = vmatpush2.bf16.msra.mxu0 %v2976
          %3020 = vmatprep.subr.bf16.mxu0 0
          %3021 = vmatpush2.bf16.msra.mxu0 %v2975
          %3022 = vmatprep.subr.bf16.mxu0 0
          %3023 = vmatpush2.bf16.msra.mxu0 %v2974
          %3024 = vmatprep.subr.bf16.mxu0 0
          %3025 = vmatpush2.bf16.msra.mxu0 %v2973
          %3026 = vmatprep.subr.bf16.mxu0 0
          %3027 = vmatpush2.bf16.msra.mxu0 %v2972
          %3028 = vmatprep.mubr.bf16.mxu0 %v2829
          %3029 = vmatmul.mubr.bf16.gmra.mxu0 %v2717
          %v3030 = vpop.f32.mrf.mxu0
          %v3031 = vadd.f32 %v2898, %v3030
          %v3032 = vpop.f32.mrf.mxu0
          %v3033 = vpop.f32.mrf.mxu0
          %v3034 = vadd.f32 %v2898, %v3033
          %v3035 = vpop.f32.mrf.mxu0
          %3036 = vmatprep.mubr.bf16.mxu0 %v2830
          %3037 = vmatmul.mubr.bf16.gmra.mxu0 %v2718
          %v3038 = vpop.f32.mrf.mxu0
          %v3039 = vadd.f32 %v2898, %v3038
          %v3040 = vpop.f32.mrf.mxu0
          %v3041 = vpop.f32.mrf.mxu0
          %v3042 = vadd.f32 %v2898, %v3041
          %v3043 = vpop.f32.mrf.mxu0
          %3044 = vmatprep.mubr.bf16.mxu0 %v2831
          %3045 = vmatmul.mubr.bf16.gmra.mxu0 %v2719
          %v3046 = vpop.f32.mrf.mxu0
          %v3047 = vadd.f32 %v2898, %v3046
          %v3048 = vpop.f32.mrf.mxu0
          %v3049 = vpop.f32.mrf.mxu0
          %v3050 = vadd.f32 %v2898, %v3049
          %v3051 = vpop.f32.mrf.mxu0
          %3052 = vmatprep.mubr.bf16.mxu0 %v2832
          %3053 = vmatmul.mubr.bf16.gmra.mxu0 %v2720
          %v3054 = vpop.f32.mrf.mxu0
          %v3055 = vadd.f32 %v2898, %v3054
          %v3056 = vpop.f32.mrf.mxu0
          %v3057 = vpop.f32.mrf.mxu0
          %v3058 = vadd.f32 %v2898, %v3057
          %v3059 = vpop.f32.mrf.mxu0
          %3060 = vmatprep.mubr.bf16.mxu0 %v2833
          %3061 = vmatmul.mubr.bf16.gmra.mxu0 %v2721
          %v3062 = vpop.f32.mrf.mxu0
          %v3063 = vadd.f32 %v2898, %v3062
          %v3064 = vpop.f32.mrf.mxu0
          %v3065 = vpop.f32.mrf.mxu0
          %v3066 = vadd.f32 %v2898, %v3065
          %v3067 = vpop.f32.mrf.mxu0
          %3068 = vmatprep.mubr.bf16.mxu0 %v2834
          %3069 = vmatmul.mubr.bf16.gmra.mxu0 %v2722
          %v3070 = vpop.f32.mrf.mxu0
          %v3071 = vadd.f32 %v2898, %v3070
          %v3072 = vpop.f32.mrf.mxu0
          %v3073 = vpop.f32.mrf.mxu0
          %v3074 = vadd.f32 %v2898, %v3073
          %v3075 = vpop.f32.mrf.mxu0
          %3076 = vmatprep.mubr.bf16.mxu0 %v2835
          %3077 = vmatmul.mubr.bf16.gmra.mxu0 %v2723
          %v3078 = vpop.f32.mrf.mxu0
          %v3079 = vadd.f32 %v2898, %v3078
          %v3080 = vpop.f32.mrf.mxu0
          %v3081 = vpop.f32.mrf.mxu0
          %v3082 = vadd.f32 %v2898, %v3081
          %v3083 = vpop.f32.mrf.mxu0
          %3084 = vmatprep.mubr.bf16.mxu0 %v2836
          %3085 = vmatmul.mubr.bf16.gmra.mxu0 %v2724
          %v3086 = vpop.f32.mrf.mxu0
          %v3087 = vadd.f32 %v2898, %v3086
          %v3088 = vpop.f32.mrf.mxu0
          %v3089 = vpop.f32.mrf.mxu0
          %v3090 = vadd.f32 %v2898, %v3089
          %v3091 = vpop.f32.mrf.mxu0
          %3092 = vmatprep.mubr.bf16.mxu0 %v2837
          %3093 = vmatmul.mubr.bf16.gmra.mxu0 %v2725
          %v3094 = vpop.f32.mrf.mxu0
          %v3095 = vadd.f32 %v2898, %v3094
          %v3096 = vpop.f32.mrf.mxu0
          %v3097 = vpop.f32.mrf.mxu0
          %v3098 = vadd.f32 %v2898, %v3097
          %v3099 = vpop.f32.mrf.mxu0
          %3100 = vmatprep.mubr.bf16.mxu0 %v2838
          %3101 = vmatmul.mubr.bf16.gmra.mxu0 %v2726
          %v3102 = vpop.f32.mrf.mxu0
          %v3103 = vadd.f32 %v2898, %v3102
          %v3104 = vpop.f32.mrf.mxu0
          %v3105 = vpop.f32.mrf.mxu0
          %v3106 = vadd.f32 %v2898, %v3105
          %v3107 = vpop.f32.mrf.mxu0
          %3108 = vmatprep.mubr.bf16.mxu0 %v2839
          %3109 = vmatmul.mubr.bf16.gmra.mxu0 %v2727
          %v3110 = vpop.f32.mrf.mxu0
          %v3111 = vadd.f32 %v2898, %v3110
          %v3112 = vpop.f32.mrf.mxu0
          %v3113 = vpop.f32.mrf.mxu0
          %v3114 = vadd.f32 %v2898, %v3113
          %v3115 = vpop.f32.mrf.mxu0
          %3116 = vmatprep.mubr.bf16.mxu0 %v2840
          %3117 = vmatmul.mubr.bf16.gmra.mxu0 %v2728
          %v3118 = vpop.f32.mrf.mxu0
          %v3119 = vadd.f32 %v2898, %v3118
          %v3120 = vpop.f32.mrf.mxu0
          %v3121 = vpop.f32.mrf.mxu0
          %v3122 = vadd.f32 %v2898, %v3121
          %v3123 = vpop.f32.mrf.mxu0
          %3124 = vmatprep.mubr.bf16.mxu0 %v2841
          %3125 = vmatmul.mubr.bf16.gmra.mxu0 %v2729
          %v3126 = vpop.f32.mrf.mxu0
          %v3127 = vadd.f32 %v2898, %v3126
          %v3128 = vpop.f32.mrf.mxu0
          %v3129 = vpop.f32.mrf.mxu0
          %v3130 = vadd.f32 %v2898, %v3129
          %v3131 = vpop.f32.mrf.mxu0
          %3132 = vmatprep.mubr.bf16.mxu0 %v2842
          %3133 = vmatmul.mubr.bf16.gmra.mxu0 %v2730
          %v3134 = vpop.f32.mrf.mxu0
          %v3135 = vadd.f32 %v2898, %v3134
          %v3136 = vpop.f32.mrf.mxu0
          %v3137 = vpop.f32.mrf.mxu0
          %v3138 = vadd.f32 %v2898, %v3137
          %v3139 = vpop.f32.mrf.mxu0
          %3140 = vmatprep.mubr.bf16.mxu0 %v2843
          %3141 = vmatmul.mubr.bf16.gmra.mxu0 %v2731
          %v3142 = vpop.f32.mrf.mxu0
          %v3143 = vadd.f32 %v2898, %v3142
          %v3144 = vpop.f32.mrf.mxu0
          %v3145 = vpop.f32.mrf.mxu0
          %v3146 = vadd.f32 %v2898, %v3145
          %v3147 = vpop.f32.mrf.mxu0
          %3148 = vmatprep.mubr.bf16.mxu0 %v2844
          %3149 = vmatmul.mubr.bf16.gmra.mxu0 %v2732
          %v3150 = vpop.f32.mrf.mxu0
          %v3151 = vadd.f32 %v2898, %v3150
          %v3152 = vpop.f32.mrf.mxu0
          %v3153 = vpop.f32.mrf.mxu0
          %v3154 = vadd.f32 %v2898, %v3153
          %v3155 = vpop.f32.mrf.mxu0
          %3156 = vdwg.mxu0
          %v3157 = vmax.f32 %v3031, 0.0
          %v3158 = vmax.f32 %v3034, 0.0
          %v3159 = vmax.f32 %v3039, 0.0
          %v3160 = vmax.f32 %v3042, 0.0
          %v3161 = vmax.f32 %v3047, 0.0
          %v3162 = vmax.f32 %v3050, 0.0
          %v3163 = vmax.f32 %v3055, 0.0
          %v3164 = vmax.f32 %v3058, 0.0
          %v3165 = vmax.f32 %v3063, 0.0
          %v3166 = vmax.f32 %v3066, 0.0
          %v3167 = vmax.f32 %v3071, 0.0
          %v3168 = vmax.f32 %v3074, 0.0
          %v3169 = vmax.f32 %v3079, 0.0
          %v3170 = vmax.f32 %v3082, 0.0
          %v3171 = vmax.f32 %v3087, 0.0
          %v3172 = vmax.f32 %v3090, 0.0
          %v3173 = vmax.f32 %v3095, 0.0
          %v3174 = vmax.f32 %v3098, 0.0
          %v3175 = vmax.f32 %v3103, 0.0
          %v3176 = vmax.f32 %v3106, 0.0
          %v3177 = vmax.f32 %v3111, 0.0
          %v3178 = vmax.f32 %v3114, 0.0
          %v3179 = vmax.f32 %v3119, 0.0
          %v3180 = vmax.f32 %v3122, 0.0
          %v3181 = vmax.f32 %v3127, 0.0
          %v3182 = vmax.f32 %v3130, 0.0
          %v3183 = vmax.f32 %v3135, 0.0
          %v3184 = vmax.f32 %v3138, 0.0
          %v3185 = vmax.f32 %v3143, 0.0
          %v3186 = vmax.f32 %v3146, 0.0
          %v3187 = vmax.f32 %v3151, 0.0
          %v3188 = vmax.f32 %v3154, 0.0
          %v3189 = vpack.c.bf16 %v3158, %v3157
          %v3190 = vpack.c.bf16 %v3160, %v3159
          %v3191 = vpack.c.bf16 %v3162, %v3161
          %v3192 = vpack.c.bf16 %v3164, %v3163
          %v3193 = vpack.c.bf16 %v3166, %v3165
          %v3194 = vpack.c.bf16 %v3168, %v3167
          %v3195 = vpack.c.bf16 %v3170, %v3169
          %v3196 = vpack.c.bf16 %v3172, %v3171
          %v3197 = vpack.c.bf16 %v3174, %v3173
          %v3198 = vpack.c.bf16 %v3176, %v3175
          %v3199 = vpack.c.bf16 %v3178, %v3177
          %v3200 = vpack.c.bf16 %v3180, %v3179
          %v3201 = vpack.c.bf16 %v3182, %v3181
          %v3202 = vpack.c.bf16 %v3184, %v3183
          %v3203 = vpack.c.bf16 %v3186, %v3185
          %v3204 = vpack.c.bf16 %v3188, %v3187
          %v3221 = vunpack.c.l.b16 %v3189
          %v3222 = vunpack.c.h.b16 %v3189
          %v3223 = vunpack.c.l.b16 %v3190
          %v3224 = vunpack.c.h.b16 %v3190
          %v3225 = vunpack.c.l.b16 %v3191
          %v3226 = vunpack.c.h.b16 %v3191
          %v3227 = vunpack.c.l.b16 %v3192
          %v3228 = vunpack.c.h.b16 %v3192
          %v3229 = vunpack.c.l.b16 %v3193
          %v3230 = vunpack.c.h.b16 %v3193
          %v3231 = vunpack.c.l.b16 %v3194
          %v3232 = vunpack.c.h.b16 %v3194
          %v3233 = vunpack.c.l.b16 %v3195
          %v3234 = vunpack.c.h.b16 %v3195
          %v3235 = vunpack.c.l.b16 %v3196
          %v3236 = vunpack.c.h.b16 %v3196
          %v3237 = vunpack.c.l.b16 %v3197
          %v3238 = vunpack.c.h.b16 %v3197
          %v3239 = vunpack.c.l.b16 %v3198
          %v3240 = vunpack.c.h.b16 %v3198
          %v3241 = vunpack.c.l.b16 %v3199
          %v3242 = vunpack.c.h.b16 %v3199
          %v3243 = vunpack.c.l.b16 %v3200
          %v3244 = vunpack.c.h.b16 %v3200
          %v3245 = vunpack.c.l.b16 %v3201
          %v3246 = vunpack.c.h.b16 %v3201
          %v3247 = vunpack.c.l.b16 %v3202
          %v3248 = vunpack.c.h.b16 %v3202
          %v3249 = vunpack.c.l.b16 %v3203
          %v3250 = vunpack.c.h.b16 %v3203
          %v3251 = vunpack.c.l.b16 %v3204
          %v3252 = vunpack.c.h.b16 %v3204
          %v3253 = vpack.c.b16 %v3221, %v3221
          %v3254 = vpack.c.b16 %v3222, %v3222
          %v3255 = vpack.c.b16 %v3223, %v3223
          %v3256 = vpack.c.b16 %v3224, %v3224
          %v3257 = vpack.c.b16 %v3225, %v3225
          %v3258 = vpack.c.b16 %v3226, %v3226
          %v3259 = vpack.c.b16 %v3227, %v3227
          %v3260 = vpack.c.b16 %v3228, %v3228
          %v3261 = vpack.c.b16 %v3229, %v3229
          %v3262 = vpack.c.b16 %v3230, %v3230
          %v3263 = vpack.c.b16 %v3231, %v3231
          %v3264 = vpack.c.b16 %v3232, %v3232
          %v3265 = vpack.c.b16 %v3233, %v3233
          %v3266 = vpack.c.b16 %v3234, %v3234
          %v3267 = vpack.c.b16 %v3235, %v3235
          %v3268 = vpack.c.b16 %v3236, %v3236
          %v3269 = vpack.c.b16 %v3237, %v3237
          %v3270 = vpack.c.b16 %v3238, %v3238
          %v3271 = vpack.c.b16 %v3239, %v3239
          %v3272 = vpack.c.b16 %v3240, %v3240
          %v3273 = vpack.c.b16 %v3241, %v3241
          %v3274 = vpack.c.b16 %v3242, %v3242
          %v3275 = vpack.c.b16 %v3243, %v3243
          %v3276 = vpack.c.b16 %v3244, %v3244
          %v3277 = vpack.c.b16 %v3245, %v3245
          %v3278 = vpack.c.b16 %v3246, %v3246
          %v3279 = vpack.c.b16 %v3247, %v3247
          %v3280 = vpack.c.b16 %v3248, %v3248
          %v3281 = vpack.c.b16 %v3249, %v3249
          %v3282 = vpack.c.b16 %v3250, %v3250
          %v3283 = vpack.c.b16 %v3251, %v3251
          %v3284 = vpack.c.b16 %v3252, %v3252
          %3317 = vst [vmem:[%s389] sm:$0xf] %v3253
          %3318 = vst [vmem:[%s389 + $0x4] sm:$0xf] %v3254
          %3319 = vst [vmem:[%s389 + $0x8] sm:$0xf] %v3255
          %3320 = vst [vmem:[%s389 + $0xc] sm:$0xf] %v3256
          %3321 = vst [vmem:[%s389 + $0x10] sm:$0xf] %v3257
          %3322 = vst [vmem:[%s389 + $0x14] sm:$0xf] %v3258
          %3323 = vst [vmem:[%s389 + $0x18] sm:$0xf] %v3259
          %3324 = vst [vmem:[%s389 + $0x1c] sm:$0xf] %v3260
          %3325 = vst [vmem:[%s389 + $0x20] sm:$0xf] %v3261
          %3326 = vst [vmem:[%s389 + $0x24] sm:$0xf] %v3262
          %3327 = vst [vmem:[%s389 + $0x28] sm:$0xf] %v3263
          %3328 = vst [vmem:[%s389 + $0x2c] sm:$0xf] %v3264
          %3329 = vst [vmem:[%s389 + $0x30] sm:$0xf] %v3265
          %3330 = vst [vmem:[%s389 + $0x34] sm:$0xf] %v3266
          %3331 = vst [vmem:[%s389 + $0x38] sm:$0xf] %v3267
          %3332 = vst [vmem:[%s389 + $0x3c] sm:$0xf] %v3268
          %3333 = vst [vmem:[%s389 + $0x40] sm:$0xf] %v3269
          %3334 = vst [vmem:[%s389 + $0x44] sm:$0xf] %v3270
          %3335 = vst [vmem:[%s389 + $0x48] sm:$0xf] %v3271
          %3336 = vst [vmem:[%s389 + $0x4c] sm:$0xf] %v3272
          %3337 = vst [vmem:[%s389 + $0x50] sm:$0xf] %v3273
          %3338 = vst [vmem:[%s389 + $0x54] sm:$0xf] %v3274
          %3339 = vst [vmem:[%s389 + $0x58] sm:$0xf] %v3275
          %3340 = vst [vmem:[%s389 + $0x5c] sm:$0xf] %v3276
          %3341 = vst [vmem:[%s389 + $0x60] sm:$0xf] %v3277
          %3342 = vst [vmem:[%s389 + $0x64] sm:$0xf] %v3278
          %3343 = vst [vmem:[%s389 + $0x68] sm:$0xf] %v3279
          %3344 = vst [vmem:[%s389 + $0x6c] sm:$0xf] %v3280
          %3345 = vst [vmem:[%s389 + $0x70] sm:$0xf] %v3281
          %3346 = vst [vmem:[%s389 + $0x74] sm:$0xf] %v3282
          %3347 = vst [vmem:[%s389 + $0x78] sm:$0xf] %v3283
          %3348 = vst [vmem:[%s389 + $0x7c] sm:$0xf] %v3284
        $region72: #{tpu_custom_call.1} parent=43 // pred_fallthru
          _
        %s3349 = sand.u32 %s193, 1
        %s3350 = scalar_lea.sflag [#allocation5], %s3349
        %s3351 = sand.u32 %s193, 1
        %s3352 = smul.addr %s3351, 128
        %s3353 = scalar_lea.vmem [#allocation12], %s3352
        // Predicated region
        $region73: #{tpu_custom_call.1} parent=43 // pred_check
          %p3354 = pneg %p203
        $region74: #{tpu_custom_call.1} parent=43 // pred_check_branch
          %3356 = sbr.rel (%p3354) target = $region76
        $region75: #{tpu_custom_call.1} parent=43 // pred_region
          %s3357 = smul.u32 32, %s29
          %s3359 = ssub.s32 2048, 2048
          %3360 = vsyncadd %s3350, %s3359
          %s3361 = smul.addr %s3357, 64
          %s3362 = scalar_lea.hbm %s6, %s3361
          %s3363 = sshll.u32 %s3353, 4
          %s3364 = int_to_ptr.vmem [resolvable:$true] %s3363
          %3369 = dma.vmem_to_hbm [thread:$0]  %s3364, 2048, %s3362, %s3350, 64, 64, 4
        $region76: #{tpu_custom_call.1} parent=43 // pred_fallthru
          _
      $region44: #{tpu_custom_call.1} parent=5 // pred_fallthru
        _
      %p3370 = scmp.le.s32.totalorder 2, %s20
      // Predicated region
      $region77: #{tpu_custom_call.1} parent=5 // pred_check
        %p3371 = pneg %p3370
      $region78: #{tpu_custom_call.1} parent=5 // pred_check_branch
        %3373 = sbr.rel (%p3371) target = $region80
      $region79: #{tpu_custom_call.1} parent=5 // pred_region
        %s3374 = ssub.s32 %s20, 2
        // Predicated region
        $region81: #{tpu_custom_call.1} parent=79 // pred_check
          %p3375 = pneg %p209
        $region82: #{tpu_custom_call.1} parent=79 // pred_check_branch
          %3377 = sbr.rel (%p3375) target = $region84
        $region83: #{tpu_custom_call.1} parent=79 // pred_region
          %s3378 = sand.u32 %s194, 1
          %s3379 = scalar_lea.sflag [#allocation5], %s3378
          %s3380 = sand.u32 %s194, 1
          %s3381 = smul.addr %s3380, 128
          %s3382 = scalar_lea.vmem [#allocation12], %s3381
          %3383 = dma.done %s3379, 2048
        $region84: #{tpu_custom_call.1} parent=79 // pred_fallthru
          _
      $region80: #{tpu_custom_call.1} parent=5 // pred_fallthru
        _
    $region6: #{tpu_custom_call.1} parent=1 // loop_footer
      %s24 = sadd.s32 1, %s20
    $region7: #{tpu_custom_call.1} parent=1 // loop_footer_branch
      %19 = sbr.rel target = $region3
    $region8: #{tpu_custom_call.1} parent=1 // loop_exit
      _
    %3384 = vsyncpa [#allocation4], 1
    %s3385 = scalar_lea.sflag [#allocation4], 1
    %3386 = vsyncpa %s3385, 1
    %3387 = vsyncpa [#allocation7], 1
    %3388 = vsyncpa [#allocation11], 1
    %3389 = vsyncpa [#allocation5], 1
    %s3390 = scalar_lea.sflag [#allocation5], 1
    %3391 = vsyncpa %s3390, 1

</llo_original>
